<compile_context>
chip_gen: v7x
topology: tpu7x:2x2x1
jax: 0.10.0
libtpu: 0.0.40
codegen_flags: <defaults>
</compile_context>

<pallas_src>
import numpy as np
import jax
import jax.numpy as jnp
from jax.experimental import pallas as pl
from jax.experimental.pallas import tpu as pltpu


# ---------------------------------------------------------------------------
# Pallas kernel: B graph-blocks per grid step
#   - adjacency aggregation: batched (per-block) matmul, block-diagonal aware
#   - channel matmuls / bias / ReLU / pool / FC: concatenated node / graph dim
# ---------------------------------------------------------------------------
def gcn_kernel(x_ref, adj_ref, pool_ref,
               w1_ref, b1_ref, w2_ref, b2_ref, w3_ref, b3_ref,
               fw1_ref, fb1_ref, fw2_ref, fb2_ref, fw3_ref, fb3_ref,
               out_ref):
    f32, bf16 = jnp.float32, jnp.bfloat16
    B, bN, Fp = x_ref.shape                       # blocks/step, nodes/block, padded F
    Hp = w1_ref.shape[1]
    G = pool_ref.shape[0]                         # graphs per block

    # Shared per-block adjacency / pool matrices, broadcast ONCE per step
    # (hoisted: JAX does not CSE broadcast_in_dim).
    adj_b = jnp.broadcast_to(adj_ref[...], (B, bN, bN))     # (B, bN, bN) bf16
    pool_b = jnp.broadcast_to(pool_ref[...], (B, G, bN))    # (B, G, bN)  bf16

    # --- Layer 1, reordered: (adj @ x) @ W1  (BN folded into W1/b1) ---
    ax = jnp.einsum('bij,bjc->bic', adj_b, x_ref[...],
                    preferred_element_type=f32)             # (B, bN, Fp)
    h = jnp.dot(ax.reshape(B * bN, Fp).astype(bf16), w1_ref[...],
                preferred_element_type=f32) + b1_ref[...]
    h = jnp.maximum(h, 0.0).astype(bf16)                    # (B*bN, Hp)

    # --- Layers 2 & 3: adj @ (H @ W) + b, BN folded, ReLU ---
    for w_ref, b_ref in ((w2_ref, b2_ref), (w3_ref, b3_ref)):
        hw = jnp.dot(h, w_ref[...], preferred_element_type=f32)   # (B*bN, Hp)
        agg = jnp.einsum('bij,bjc->bic', adj_b,
                         hw.astype(bf16).reshape(B, bN, Hp),
                         preferred_element_type=f32)               # (B, bN, Hp)
        h = jnp.maximum(agg.reshape(B * bN, Hp) + b_ref[...], 0.0).astype(bf16)

    # --- global_mean_pool per block, then concatenate graphs across blocks ---
    g = jnp.einsum('bgj,bjc->bgc', pool_b, h.reshape(B, bN, Hp),
                   preferred_element_type=f32)              # (B, G, Hp)
    g = g.reshape(B * G, Hp)

    # --- fc1 -> ReLU, fc2 -> ReLU, fc3 (output lane-padded to 128) ---
    z = jnp.maximum(jnp.dot(g.astype(bf16), fw1_ref[...],
                            preferred_element_type=f32) + fb1_ref[...], 0.0)
    z = jnp.maximum(jnp.dot(z.astype(bf16), fw2_ref[...],
                            preferred_element_type=f32) + fb2_ref[...], 0.0)
    z = jnp.dot(z.astype(bf16), fw3_ref[...],
                preferred_element_type=f32) + fb3_ref[...]   # (B*G, OUTp)

    # TODO(synk): dropout(p, training=True) is stochastic; eval mode (identity) here.
    out_ref[...] = z


# ---------------------------------------------------------------------------
# Wrapper: 2 "parallel" grid steps (megacore on v7x), B blocks per step
# ---------------------------------------------------------------------------
def gcn_forward(x_blocks, adj_block, pool_block, params, blocks_per_step=2):
    num_blocks, block_n, fp = x_blocks.shape
    g_per_block = pool_block.shape[0]
    outp = params[-1].shape[-1]

    assert num_blocks % blocks_per_step == 0
    num_steps = num_blocks // blocks_per_step
    graphs_per_step = blocks_per_step * g_per_block
    num_graphs = num_blocks * g_per_block

    def const_spec(arr):                 # weight / shared-matrix: constant block
        return pl.BlockSpec(arr.shape, lambda i: (0, 0))

    in_specs = ([pl.BlockSpec((blocks_per_step, block_n, fp), lambda i: (i, 0, 0)),
                 const_spec(adj_block),
                 const_spec(pool_block)]
                + [const_spec(p) for p in params])
    out_spec = pl.BlockSpec((graphs_per_step, outp), lambda i: (i, 0))

    out = pl.pallas_call(
        gcn_kernel,
        out_shape=jax.ShapeDtypeStruct((num_graphs, outp), jnp.float32),
        grid=(num_steps,),
        in_specs=in_specs,
        out_specs=out_spec,
        compiler_params=pltpu.CompilerParams(
            dimension_semantics=("parallel",),
            vmem_limit_bytes=32 * 1024 * 1024),
    )(x_blocks, adj_block, pool_block, *params)

    # Lane-dense (num_graphs, 128) was written; logical fc3 output is column 0.
    return out[:, 0]                                          # matches x.flatten()


# ---------------------------------------------------------------------------
# Parameter construction: BN folded into conv weights, zero-padded to 128 lanes
# ---------------------------------------------------------------------------
def build_params(key, F, H, L, Fp, Hp, Lp, OUTp):
    f32 = jnp.float32
    eps = 1e-5
    keys = iter(jax.random.split(key, 24))

    def lin(fan_in, fan_out):
        lim = 1.0 / np.sqrt(fan_in)
        w = jax.random.uniform(next(keys), (fan_in, fan_out), f32, -lim, lim)
        b = jax.random.uniform(next(keys), (fan_out,), f32, -lim, lim)
        return w, b

    def bn(c):
        gamma = 1.0 + 0.1 * jax.random.normal(next(keys), (c,), f32)
        beta = 0.1 * jax.random.normal(next(keys), (c,), f32)
        rmean = 0.1 * jax.random.normal(next(keys), (c,), f32)
        rvar = 1.0 + 0.1 * jax.random.uniform(next(keys), (c,), f32)
        scale = gamma / jnp.sqrt(rvar + eps)
        shift = beta - rmean * scale
        return scale, shift

    def fold_conv_bn(w, b, scale, shift):
        # BN_eval(A_hat @ (X @ W) + b) == A_hat @ (X @ (W*s)) + (b*s + t)
        return w * scale[None, :], b * scale + shift

    def pad_w(w, rows, cols):            # zero-pad then cast to bf16 for the MXU
        return jnp.pad(w, ((0, rows - w.shape[0]), (0, cols - w.shape[1]))
                       ).astype(jnp.bfloat16)

    def pad_b(b, cols):                  # biases stay f32 (added post-accumulation)
        return jnp.pad(b, (0, cols - b.shape[0])).reshape(1, cols).astype(f32)

    w1, b1 = lin(F, H); s1, t1 = bn(H); w1, b1 = fold_conv_bn(w1, b1, s1, t1)
    w2, b2 = lin(H, H); s2, t2 = bn(H); w2, b2 = fold_conv_bn(w2, b2, s2, t2)
    w3, b3 = lin(H, H); s3, t3 = bn(H); w3, b3 = fold_conv_bn(w3, b3, s3, t3)
    fw1, fb1 = lin(H, L)
    fw2, fb2 = lin(L, L)
    fw3, fb3 = lin(L, 1)

    return [pad_w(w1, Fp, Hp), pad_b(b1, Hp),
            pad_w(w2, Hp, Hp), pad_b(b2, Hp),
            pad_w(w3, Hp, Hp), pad_b(b3, Hp),
            pad_w(fw1, Hp, Lp), pad_b(fb1, Lp),
            pad_w(fw2, Lp, Lp), pad_b(fb2, Lp),
            pad_w(fw3, Lp, OUTp), pad_b(fb3, OUTp)]


# ---------------------------------------------------------------------------
# Graph construction: ring graphs; ONE shared block-diagonal block (no replication)
# ---------------------------------------------------------------------------
def build_graph_block(nodes_per_graph, graphs_per_block):
    n = nodes_per_graph
    ring = np.zeros((n, n), np.float32)
    for i in range(n):
        ring[i, (i + 1) % n] = 1.0
        ring[(i + 1) % n, i] = 1.0
    a_hat = ring + np.eye(n, dtype=np.float32)                 # add self loops
    d_inv_sqrt = 1.0 / np.sqrt(a_hat.sum(axis=1))
    a_norm = d_inv_sqrt[:, None] * a_hat * d_inv_sqrt[None, :]  # D^-1/2 (A+I) D^-1/2

    block_n = n * graphs_per_block
    adj_block = np.zeros((block_n, block_n), np.float32)
    pool_block = np.zeros((graphs_per_block, block_n), np.float32)
    for g in range(graphs_per_block):
        s = g * n
        adj_block[s:s + n, s:s + n] = a_norm
        pool_block[g, s:s + n] = 1.0 / n                       # global_mean_pool rows

    return (jnp.asarray(adj_block, jnp.bfloat16),
            jnp.asarray(pool_block, jnp.bfloat16))


# ---------------------------------------------------------------------------
if __name__ == "__main__":
    # num_node_features = len(atom_properties_dict['C']) + 1 -> 8 (7 properties + 1)
    num_node_features = 8
    hidden_channels = 32
    linear_neurons = 32

    nodes_per_graph = 16
    graphs_per_block = 16          # 256 nodes per block
    num_blocks = 4
    blocks_per_step = 2            # grid=(2,) "parallel" -> one step per v7x core
    num_graphs = graphs_per_block * num_blocks            # 64 graphs per call
    N = nodes_per_graph * num_graphs                      # 1024 nodes total
    block_N = nodes_per_graph * graphs_per_block          # 256

    Fp = Hp = Lp = OUTp = 128      # lane-padded channel widths (keep at 128, not 256)

    key = jax.random.PRNGKey(0)
    kx, kp = jax.random.split(key)

    x = jax.random.normal(kx, (N, num_node_features), jnp.float32)
    x_pad = jnp.pad(x, ((0, 0), (0, Fp - num_node_features)))
    x_blocks = x_pad.reshape(num_blocks, block_N, Fp).astype(jnp.bfloat16)

    adj_block, pool_block = build_graph_block(nodes_per_graph, graphs_per_block)
    params = build_params(kp, num_node_features, hidden_channels, linear_neurons,
                          Fp, Hp, Lp, OUTp)

    out = gcn_forward(x_blocks, adj_block, pool_block, params,
                      blocks_per_step=blocks_per_step)
    out = jax.block_until_ready(out)
    assert out.shape == (num_graphs,) and out.dtype == jnp.float32
    print("KERNEL_OK")
</pallas_src>

<mosaic_0001>
module attributes {stable_mosaic.version = 11 : i64} {
  func.func @gcn_kernel(%arg0: i32, %arg1: memref<2x256x128xbf16, #tpu.memory_space<vmem>>, %arg2: memref<256x256xbf16, #tpu.memory_space<vmem>>, %arg3: memref<16x256xbf16, #tpu.memory_space<vmem>>, %arg4: memref<128x128xbf16, #tpu.memory_space<vmem>>, %arg5: memref<1x128xf32, #tpu.memory_space<vmem>>, %arg6: memref<128x128xbf16, #tpu.memory_space<vmem>>, %arg7: memref<1x128xf32, #tpu.memory_space<vmem>>, %arg8: memref<128x128xbf16, #tpu.memory_space<vmem>>, %arg9: memref<1x128xf32, #tpu.memory_space<vmem>>, %arg10: memref<128x128xbf16, #tpu.memory_space<vmem>>, %arg11: memref<1x128xf32, #tpu.memory_space<vmem>>, %arg12: memref<128x128xbf16, #tpu.memory_space<vmem>>, %arg13: memref<1x128xf32, #tpu.memory_space<vmem>>, %arg14: memref<128x128xbf16, #tpu.memory_space<vmem>>, %arg15: memref<1x128xf32, #tpu.memory_space<vmem>>, %arg16: memref<32x128xf32, #tpu.memory_space<vmem>>) attributes {dimension_semantics = [#tpu.dimension_semantics<parallel>], iteration_bounds = array<i64: 2>, scalar_prefetch = 0 : i64, scratch_operands = 0 : i64, tpu.core_type = #tpu.core_type<tc>, window_params = [{transform_indices = @transform_0, window_bounds = array<i64: 2, 256, 128>}, {pipeline_mode = #tpu.pipeline_mode<synchronous>, transform_indices = @transform_1, window_bounds = array<i64: 256, 256>}, {pipeline_mode = #tpu.pipeline_mode<synchronous>, transform_indices = @transform_2, window_bounds = array<i64: 16, 256>}, {pipeline_mode = #tpu.pipeline_mode<synchronous>, transform_indices = @transform_3, window_bounds = array<i64: 128, 128>}, {pipeline_mode = #tpu.pipeline_mode<synchronous>, transform_indices = @transform_4, window_bounds = array<i64: 1, 128>}, {pipeline_mode = #tpu.pipeline_mode<synchronous>, transform_indices = @transform_5, window_bounds = array<i64: 128, 128>}, {pipeline_mode = #tpu.pipeline_mode<synchronous>, transform_indices = @transform_6, window_bounds = array<i64: 1, 128>}, {pipeline_mode = #tpu.pipeline_mode<synchronous>, transform_indices = @transform_7, window_bounds = array<i64: 128, 128>}, {pipeline_mode = #tpu.pipeline_mode<synchronous>, transform_indices = @transform_8, window_bounds = array<i64: 1, 128>}, {pipeline_mode = #tpu.pipeline_mode<synchronous>, transform_indices = @transform_9, window_bounds = array<i64: 128, 128>}, {pipeline_mode = #tpu.pipeline_mode<synchronous>, transform_indices = @transform_10, window_bounds = array<i64: 1, 128>}, {pipeline_mode = #tpu.pipeline_mode<synchronous>, transform_indices = @transform_11, window_bounds = array<i64: 128, 128>}, {pipeline_mode = #tpu.pipeline_mode<synchronous>, transform_indices = @transform_12, window_bounds = array<i64: 1, 128>}, {pipeline_mode = #tpu.pipeline_mode<synchronous>, transform_indices = @transform_13, window_bounds = array<i64: 128, 128>}, {pipeline_mode = #tpu.pipeline_mode<synchronous>, transform_indices = @transform_14, window_bounds = array<i64: 1, 128>}, {transform_indices = @transform_15, window_bounds = array<i64: 32, 128>}]} {
    %c0 = arith.constant 0 : index
    %c0_0 = arith.constant 0 : index
    %0 = vector.load %arg2[%c0, %c0_0] : memref<256x256xbf16, #tpu.memory_space<vmem>>, vector<256x256xbf16>
    %1 = vector.shape_cast %0 : vector<256x256xbf16> to vector<1x256x256xbf16>
    %2 = vector.broadcast %1 : vector<1x256x256xbf16> to vector<2x256x256xbf16>
    %c0_1 = arith.constant 0 : index
    %c0_2 = arith.constant 0 : index
    %3 = vector.load %arg3[%c0_1, %c0_2] : memref<16x256xbf16, #tpu.memory_space<vmem>>, vector<16x256xbf16>
    %4 = vector.shape_cast %3 : vector<16x256xbf16> to vector<1x16x256xbf16>
    %5 = vector.broadcast %4 : vector<1x16x256xbf16> to vector<2x16x256xbf16>
    %c0_3 = arith.constant 0 : index
    %c0_4 = arith.constant 0 : index
    %c0_5 = arith.constant 0 : index
    %6 = vector.load %arg1[%c0_3, %c0_4, %c0_5] : memref<2x256x128xbf16, #tpu.memory_space<vmem>>, vector<2x256x128xbf16>
    "tpu.trace_start"() <{level = 10 : i32, message = "bij,bjc->bic"}> : () -> ()
    %cst = arith.constant dense<0.000000e+00> : vector<2x256x128xf32>
    %7 = tpu.matmul %2, %6, %cst {dimension_numbers = #tpu.dot_dimension_numbers<[2], [1], [1], [2], [0, 0, 0, 1, 1, 2], [0], [0]>} : vector<2x256x256xbf16>, vector<2x256x128xbf16>, vector<2x256x128xf32> -> vector<2x256x128xf32>
    "tpu.trace_stop"() : () -> ()
    %8 = vector.shape_cast %7 : vector<2x256x128xf32> to vector<512x128xf32>
    %9 = arith.truncf %8 : vector<512x128xf32> to vector<512x128xbf16>
    %c0_6 = arith.constant 0 : index
    %c0_7 = arith.constant 0 : index
    %10 = vector.load %arg4[%c0_6, %c0_7] : memref<128x128xbf16, #tpu.memory_space<vmem>>, vector<128x128xbf16>
    %cst_8 = arith.constant dense<0.000000e+00> : vector<512x128xf32>
    %11 = tpu.matmul %9, %10, %cst_8 {dimension_numbers = #tpu.dot_dimension_numbers<[1], [0], [0], [1], [0, 0, 1, 1], [], []>} : vector<512x128xbf16>, vector<128x128xbf16>, vector<512x128xf32> -> vector<512x128xf32>
    %c0_9 = arith.constant 0 : index
    %c0_10 = arith.constant 0 : index
    %12 = vector.load %arg5[%c0_9, %c0_10] : memref<1x128xf32, #tpu.memory_space<vmem>>, vector<1x128xf32>
    %13 = vector.broadcast %12 : vector<1x128xf32> to vector<512x128xf32>
    %14 = arith.addf %11, %13 : vector<512x128xf32>
    %cst_11 = arith.constant 0.000000e+00 : f32
    %15 = vector.broadcast %cst_11 : f32 to vector<512x128xf32>
    %16 = arith.maximumf %14, %15 : vector<512x128xf32>
    %17 = arith.truncf %16 : vector<512x128xf32> to vector<512x128xbf16>
    %c0_12 = arith.constant 0 : index
    %c0_13 = arith.constant 0 : index
    %18 = vector.load %arg6[%c0_12, %c0_13] : memref<128x128xbf16, #tpu.memory_space<vmem>>, vector<128x128xbf16>
    %cst_14 = arith.constant dense<0.000000e+00> : vector<512x128xf32>
    %19 = tpu.matmul %17, %18, %cst_14 {dimension_numbers = #tpu.dot_dimension_numbers<[1], [0], [0], [1], [0, 0, 1, 1], [], []>} : vector<512x128xbf16>, vector<128x128xbf16>, vector<512x128xf32> -> vector<512x128xf32>
    %20 = arith.truncf %19 : vector<512x128xf32> to vector<512x128xbf16>
    %21 = vector.shape_cast %20 : vector<512x128xbf16> to vector<2x256x128xbf16>
    "tpu.trace_start"() <{level = 10 : i32, message = "bij,bjc->bic"}> : () -> ()
    %cst_15 = arith.constant dense<0.000000e+00> : vector<2x256x128xf32>
    %22 = tpu.matmul %2, %21, %cst_15 {dimension_numbers = #tpu.dot_dimension_numbers<[2], [1], [1], [2], [0, 0, 0, 1, 1, 2], [0], [0]>} : vector<2x256x256xbf16>, vector<2x256x128xbf16>, vector<2x256x128xf32> -> vector<2x256x128xf32>
    "tpu.trace_stop"() : () -> ()
    %23 = vector.shape_cast %22 : vector<2x256x128xf32> to vector<512x128xf32>
    %c0_16 = arith.constant 0 : index
    %c0_17 = arith.constant 0 : index
    %24 = vector.load %arg7[%c0_16, %c0_17] : memref<1x128xf32, #tpu.memory_space<vmem>>, vector<1x128xf32>
    %25 = vector.broadcast %24 : vector<1x128xf32> to vector<512x128xf32>
    %26 = arith.addf %23, %25 : vector<512x128xf32>
    %cst_18 = arith.constant 0.000000e+00 : f32
    %27 = vector.broadcast %cst_18 : f32 to vector<512x128xf32>
    %28 = arith.maximumf %26, %27 : vector<512x128xf32>
    %29 = arith.truncf %28 : vector<512x128xf32> to vector<512x128xbf16>
    %c0_19 = arith.constant 0 : index
    %c0_20 = arith.constant 0 : index
    %30 = vector.load %arg8[%c0_19, %c0_20] : memref<128x128xbf16, #tpu.memory_space<vmem>>, vector<128x128xbf16>
    %cst_21 = arith.constant dense<0.000000e+00> : vector<512x128xf32>
    %31 = tpu.matmul %29, %30, %cst_21 {dimension_numbers = #tpu.dot_dimension_numbers<[1], [0], [0], [1], [0, 0, 1, 1], [], []>} : vector<512x128xbf16>, vector<128x128xbf16>, vector<512x128xf32> -> vector<512x128xf32>
    %32 = arith.truncf %31 : vector<512x128xf32> to vector<512x128xbf16>
    %33 = vector.shape_cast %32 : vector<512x128xbf16> to vector<2x256x128xbf16>
    "tpu.trace_start"() <{level = 10 : i32, message = "bij,bjc->bic"}> : () -> ()
    %cst_22 = arith.constant dense<0.000000e+00> : vector<2x256x128xf32>
    %34 = tpu.matmul %2, %33, %cst_22 {dimension_numbers = #tpu.dot_dimension_numbers<[2], [1], [1], [2], [0, 0, 0, 1, 1, 2], [0], [0]>} : vector<2x256x256xbf16>, vector<2x256x128xbf16>, vector<2x256x128xf32> -> vector<2x256x128xf32>
    "tpu.trace_stop"() : () -> ()
    %35 = vector.shape_cast %34 : vector<2x256x128xf32> to vector<512x128xf32>
    %c0_23 = arith.constant 0 : index
    %c0_24 = arith.constant 0 : index
    %36 = vector.load %arg9[%c0_23, %c0_24] : memref<1x128xf32, #tpu.memory_space<vmem>>, vector<1x128xf32>
    %37 = vector.broadcast %36 : vector<1x128xf32> to vector<512x128xf32>
    %38 = arith.addf %35, %37 : vector<512x128xf32>
    %cst_25 = arith.constant 0.000000e+00 : f32
    %39 = vector.broadcast %cst_25 : f32 to vector<512x128xf32>
    %40 = arith.maximumf %38, %39 : vector<512x128xf32>
    %41 = arith.truncf %40 : vector<512x128xf32> to vector<512x128xbf16>
    %42 = vector.shape_cast %41 : vector<512x128xbf16> to vector<2x256x128xbf16>
    "tpu.trace_start"() <{level = 10 : i32, message = "bgj,bjc->bgc"}> : () -> ()
    %cst_26 = arith.constant dense<0.000000e+00> : vector<2x16x128xf32>
    %43 = tpu.matmul %5, %42, %cst_26 {dimension_numbers = #tpu.dot_dimension_numbers<[2], [1], [1], [2], [0, 0, 0, 1, 1, 2], [0], [0]>} : vector<2x16x256xbf16>, vector<2x256x128xbf16>, vector<2x16x128xf32> -> vector<2x16x128xf32>
    "tpu.trace_stop"() : () -> ()
    %44 = vector.shape_cast %43 : vector<2x16x128xf32> to vector<32x128xf32>
    %45 = arith.truncf %44 : vector<32x128xf32> to vector<32x128xbf16>
    %c0_27 = arith.constant 0 : index
    %c0_28 = arith.constant 0 : index
    %46 = vector.load %arg10[%c0_27, %c0_28] : memref<128x128xbf16, #tpu.memory_space<vmem>>, vector<128x128xbf16>
    %cst_29 = arith.constant dense<0.000000e+00> : vector<32x128xf32>
    %47 = tpu.matmul %45, %46, %cst_29 {dimension_numbers = #tpu.dot_dimension_numbers<[1], [0], [0], [1], [0, 0, 1, 1], [], []>} : vector<32x128xbf16>, vector<128x128xbf16>, vector<32x128xf32> -> vector<32x128xf32>
    %c0_30 = arith.constant 0 : index
    %c0_31 = arith.constant 0 : index
    %48 = vector.load %arg11[%c0_30, %c0_31] : memref<1x128xf32, #tpu.memory_space<vmem>>, vector<1x128xf32>
    %49 = vector.broadcast %48 : vector<1x128xf32> to vector<32x128xf32>
    %50 = arith.addf %47, %49 : vector<32x128xf32>
    %cst_32 = arith.constant 0.000000e+00 : f32
    %51 = vector.broadcast %cst_32 : f32 to vector<32x128xf32>
    %52 = arith.maximumf %50, %51 : vector<32x128xf32>
    %53 = arith.truncf %52 : vector<32x128xf32> to vector<32x128xbf16>
    %c0_33 = arith.constant 0 : index
    %c0_34 = arith.constant 0 : index
    %54 = vector.load %arg12[%c0_33, %c0_34] : memref<128x128xbf16, #tpu.memory_space<vmem>>, vector<128x128xbf16>
    %cst_35 = arith.constant dense<0.000000e+00> : vector<32x128xf32>
    %55 = tpu.matmul %53, %54, %cst_35 {dimension_numbers = #tpu.dot_dimension_numbers<[1], [0], [0], [1], [0, 0, 1, 1], [], []>} : vector<32x128xbf16>, vector<128x128xbf16>, vector<32x128xf32> -> vector<32x128xf32>
    %c0_36 = arith.constant 0 : index
    %c0_37 = arith.constant 0 : index
    %56 = vector.load %arg13[%c0_36, %c0_37] : memref<1x128xf32, #tpu.memory_space<vmem>>, vector<1x128xf32>
    %57 = vector.broadcast %56 : vector<1x128xf32> to vector<32x128xf32>
    %58 = arith.addf %55, %57 : vector<32x128xf32>
    %cst_38 = arith.constant 0.000000e+00 : f32
    %59 = vector.broadcast %cst_38 : f32 to vector<32x128xf32>
    %60 = arith.maximumf %58, %59 : vector<32x128xf32>
    %61 = arith.truncf %60 : vector<32x128xf32> to vector<32x128xbf16>
    %c0_39 = arith.constant 0 : index
    %c0_40 = arith.constant 0 : index
    %62 = vector.load %arg14[%c0_39, %c0_40] : memref<128x128xbf16, #tpu.memory_space<vmem>>, vector<128x128xbf16>
    %cst_41 = arith.constant dense<0.000000e+00> : vector<32x128xf32>
    %63 = tpu.matmul %61, %62, %cst_41 {dimension_numbers = #tpu.dot_dimension_numbers<[1], [0], [0], [1], [0, 0, 1, 1], [], []>} : vector<32x128xbf16>, vector<128x128xbf16>, vector<32x128xf32> -> vector<32x128xf32>
    %c0_42 = arith.constant 0 : index
    %c0_43 = arith.constant 0 : index
    %64 = vector.load %arg15[%c0_42, %c0_43] : memref<1x128xf32, #tpu.memory_space<vmem>>, vector<1x128xf32>
    %65 = vector.broadcast %64 : vector<1x128xf32> to vector<32x128xf32>
    %66 = arith.addf %63, %65 : vector<32x128xf32>
    %c0_44 = arith.constant 0 : index
    %c0_45 = arith.constant 0 : index
    %67 = vector.load %arg16[%c0_44, %c0_45] : memref<32x128xf32, #tpu.memory_space<vmem>>, vector<32x128xf32>
    tpu.vector_store %arg16[%c0_44, %c0_45], %66 {strides = array<i32>} : memref<32x128xf32, #tpu.memory_space<vmem>>, vector<32x128xf32>,
    return
  }
  func.func @transform_0(%arg0: i32) -> (i32, i32, i32) {
    %c0_i32 = arith.constant 0 : i32
    %c0_i32_0 = arith.constant 0 : i32
    %c0_i32_1 = arith.constant 0 : i32
    return %arg0, %c0_i32, %c0_i32_0 : i32, i32, i32
  }
  func.func @transform_1(%arg0: i32) -> (i32, i32) {
    %c0_i32 = arith.constant 0 : i32
    %c0_i32_0 = arith.constant 0 : i32
    %c0_i32_1 = arith.constant 0 : i32
    return %c0_i32, %c0_i32_0 : i32, i32
  }
  func.func @transform_2(%arg0: i32) -> (i32, i32) {
    %c0_i32 = arith.constant 0 : i32
    %c0_i32_0 = arith.constant 0 : i32
    %c0_i32_1 = arith.constant 0 : i32
    return %c0_i32, %c0_i32_0 : i32, i32
  }
  func.func @transform_3(%arg0: i32) -> (i32, i32) {
    %c0_i32 = arith.constant 0 : i32
    %c0_i32_0 = arith.constant 0 : i32
    %c0_i32_1 = arith.constant 0 : i32
    return %c0_i32, %c0_i32_0 : i32, i32
  }
  func.func @transform_4(%arg0: i32) -> (i32, i32) {
    %c0_i32 = arith.constant 0 : i32
    %c0_i32_0 = arith.constant 0 : i32
    %c0_i32_1 = arith.constant 0 : i32
    return %c0_i32, %c0_i32_0 : i32, i32
  }
  func.func @transform_5(%arg0: i32) -> (i32, i32) {
    %c0_i32 = arith.constant 0 : i32
    %c0_i32_0 = arith.constant 0 : i32
    %c0_i32_1 = arith.constant 0 : i32
    return %c0_i32, %c0_i32_0 : i32, i32
  }
  func.func @transform_6(%arg0: i32) -> (i32, i32) {
    %c0_i32 = arith.constant 0 : i32
    %c0_i32_0 = arith.constant 0 : i32
    %c0_i32_1 = arith.constant 0 : i32
    return %c0_i32, %c0_i32_0 : i32, i32
  }
  func.func @transform_7(%arg0: i32) -> (i32, i32) {
    %c0_i32 = arith.constant 0 : i32
    %c0_i32_0 = arith.constant 0 : i32
    %c0_i32_1 = arith.constant 0 : i32
    return %c0_i32, %c0_i32_0 : i32, i32
  }
  func.func @transform_8(%arg0: i32) -> (i32, i32) {
    %c0_i32 = arith.constant 0 : i32
    %c0_i32_0 = arith.constant 0 : i32
    %c0_i32_1 = arith.constant 0 : i32
    return %c0_i32, %c0_i32_0 : i32, i32
  }
  func.func @transform_9(%arg0: i32) -> (i32, i32) {
    %c0_i32 = arith.constant 0 : i32
    %c0_i32_0 = arith.constant 0 : i32
    %c0_i32_1 = arith.constant 0 : i32
    return %c0_i32, %c0_i32_0 : i32, i32
  }
  func.func @transform_10(%arg0: i32) -> (i32, i32) {
    %c0_i32 = arith.constant 0 : i32
    %c0_i32_0 = arith.constant 0 : i32
    %c0_i32_1 = arith.constant 0 : i32
    return %c0_i32, %c0_i32_0 : i32, i32
  }
  func.func @transform_11(%arg0: i32) -> (i32, i32) {
    %c0_i32 = arith.constant 0 : i32
    %c0_i32_0 = arith.constant 0 : i32
    %c0_i32_1 = arith.constant 0 : i32
    return %c0_i32, %c0_i32_0 : i32, i32
  }
  func.func @transform_12(%arg0: i32) -> (i32, i32) {
    %c0_i32 = arith.constant 0 : i32
    %c0_i32_0 = arith.constant 0 : i32
    %c0_i32_1 = arith.constant 0 : i32
    return %c0_i32, %c0_i32_0 : i32, i32
  }
  func.func @transform_13(%arg0: i32) -> (i32, i32) {
    %c0_i32 = arith.constant 0 : i32
    %c0_i32_0 = arith.constant 0 : i32
    %c0_i32_1 = arith.constant 0 : i32
    return %c0_i32, %c0_i32_0 : i32, i32
  }
  func.func @transform_14(%arg0: i32) -> (i32, i32) {
    %c0_i32 = arith.constant 0 : i32
    %c0_i32_0 = arith.constant 0 : i32
    %c0_i32_1 = arith.constant 0 : i32
    return %c0_i32, %c0_i32_0 : i32, i32
  }
  func.func @transform_15(%arg0: i32) -> (i32, i32) {
    %c0_i32 = arith.constant 0 : i32
    %c0_i32_0 = arith.constant 0 : i32
    return %arg0, %c0_i32 : i32, i32
  }
}

</mosaic_0001>

<llo_original>
// kernel: tpu_custom_call.1
$region0: #{tpu_custom_call.1}
  #allocation0 [shape = 'u32[]', space=smem, size = 0x4, offset = 0x4, fixed_abs, tag = 'smem constant byte address 0x4 - core index']
  #allocation1 [shape = 'u32[144,128]{1,0:T(1,128)}', space=vmem, size = 0x12000, scoped, tag = 'internal scratch']
  %s0 = inlined_call_operand.hbm [shape: bf16[4,256,128], index: 0, kind: input, shape index: {}]
  %s1 = inlined_call_operand.hbm [shape: bf16[256,256], index: 1, kind: input, shape index: {}]
  %s2 = inlined_call_operand.hbm [shape: bf16[16,256], index: 2, kind: input, shape index: {}]
  %s3 = inlined_call_operand.hbm [shape: bf16[128,128], index: 3, kind: input, shape index: {}]
  %s4 = inlined_call_operand.vmem [shape: f32[1,128], index: 4, kind: input, shape index: {}]
  %s5 = inlined_call_operand.hbm [shape: bf16[128,128], index: 5, kind: input, shape index: {}]
  %s6 = inlined_call_operand.vmem [shape: f32[1,128], index: 6, kind: input, shape index: {}]
  %s7 = inlined_call_operand.hbm [shape: bf16[128,128], index: 7, kind: input, shape index: {}]
  %s8 = inlined_call_operand.vmem [shape: f32[1,128], index: 8, kind: input, shape index: {}]
  %s9 = inlined_call_operand.hbm [shape: bf16[128,128], index: 9, kind: input, shape index: {}]
  %s10 = inlined_call_operand.vmem [shape: f32[1,128], index: 10, kind: input, shape index: {}]
  %s11 = inlined_call_operand.hbm [shape: bf16[128,128], index: 11, kind: input, shape index: {}]
  %s12 = inlined_call_operand.vmem [shape: f32[1,128], index: 12, kind: input, shape index: {}]
  %s13 = inlined_call_operand.hbm [shape: bf16[128,128], index: 13, kind: input, shape index: {}]
  %s14 = inlined_call_operand.vmem [shape: f32[1,128], index: 14, kind: input, shape index: {}]
  %s15 = inlined_call_operand.hbm [shape: f32[64,128], index: 15, kind: output, shape index: {}]
  %s16 = sld [smem:[#allocation0]]
  $region129: #{tpu_custom_call.1} parent=0
    _
  %s18 = ssub.s32 1, %s16
  %s19 = scalar_select 0, %s18, %s16
  $region1: #{tpu_custom_call.1} parent=0
    #allocation2 [shape = 'u8[262144]{0}', space=vmem, size = 0x40000, scoped, tag = 'input window, operand 0']
    #allocation3 [shape = 's32[2]{0}', space=sflag, size = 0x8, scoped, tag = 'scoped memory for tpu_custom_call.1']
    #allocation4 [shape = 's32[2]{0}', space=sflag, size = 0x8, scoped, tag = 'scoped memory for tpu_custom_call.1']
    #allocation5 [shape = 'u8[131072]{0}', space=vmem, size = 0x20000, scoped, tag = 'input window, operand 1, single buffered']
    #allocation6 [shape = 's32[1]{0}', space=sflag, size = 0x4, scoped, tag = 'scoped memory for tpu_custom_call.1']
    #allocation7 [shape = 'u8[8192]{0}', space=vmem, size = 0x2000, scoped, tag = 'input window, operand 2, single buffered']
    #allocation8 [shape = 'u8[32768]{0}', space=vmem, size = 0x8000, scoped, tag = 'input window, operand 3, single buffered']
    #allocation9 [shape = 's32[1]{0}', space=sflag, size = 0x4, scoped, tag = 'scoped memory for tpu_custom_call.1']
    #allocation10 [shape = 'u8[32768]{0}', space=vmem, size = 0x8000, scoped, tag = 'input window, operand 5, single buffered']
    #allocation11 [shape = 'u8[32768]{0}', space=vmem, size = 0x8000, scoped, tag = 'input window, operand 7, single buffered']
    #allocation12 [shape = 's32[1]{0}', space=sflag, size = 0x4, scoped, tag = 'scoped memory for tpu_custom_call.1']
    #allocation13 [shape = 'u8[32768]{0}', space=vmem, size = 0x8000, scoped, tag = 'input window, operand 9, single buffered']
    #allocation14 [shape = 'u8[32768]{0}', space=vmem, size = 0x8000, scoped, tag = 'input window, operand 11, single buffered']
    #allocation15 [shape = 's32[1]{0}', space=sflag, size = 0x4, scoped, tag = 'scoped memory for tpu_custom_call.1']
    #allocation16 [shape = 'u8[32768]{0}', space=vmem, size = 0x8000, scoped, tag = 'input window, operand 13, single buffered']
    #allocation17 [shape = 'u8[32768]{0}', space=vmem, size = 0x8000, scoped, tag = 'output window, operand 0']
    %20 = vsyncpa [#allocation3], 0
    %s21 = scalar_lea.sflag [#allocation3], 1
    %22 = vsyncpa %s21, 0
    %23 = vsyncpa [#allocation6], 0
    %24 = vsyncpa [#allocation9], 0
    %25 = vsyncpa [#allocation12], 0
    %26 = vsyncpa [#allocation15], 0
    %27 = vsyncpa [#allocation4], 0
    %s28 = scalar_lea.sflag [#allocation4], 1
    %29 = vsyncpa %s28, 0
    loop: start=0, step=1, limit=4
    $region2: #{tpu_custom_call.1} parent=1 // loop_pre_header
      _
    $region3: #{tpu_custom_call.1} parent=1 // loop_header
      %s31 = sphi 0, %s35
      %p32 = scmp.ge.s32.totalorder %s31, 4
      %s41 = sphi 0, %s43
      %s44 = sphi 0, %s41
      %s45 = sphi 0, %s44
      %s61 = sphi 0, %s45
      %s65 = sphi 0, %s65
      %s67 = sphi 0, %s65
      %s68 = sphi 0, %s67
      %s82 = sphi 0, %s68
      %s86 = sphi 0, %s86
      %s88 = sphi 0, %s86
      %s89 = sphi 0, %s88
      %s103 = sphi 0, %s89
      %s107 = sphi 0, %s107
      %s109 = sphi 0, %s107
      %s110 = sphi 0, %s109
      %s124 = sphi 0, %s110
      %s128 = sphi 0, %s128
      %s130 = sphi 0, %s128
      %s131 = sphi 0, %s130
      %s145 = sphi 0, %s131
      %s149 = sphi 0, %s149
      %s151 = sphi 0, %s149
      %s152 = sphi 0, %s151
      %s166 = sphi 0, %s152
      %s170 = sphi 0, %s170
      %s172 = sphi 0, %s170
      %s173 = sphi 0, %s172
      %s187 = sphi 0, %s173
      %s191 = sphi 0, %s191
      %s193 = sphi 0, %s191
      %s194 = sphi 0, %s193
      %s208 = sphi 0, %s194
      %s212 = sphi 0, %s212
      %s214 = sphi 0, %s212
      %s215 = sphi 0, %s214
      %s229 = sphi 0, %s215
      %s233 = sphi 0, %s233
      %s235 = sphi 0, %s233
      %s236 = sphi 0, %s235
      %s250 = sphi 0, %s236
      %s254 = sphi 0, %s254
      %s256 = sphi 0, %s254
      %s257 = sphi 0, %s256
      %s271 = sphi 0, %s257
      %s275 = sphi 0, %s275
      %s277 = sphi 0, %s275
      %s278 = sphi 0, %s277
      %s292 = sphi 0, %s278
      %s296 = sphi 0, %s296
      %s298 = sphi 0, %s296
      %s299 = sphi 0, %s298
      %s313 = sphi 0, %s299
      %s317 = sphi 0, %s317
      %s319 = sphi 0, %s317
      %s320 = sphi 0, %s319
      %s334 = sphi 0, %s320
      %s338 = sphi 0, %s338
      %s340 = sphi 0, %s338
      %s341 = sphi 0, %s340
      %s355 = sphi 0, %s341
      %s361 = sphi 0, %s363
      %s364 = sphi 0, %s361
      %s365 = sphi 0, %s364
      %s381 = sphi 0, %s365
    $region4: #{tpu_custom_call.1} parent=1 // loop_header_branch
      %34 = sbr.rel (%p32) target = $region8
    $region5: #{tpu_custom_call.1} parent=1 // loop_body
      %s36 = ssub.s32 %s31, 1
      %s37 = ssub.s32 %s31, 2
      %s38 = sadd.s32 %s31, 1
      %s39 = ssub.s32 %s31, %s38
      %p40 = scmp.eq.s32.totalorder %s39, 0
      %s42 = sadd.s32 %s41, 1
      %s43 = scalar_select %p40, %s41, %s42
      %p46 = pneg %p40
      %p47 = scmp.eq.s32.totalorder %s31, 1
      %p48 = por %p46, %p47
      %p49 = scmp.ne.s32.totalorder %s41, %s44
      %p50 = scmp.eq.s32.totalorder %s31, 0
      %p51 = por %p49, %p50
      %p52 = scmp.ne.s32.totalorder %s41, %s44
      %p53 = scmp.eq.s32.totalorder %s36, 1
      %p54 = por %p52, %p53
      %p55 = scmp.ne.s32.totalorder %s44, %s45
      %p56 = scmp.eq.s32.totalorder %s36, 0
      %p57 = por %p55, %p56
      %p58 = scmp.ne.s32.totalorder %s44, %s45
      %p59 = scmp.eq.s32.totalorder %s37, 1
      %p60 = por %p58, %p59
      %p62 = scmp.ne.s32.totalorder %s45, %s61
      %p63 = scmp.eq.s32.totalorder %s37, 0
      %p64 = por %p62, %p63
      %s66 = sadd.s32 %s65, 1
      %p69 = scmp.eq.s32.totalorder %s31, 1
      %p70 = scmp.ne.s32.totalorder %s65, %s67
      %p71 = scmp.eq.s32.totalorder %s31, 0
      %p72 = por %p70, %p71
      %p73 = scmp.ne.s32.totalorder %s65, %s67
      %p74 = scmp.eq.s32.totalorder %s36, 1
      %p75 = por %p73, %p74
      %p76 = scmp.ne.s32.totalorder %s67, %s68
      %p77 = scmp.eq.s32.totalorder %s36, 0
      %p78 = por %p76, %p77
      %p79 = scmp.ne.s32.totalorder %s67, %s68
      %p80 = scmp.eq.s32.totalorder %s37, 1
      %p81 = por %p79, %p80
      %p83 = scmp.ne.s32.totalorder %s68, %s82
      %p84 = scmp.eq.s32.totalorder %s37, 0
      %p85 = por %p83, %p84
      %s87 = sadd.s32 %s86, 1
      %p90 = scmp.eq.s32.totalorder %s31, 1
      %p91 = scmp.ne.s32.totalorder %s86, %s88
      %p92 = scmp.eq.s32.totalorder %s31, 0
      %p93 = por %p91, %p92
      %p94 = scmp.ne.s32.totalorder %s86, %s88
      %p95 = scmp.eq.s32.totalorder %s36, 1
      %p96 = por %p94, %p95
      %p97 = scmp.ne.s32.totalorder %s88, %s89
      %p98 = scmp.eq.s32.totalorder %s36, 0
      %p99 = por %p97, %p98
      %p100 = scmp.ne.s32.totalorder %s88, %s89
      %p101 = scmp.eq.s32.totalorder %s37, 1
      %p102 = por %p100, %p101
      %p104 = scmp.ne.s32.totalorder %s89, %s103
      %p105 = scmp.eq.s32.totalorder %s37, 0
      %p106 = por %p104, %p105
      %s108 = sadd.s32 %s107, 1
      %p111 = scmp.eq.s32.totalorder %s31, 1
      %p112 = scmp.ne.s32.totalorder %s107, %s109
      %p113 = scmp.eq.s32.totalorder %s31, 0
      %p114 = por %p112, %p113
      %p115 = scmp.ne.s32.totalorder %s107, %s109
      %p116 = scmp.eq.s32.totalorder %s36, 1
      %p117 = por %p115, %p116
      %p118 = scmp.ne.s32.totalorder %s109, %s110
      %p119 = scmp.eq.s32.totalorder %s36, 0
      %p120 = por %p118, %p119
      %p121 = scmp.ne.s32.totalorder %s109, %s110
      %p122 = scmp.eq.s32.totalorder %s37, 1
      %p123 = por %p121, %p122
      %p125 = scmp.ne.s32.totalorder %s110, %s124
      %p126 = scmp.eq.s32.totalorder %s37, 0
      %p127 = por %p125, %p126
      %s129 = sadd.s32 %s128, 1
      %p132 = scmp.eq.s32.totalorder %s31, 1
      %p133 = scmp.ne.s32.totalorder %s128, %s130
      %p134 = scmp.eq.s32.totalorder %s31, 0
      %p135 = por %p133, %p134
      %p136 = scmp.ne.s32.totalorder %s128, %s130
      %p137 = scmp.eq.s32.totalorder %s36, 1
      %p138 = por %p136, %p137
      %p139 = scmp.ne.s32.totalorder %s130, %s131
      %p140 = scmp.eq.s32.totalorder %s36, 0
      %p141 = por %p139, %p140
      %p142 = scmp.ne.s32.totalorder %s130, %s131
      %p143 = scmp.eq.s32.totalorder %s37, 1
      %p144 = por %p142, %p143
      %p146 = scmp.ne.s32.totalorder %s131, %s145
      %p147 = scmp.eq.s32.totalorder %s37, 0
      %p148 = por %p146, %p147
      %s150 = sadd.s32 %s149, 1
      %p153 = scmp.eq.s32.totalorder %s31, 1
      %p154 = scmp.ne.s32.totalorder %s149, %s151
      %p155 = scmp.eq.s32.totalorder %s31, 0
      %p156 = por %p154, %p155
      %p157 = scmp.ne.s32.totalorder %s149, %s151
      %p158 = scmp.eq.s32.totalorder %s36, 1
      %p159 = por %p157, %p158
      %p160 = scmp.ne.s32.totalorder %s151, %s152
      %p161 = scmp.eq.s32.totalorder %s36, 0
      %p162 = por %p160, %p161
      %p163 = scmp.ne.s32.totalorder %s151, %s152
      %p164 = scmp.eq.s32.totalorder %s37, 1
      %p165 = por %p163, %p164
      %p167 = scmp.ne.s32.totalorder %s152, %s166
      %p168 = scmp.eq.s32.totalorder %s37, 0
      %p169 = por %p167, %p168
      %s171 = sadd.s32 %s170, 1
      %p174 = scmp.eq.s32.totalorder %s31, 1
      %p175 = scmp.ne.s32.totalorder %s170, %s172
      %p176 = scmp.eq.s32.totalorder %s31, 0
      %p177 = por %p175, %p176
      %p178 = scmp.ne.s32.totalorder %s170, %s172
      %p179 = scmp.eq.s32.totalorder %s36, 1
      %p180 = por %p178, %p179
      %p181 = scmp.ne.s32.totalorder %s172, %s173
      %p182 = scmp.eq.s32.totalorder %s36, 0
      %p183 = por %p181, %p182
      %p184 = scmp.ne.s32.totalorder %s172, %s173
      %p185 = scmp.eq.s32.totalorder %s37, 1
      %p186 = por %p184, %p185
      %p188 = scmp.ne.s32.totalorder %s173, %s187
      %p189 = scmp.eq.s32.totalorder %s37, 0
      %p190 = por %p188, %p189
      %s192 = sadd.s32 %s191, 1
      %p195 = scmp.eq.s32.totalorder %s31, 1
      %p196 = scmp.ne.s32.totalorder %s191, %s193
      %p197 = scmp.eq.s32.totalorder %s31, 0
      %p198 = por %p196, %p197
      %p199 = scmp.ne.s32.totalorder %s191, %s193
      %p200 = scmp.eq.s32.totalorder %s36, 1
      %p201 = por %p199, %p200
      %p202 = scmp.ne.s32.totalorder %s193, %s194
      %p203 = scmp.eq.s32.totalorder %s36, 0
      %p204 = por %p202, %p203
      %p205 = scmp.ne.s32.totalorder %s193, %s194
      %p206 = scmp.eq.s32.totalorder %s37, 1
      %p207 = por %p205, %p206
      %p209 = scmp.ne.s32.totalorder %s194, %s208
      %p210 = scmp.eq.s32.totalorder %s37, 0
      %p211 = por %p209, %p210
      %s213 = sadd.s32 %s212, 1
      %p216 = scmp.eq.s32.totalorder %s31, 1
      %p217 = scmp.ne.s32.totalorder %s212, %s214
      %p218 = scmp.eq.s32.totalorder %s31, 0
      %p219 = por %p217, %p218
      %p220 = scmp.ne.s32.totalorder %s212, %s214
      %p221 = scmp.eq.s32.totalorder %s36, 1
      %p222 = por %p220, %p221
      %p223 = scmp.ne.s32.totalorder %s214, %s215
      %p224 = scmp.eq.s32.totalorder %s36, 0
      %p225 = por %p223, %p224
      %p226 = scmp.ne.s32.totalorder %s214, %s215
      %p227 = scmp.eq.s32.totalorder %s37, 1
      %p228 = por %p226, %p227
      %p230 = scmp.ne.s32.totalorder %s215, %s229
      %p231 = scmp.eq.s32.totalorder %s37, 0
      %p232 = por %p230, %p231
      %s234 = sadd.s32 %s233, 1
      %p237 = scmp.eq.s32.totalorder %s31, 1
      %p238 = scmp.ne.s32.totalorder %s233, %s235
      %p239 = scmp.eq.s32.totalorder %s31, 0
      %p240 = por %p238, %p239
      %p241 = scmp.ne.s32.totalorder %s233, %s235
      %p242 = scmp.eq.s32.totalorder %s36, 1
      %p243 = por %p241, %p242
      %p244 = scmp.ne.s32.totalorder %s235, %s236
      %p245 = scmp.eq.s32.totalorder %s36, 0
      %p246 = por %p244, %p245
      %p247 = scmp.ne.s32.totalorder %s235, %s236
      %p248 = scmp.eq.s32.totalorder %s37, 1
      %p249 = por %p247, %p248
      %p251 = scmp.ne.s32.totalorder %s236, %s250
      %p252 = scmp.eq.s32.totalorder %s37, 0
      %p253 = por %p251, %p252
      %s255 = sadd.s32 %s254, 1
      %p258 = scmp.eq.s32.totalorder %s31, 1
      %p259 = scmp.ne.s32.totalorder %s254, %s256
      %p260 = scmp.eq.s32.totalorder %s31, 0
      %p261 = por %p259, %p260
      %p262 = scmp.ne.s32.totalorder %s254, %s256
      %p263 = scmp.eq.s32.totalorder %s36, 1
      %p264 = por %p262, %p263
      %p265 = scmp.ne.s32.totalorder %s256, %s257
      %p266 = scmp.eq.s32.totalorder %s36, 0
      %p267 = por %p265, %p266
      %p268 = scmp.ne.s32.totalorder %s256, %s257
      %p269 = scmp.eq.s32.totalorder %s37, 1
      %p270 = por %p268, %p269
      %p272 = scmp.ne.s32.totalorder %s257, %s271
      %p273 = scmp.eq.s32.totalorder %s37, 0
      %p274 = por %p272, %p273
      %s276 = sadd.s32 %s275, 1
      %p279 = scmp.eq.s32.totalorder %s31, 1
      %p280 = scmp.ne.s32.totalorder %s275, %s277
      %p281 = scmp.eq.s32.totalorder %s31, 0
      %p282 = por %p280, %p281
      %p283 = scmp.ne.s32.totalorder %s275, %s277
      %p284 = scmp.eq.s32.totalorder %s36, 1
      %p285 = por %p283, %p284
      %p286 = scmp.ne.s32.totalorder %s277, %s278
      %p287 = scmp.eq.s32.totalorder %s36, 0
      %p288 = por %p286, %p287
      %p289 = scmp.ne.s32.totalorder %s277, %s278
      %p290 = scmp.eq.s32.totalorder %s37, 1
      %p291 = por %p289, %p290
      %p293 = scmp.ne.s32.totalorder %s278, %s292
      %p294 = scmp.eq.s32.totalorder %s37, 0
      %p295 = por %p293, %p294
      %s297 = sadd.s32 %s296, 1
      %p300 = scmp.eq.s32.totalorder %s31, 1
      %p301 = scmp.ne.s32.totalorder %s296, %s298
      %p302 = scmp.eq.s32.totalorder %s31, 0
      %p303 = por %p301, %p302
      %p304 = scmp.ne.s32.totalorder %s296, %s298
      %p305 = scmp.eq.s32.totalorder %s36, 1
      %p306 = por %p304, %p305
      %p307 = scmp.ne.s32.totalorder %s298, %s299
      %p308 = scmp.eq.s32.totalorder %s36, 0
      %p309 = por %p307, %p308
      %p310 = scmp.ne.s32.totalorder %s298, %s299
      %p311 = scmp.eq.s32.totalorder %s37, 1
      %p312 = por %p310, %p311
      %p314 = scmp.ne.s32.totalorder %s299, %s313
      %p315 = scmp.eq.s32.totalorder %s37, 0
      %p316 = por %p314, %p315
      %s318 = sadd.s32 %s317, 1
      %p321 = scmp.eq.s32.totalorder %s31, 1
      %p322 = scmp.ne.s32.totalorder %s317, %s319
      %p323 = scmp.eq.s32.totalorder %s31, 0
      %p324 = por %p322, %p323
      %p325 = scmp.ne.s32.totalorder %s317, %s319
      %p326 = scmp.eq.s32.totalorder %s36, 1
      %p327 = por %p325, %p326
      %p328 = scmp.ne.s32.totalorder %s319, %s320
      %p329 = scmp.eq.s32.totalorder %s36, 0
      %p330 = por %p328, %p329
      %p331 = scmp.ne.s32.totalorder %s319, %s320
      %p332 = scmp.eq.s32.totalorder %s37, 1
      %p333 = por %p331, %p332
      %p335 = scmp.ne.s32.totalorder %s320, %s334
      %p336 = scmp.eq.s32.totalorder %s37, 0
      %p337 = por %p335, %p336
      %s339 = sadd.s32 %s338, 1
      %p342 = scmp.eq.s32.totalorder %s31, 1
      %p343 = scmp.ne.s32.totalorder %s338, %s340
      %p344 = scmp.eq.s32.totalorder %s31, 0
      %p345 = por %p343, %p344
      %p346 = scmp.ne.s32.totalorder %s338, %s340
      %p347 = scmp.eq.s32.totalorder %s36, 1
      %p348 = por %p346, %p347
      %p349 = scmp.ne.s32.totalorder %s340, %s341
      %p350 = scmp.eq.s32.totalorder %s36, 0
      %p351 = por %p349, %p350
      %p352 = scmp.ne.s32.totalorder %s340, %s341
      %p353 = scmp.eq.s32.totalorder %s37, 1
      %p354 = por %p352, %p353
      %p356 = scmp.ne.s32.totalorder %s341, %s355
      %p357 = scmp.eq.s32.totalorder %s37, 0
      %p358 = por %p356, %p357
      %s359 = ssub.s32 %s31, %s38
      %p360 = scmp.eq.s32.totalorder %s359, 0
      %s362 = sadd.s32 %s361, 1
      %s363 = scalar_select %p360, %s361, %s362
      %p366 = pneg %p360
      %p367 = scmp.eq.s32.totalorder %s31, 1
      %p368 = por %p366, %p367
      %p369 = scmp.ne.s32.totalorder %s361, %s364
      %p370 = scmp.eq.s32.totalorder %s31, 0
      %p371 = por %p369, %p370
      %p372 = scmp.ne.s32.totalorder %s361, %s364
      %p373 = scmp.eq.s32.totalorder %s36, 1
      %p374 = por %p372, %p373
      %p375 = scmp.ne.s32.totalorder %s364, %s365
      %p376 = scmp.eq.s32.totalorder %s36, 0
      %p377 = por %p375, %p376
      %p378 = scmp.ne.s32.totalorder %s364, %s365
      %p379 = scmp.eq.s32.totalorder %s37, 1
      %p380 = por %p378, %p379
      %p382 = scmp.ne.s32.totalorder %s365, %s381
      %p383 = scmp.eq.s32.totalorder %s37, 0
      %p384 = por %p382, %p383
      %p385 = scmp.le.s32.totalorder 1, %s31
      %p386 = scmp.lt.s32.totalorder %s31, 3
      %p387 = pnand %p385, %p386
      %p388 = pneg %p387
      // Predicated region
      $region9: #{tpu_custom_call.1} parent=5 // pred_check
        _
      $region10: #{tpu_custom_call.1} parent=5 // pred_check_branch
        %390 = sbr.rel (%p387) target = $region12
      $region11: #{tpu_custom_call.1} parent=5 // pred_region
        %s391 = ssub.s32 %s31, 1
        // Predicated region
        $region13: #{tpu_custom_call.1} parent=11 // pred_check
          %p392 = pneg %p78
        $region14: #{tpu_custom_call.1} parent=11 // pred_check_branch
          %394 = sbr.rel (%p392) target = $region16
        $region15: #{tpu_custom_call.1} parent=11 // pred_region
          %s396 = ssub.s32 4096, 4096
          %397 = vsyncadd [#allocation6], %s396
          %s398 = sshll.u32 [#allocation5], 4
          %s399 = int_to_ptr.vmem [resolvable:$true] %s398
          %404 = dma.hbm_to_vmem [thread:$0]  %s1, 4096, %s399, [#allocation6], 128, 128, 8
        $region16: #{tpu_custom_call.1} parent=11 // pred_fallthru
          _
        // Predicated region
        $region17: #{tpu_custom_call.1} parent=11 // pred_check
          %p405 = pneg %p99
        $region18: #{tpu_custom_call.1} parent=11 // pred_check_branch
          %407 = sbr.rel (%p405) target = $region20
        $region19: #{tpu_custom_call.1} parent=11 // pred_region
          %s409 = ssub.s32 256, 256
          %410 = vsyncadd [#allocation6], %s409
          %s411 = sshll.u32 [#allocation7], 4
          %s412 = int_to_ptr.vmem [resolvable:$true] %s411
          %417 = dma.hbm_to_vmem [thread:$0]  %s2, 256, %s412, [#allocation6], 128, 128, 8
        $region20: #{tpu_custom_call.1} parent=11 // pred_fallthru
          _
        // Predicated region
        $region21: #{tpu_custom_call.1} parent=11 // pred_check
          %p418 = pneg %p120
        $region22: #{tpu_custom_call.1} parent=11 // pred_check_branch
          %420 = sbr.rel (%p418) target = $region24
        $region23: #{tpu_custom_call.1} parent=11 // pred_region
          %s422 = ssub.s32 1024, 1024
          %423 = vsyncadd [#allocation9], %s422
          %s424 = sshll.u32 [#allocation8], 4
          %s425 = int_to_ptr.vmem [resolvable:$true] %s424
          %430 = dma.hbm_to_vmem [thread:$0]  %s3, 1024, %s425, [#allocation9], 64, 64, 4
        $region24: #{tpu_custom_call.1} parent=11 // pred_fallthru
          _
        // Predicated region
        $region25: #{tpu_custom_call.1} parent=11 // pred_check
          %p431 = pneg %p141
        $region26: #{tpu_custom_call.1} parent=11 // pred_check_branch
          %433 = sbr.rel (%p431) target = $region28
        $region27: #{tpu_custom_call.1} parent=11 // pred_region
          _
        $region28: #{tpu_custom_call.1} parent=11 // pred_fallthru
          _
        // Predicated region
        $region29: #{tpu_custom_call.1} parent=11 // pred_check
          %p434 = pneg %p162
        $region30: #{tpu_custom_call.1} parent=11 // pred_check_branch
          %436 = sbr.rel (%p434) target = $region32
        $region31: #{tpu_custom_call.1} parent=11 // pred_region
          %s438 = ssub.s32 1024, 1024
          %439 = vsyncadd [#allocation9], %s438
          %s440 = sshll.u32 [#allocation10], 4
          %s441 = int_to_ptr.vmem [resolvable:$true] %s440
          %446 = dma.hbm_to_vmem [thread:$0]  %s5, 1024, %s441, [#allocation9], 64, 64, 4
        $region32: #{tpu_custom_call.1} parent=11 // pred_fallthru
          _
        // Predicated region
        $region33: #{tpu_custom_call.1} parent=11 // pred_check
          %p447 = pneg %p183
        $region34: #{tpu_custom_call.1} parent=11 // pred_check_branch
          %449 = sbr.rel (%p447) target = $region36
        $region35: #{tpu_custom_call.1} parent=11 // pred_region
          _
        $region36: #{tpu_custom_call.1} parent=11 // pred_fallthru
          _
        // Predicated region
        $region37: #{tpu_custom_call.1} parent=11 // pred_check
          %p450 = pneg %p204
        $region38: #{tpu_custom_call.1} parent=11 // pred_check_branch
          %452 = sbr.rel (%p450) target = $region40
        $region39: #{tpu_custom_call.1} parent=11 // pred_region
          %s454 = ssub.s32 1024, 1024
          %455 = vsyncadd [#allocation12], %s454
          %s456 = sshll.u32 [#allocation11], 4
          %s457 = int_to_ptr.vmem [resolvable:$true] %s456
          %462 = dma.hbm_to_vmem [thread:$0]  %s7, 1024, %s457, [#allocation12], 64, 64, 4
        $region40: #{tpu_custom_call.1} parent=11 // pred_fallthru
          _
        // Predicated region
        $region41: #{tpu_custom_call.1} parent=11 // pred_check
          %p463 = pneg %p225
        $region42: #{tpu_custom_call.1} parent=11 // pred_check_branch
          %465 = sbr.rel (%p463) target = $region44
        $region43: #{tpu_custom_call.1} parent=11 // pred_region
          _
        $region44: #{tpu_custom_call.1} parent=11 // pred_fallthru
          _
        // Predicated region
        $region45: #{tpu_custom_call.1} parent=11 // pred_check
          %p466 = pneg %p246
        $region46: #{tpu_custom_call.1} parent=11 // pred_check_branch
          %468 = sbr.rel (%p466) target = $region48
        $region47: #{tpu_custom_call.1} parent=11 // pred_region
          %s470 = ssub.s32 1024, 1024
          %471 = vsyncadd [#allocation12], %s470
          %s472 = sshll.u32 [#allocation13], 4
          %s473 = int_to_ptr.vmem [resolvable:$true] %s472
          %478 = dma.hbm_to_vmem [thread:$0]  %s9, 1024, %s473, [#allocation12], 64, 64, 4
        $region48: #{tpu_custom_call.1} parent=11 // pred_fallthru
          _
        // Predicated region
        $region49: #{tpu_custom_call.1} parent=11 // pred_check
          %p479 = pneg %p267
        $region50: #{tpu_custom_call.1} parent=11 // pred_check_branch
          %481 = sbr.rel (%p479) target = $region52
        $region51: #{tpu_custom_call.1} parent=11 // pred_region
          _
        $region52: #{tpu_custom_call.1} parent=11 // pred_fallthru
          _
        // Predicated region
        $region53: #{tpu_custom_call.1} parent=11 // pred_check
          %p482 = pneg %p288
        $region54: #{tpu_custom_call.1} parent=11 // pred_check_branch
          %484 = sbr.rel (%p482) target = $region56
        $region55: #{tpu_custom_call.1} parent=11 // pred_region
          %s486 = ssub.s32 1024, 1024
          %487 = vsyncadd [#allocation15], %s486
          %s488 = sshll.u32 [#allocation14], 4
          %s489 = int_to_ptr.vmem [resolvable:$true] %s488
          %494 = dma.hbm_to_vmem [thread:$0]  %s11, 1024, %s489, [#allocation15], 64, 64, 4
        $region56: #{tpu_custom_call.1} parent=11 // pred_fallthru
          _
        // Predicated region
        $region57: #{tpu_custom_call.1} parent=11 // pred_check
          %p495 = pneg %p309
        $region58: #{tpu_custom_call.1} parent=11 // pred_check_branch
          %497 = sbr.rel (%p495) target = $region60
        $region59: #{tpu_custom_call.1} parent=11 // pred_region
          _
        $region60: #{tpu_custom_call.1} parent=11 // pred_fallthru
          _
        // Predicated region
        $region61: #{tpu_custom_call.1} parent=11 // pred_check
          %p498 = pneg %p330
        $region62: #{tpu_custom_call.1} parent=11 // pred_check_branch
          %500 = sbr.rel (%p498) target = $region64
        $region63: #{tpu_custom_call.1} parent=11 // pred_region
          %s502 = ssub.s32 1024, 1024
          %503 = vsyncadd [#allocation15], %s502
          %s504 = sshll.u32 [#allocation16], 4
          %s505 = int_to_ptr.vmem [resolvable:$true] %s504
          %510 = dma.hbm_to_vmem [thread:$0]  %s13, 1024, %s505, [#allocation15], 64, 64, 4
        $region64: #{tpu_custom_call.1} parent=11 // pred_fallthru
          _
        // Predicated region
        $region65: #{tpu_custom_call.1} parent=11 // pred_check
          %p511 = pneg %p351
        $region66: #{tpu_custom_call.1} parent=11 // pred_check_branch
          %513 = sbr.rel (%p511) target = $region68
        $region67: #{tpu_custom_call.1} parent=11 // pred_region
          _
        $region68: #{tpu_custom_call.1} parent=11 // pred_fallthru
          _
      $region12: #{tpu_custom_call.1} parent=5 // pred_fallthru
        _
      %p514 = scmp.lt.s32.totalorder %s31, 2
      // Predicated region
      $region69: #{tpu_custom_call.1} parent=5 // pred_check
        %p515 = pneg %p514
      $region70: #{tpu_custom_call.1} parent=5 // pred_check_branch
        %517 = sbr.rel (%p515) target = $region72
      $region71: #{tpu_custom_call.1} parent=5 // pred_region
        // Predicated region
        $region73: #{tpu_custom_call.1} parent=71 // pred_check
          %p518 = pneg %p51
        $region74: #{tpu_custom_call.1} parent=71 // pred_check_branch
          %520 = sbr.rel (%p518) target = $region76
        $region75: #{tpu_custom_call.1} parent=71 // pred_region
          %s521 = sand.u32 %s41, 1
          %s522 = scalar_lea.sflag [#allocation3], %s521
          %s523 = sand.u32 %s41, 1
          %s524 = smul.addr %s523, 256
          %s525 = scalar_lea.vmem [#allocation2], %s524
          %s526 = smul.u32 2, %s31
          %s528 = ssub.s32 4096, 4096
          %529 = vsyncadd %s522, %s528
          %s530 = smul.addr %s526, 32
          %s531 = smul.addr %s530, 64
          %s532 = scalar_lea.hbm %s0, %s531
          %s533 = sshll.u32 %s525, 4
          %s534 = int_to_ptr.vmem [resolvable:$true] %s533
          %539 = dma.hbm_to_vmem [thread:$0]  %s532, 4096, %s534, %s522, 64, 64, 4
        $region76: #{tpu_custom_call.1} parent=71 // pred_fallthru
          _
      $region72: #{tpu_custom_call.1} parent=5 // pred_fallthru
        _
      %p540 = scmp.le.s32.totalorder 1, %s31
      %p541 = scmp.lt.s32.totalorder %s31, 3
      %p542 = pnand %p540, %p541
      %p543 = pneg %p542
      // Predicated region
      $region77: #{tpu_custom_call.1} parent=5 // pred_check
        _
      $region78: #{tpu_custom_call.1} parent=5 // pred_check_branch
        %545 = sbr.rel (%p542) target = $region80
      $region79: #{tpu_custom_call.1} parent=5 // pred_region
        %s546 = ssub.s32 %s31, 1
        %s547 = sand.u32 %s44, 1
        %s548 = scalar_lea.sflag [#allocation3], %s547
        %s549 = sand.u32 %s44, 1
        %s550 = smul.addr %s549, 256
        %s551 = scalar_lea.vmem [#allocation2], %s550
        // Predicated region
        $region81: #{tpu_custom_call.1} parent=79 // pred_check
          %p552 = pneg %p57
        $region82: #{tpu_custom_call.1} parent=79 // pred_check_branch
          %554 = sbr.rel (%p552) target = $region84
        $region83: #{tpu_custom_call.1} parent=79 // pred_region
          %555 = dma.done %s548, 4096
        $region84: #{tpu_custom_call.1} parent=79 // pred_fallthru
          _
        // Predicated region
        $region85: #{tpu_custom_call.1} parent=79 // pred_check
          %p556 = pneg %p78
        $region86: #{tpu_custom_call.1} parent=79 // pred_check_branch
          %558 = sbr.rel (%p556) target = $region88
        $region87: #{tpu_custom_call.1} parent=79 // pred_region
          %559 = dma.done [#allocation6], 4096
        $region88: #{tpu_custom_call.1} parent=79 // pred_fallthru
          _
        // Predicated region
        $region89: #{tpu_custom_call.1} parent=79 // pred_check
          %p560 = pneg %p99
        $region90: #{tpu_custom_call.1} parent=79 // pred_check_branch
          %562 = sbr.rel (%p560) target = $region92
        $region91: #{tpu_custom_call.1} parent=79 // pred_region
          %563 = dma.done [#allocation6], 256
        $region92: #{tpu_custom_call.1} parent=79 // pred_fallthru
          _
        // Predicated region
        $region93: #{tpu_custom_call.1} parent=79 // pred_check
          %p564 = pneg %p120
        $region94: #{tpu_custom_call.1} parent=79 // pred_check_branch
          %566 = sbr.rel (%p564) target = $region96
        $region95: #{tpu_custom_call.1} parent=79 // pred_region
          %567 = dma.done [#allocation9], 1024
        $region96: #{tpu_custom_call.1} parent=79 // pred_fallthru
          _
        // Predicated region
        $region97: #{tpu_custom_call.1} parent=79 // pred_check
          %p568 = pneg %p162
        $region98: #{tpu_custom_call.1} parent=79 // pred_check_branch
          %570 = sbr.rel (%p568) target = $region100
        $region99: #{tpu_custom_call.1} parent=79 // pred_region
          %571 = dma.done [#allocation9], 1024
        $region100: #{tpu_custom_call.1} parent=79 // pred_fallthru
          _
        // Predicated region
        $region101: #{tpu_custom_call.1} parent=79 // pred_check
          %p572 = pneg %p204
        $region102: #{tpu_custom_call.1} parent=79 // pred_check_branch
          %574 = sbr.rel (%p572) target = $region104
        $region103: #{tpu_custom_call.1} parent=79 // pred_region
          %575 = dma.done [#allocation12], 1024
        $region104: #{tpu_custom_call.1} parent=79 // pred_fallthru
          _
        // Predicated region
        $region105: #{tpu_custom_call.1} parent=79 // pred_check
          %p576 = pneg %p246
        $region106: #{tpu_custom_call.1} parent=79 // pred_check_branch
          %578 = sbr.rel (%p576) target = $region108
        $region107: #{tpu_custom_call.1} parent=79 // pred_region
          %579 = dma.done [#allocation12], 1024
        $region108: #{tpu_custom_call.1} parent=79 // pred_fallthru
          _
        // Predicated region
        $region109: #{tpu_custom_call.1} parent=79 // pred_check
          %p580 = pneg %p288
        $region110: #{tpu_custom_call.1} parent=79 // pred_check_branch
          %582 = sbr.rel (%p580) target = $region112
        $region111: #{tpu_custom_call.1} parent=79 // pred_region
          %583 = dma.done [#allocation15], 1024
        $region112: #{tpu_custom_call.1} parent=79 // pred_fallthru
          _
        // Predicated region
        $region113: #{tpu_custom_call.1} parent=79 // pred_check
          %p584 = pneg %p330
        $region114: #{tpu_custom_call.1} parent=79 // pred_check_branch
          %586 = sbr.rel (%p584) target = $region116
        $region115: #{tpu_custom_call.1} parent=79 // pred_region
          %587 = dma.done [#allocation15], 1024
        $region116: #{tpu_custom_call.1} parent=79 // pred_fallthru
          _
        %s588 = sand.u32 %s44, 1
        %s589 = scalar_lea.sflag [#allocation3], %s588
        %s590 = sand.u32 %s44, 1
        %s591 = smul.addr %s590, 256
        %s592 = scalar_lea.vmem [#allocation2], %s591
        %p593 = pneg %p57
        %p594 = pneg %p54
        %p595 = pneg %p78
        %p596 = pneg %p75
        %p597 = pneg %p99
        %p598 = pneg %p96
        %p599 = pneg %p120
        %p600 = pneg %p117
        %p601 = pneg %p141
        %p602 = pneg %p138
        %p603 = pneg %p162
        %p604 = pneg %p159
        %p605 = pneg %p183
        %p606 = pneg %p180
        %p607 = pneg %p204
        %p608 = pneg %p201
        %p609 = pneg %p225
        %p610 = pneg %p222
        %p611 = pneg %p246
        %p612 = pneg %p243
        %p613 = pneg %p267
        %p614 = pneg %p264
        %p615 = pneg %p288
        %p616 = pneg %p285
        %p617 = pneg %p309
        %p618 = pneg %p306
        %p619 = pneg %p330
        %p620 = pneg %p327
        %p621 = pneg %p351
        %p622 = pneg %p348
        %p623 = pneg %p377
        %p624 = pneg %p374
        %s625 = sand.u32 %s364, 1
        %s626 = scalar_lea.sflag [#allocation4], %s625
        %s627 = sand.u32 %s364, 1
        %s628 = smul.addr %s627, 32
        %s629 = scalar_lea.vmem [#allocation17], %s628
        %s630 = smul.u32 2, %s36
        %s631 = smul.u32 4, %s36
        %v633 = vld [vmem:[#allocation5] sm:$0xff]
        %v634 = vld [vmem:[#allocation5 + $0x8] sm:$0xff]
        %v635 = vld [vmem:[#allocation5 + $0x10] sm:$0xff]
        %v636 = vld [vmem:[#allocation5 + $0x18] sm:$0xff]
        %v637 = vld [vmem:[#allocation5 + $0x20] sm:$0xff]
        %v638 = vld [vmem:[#allocation5 + $0x28] sm:$0xff]
        %v639 = vld [vmem:[#allocation5 + $0x30] sm:$0xff]
        %v640 = vld [vmem:[#allocation5 + $0x38] sm:$0xff]
        %v641 = vld [vmem:[#allocation5 + $0x40] sm:$0xff]
        %v642 = vld [vmem:[#allocation5 + $0x48] sm:$0xff]
        %v643 = vld [vmem:[#allocation5 + $0x50] sm:$0xff]
        %v644 = vld [vmem:[#allocation5 + $0x58] sm:$0xff]
        %v645 = vld [vmem:[#allocation5 + $0x60] sm:$0xff]
        %v646 = vld [vmem:[#allocation5 + $0x68] sm:$0xff]
        %v647 = vld [vmem:[#allocation5 + $0x70] sm:$0xff]
        %v648 = vld [vmem:[#allocation5 + $0x78] sm:$0xff]
        %v649 = vld [vmem:[#allocation5 + $0x80] sm:$0xff]
        %v650 = vld [vmem:[#allocation5 + $0x88] sm:$0xff]
        %v651 = vld [vmem:[#allocation5 + $0x90] sm:$0xff]
        %v652 = vld [vmem:[#allocation5 + $0x98] sm:$0xff]
        %v653 = vld [vmem:[#allocation5 + $0xa0] sm:$0xff]
        %v654 = vld [vmem:[#allocation5 + $0xa8] sm:$0xff]
        %v655 = vld [vmem:[#allocation5 + $0xb0] sm:$0xff]
        %v656 = vld [vmem:[#allocation5 + $0xb8] sm:$0xff]
        %v657 = vld [vmem:[#allocation5 + $0xc0] sm:$0xff]
        %v658 = vld [vmem:[#allocation5 + $0xc8] sm:$0xff]
        %v659 = vld [vmem:[#allocation5 + $0xd0] sm:$0xff]
        %v660 = vld [vmem:[#allocation5 + $0xd8] sm:$0xff]
        %v661 = vld [vmem:[#allocation5 + $0xe0] sm:$0xff]
        %v662 = vld [vmem:[#allocation5 + $0xe8] sm:$0xff]
        %v663 = vld [vmem:[#allocation5 + $0xf0] sm:$0xff]
        %v664 = vld [vmem:[#allocation5 + $0xf8] sm:$0xff]
        %v665 = vld [vmem:[#allocation7] sm:$0xff]
        %v666 = vld [vmem:[#allocation7 + $0x8] sm:$0xff]
        %v667 = vld [vmem:[%s551] sm:$0xf]
        %v668 = vld [vmem:[%s551 + $0x4] sm:$0xf]
        %v669 = vld [vmem:[%s551 + $0x8] sm:$0xf]
        %v670 = vld [vmem:[%s551 + $0xc] sm:$0xf]
        %v671 = vld [vmem:[%s551 + $0x10] sm:$0xf]
        %v672 = vld [vmem:[%s551 + $0x14] sm:$0xf]
        %v673 = vld [vmem:[%s551 + $0x18] sm:$0xf]
        %v674 = vld [vmem:[%s551 + $0x1c] sm:$0xf]
        %v675 = vld [vmem:[%s551 + $0x20] sm:$0xf]
        %v676 = vld [vmem:[%s551 + $0x24] sm:$0xf]
        %v677 = vld [vmem:[%s551 + $0x28] sm:$0xf]
        %v678 = vld [vmem:[%s551 + $0x2c] sm:$0xf]
        %v679 = vld [vmem:[%s551 + $0x30] sm:$0xf]
        %v680 = vld [vmem:[%s551 + $0x34] sm:$0xf]
        %v681 = vld [vmem:[%s551 + $0x38] sm:$0xf]
        %v682 = vld [vmem:[%s551 + $0x3c] sm:$0xf]
        %v683 = vld [vmem:[%s551 + $0x40] sm:$0xf]
        %v684 = vld [vmem:[%s551 + $0x44] sm:$0xf]
        %v685 = vld [vmem:[%s551 + $0x48] sm:$0xf]
        %v686 = vld [vmem:[%s551 + $0x4c] sm:$0xf]
        %v687 = vld [vmem:[%s551 + $0x50] sm:$0xf]
        %v688 = vld [vmem:[%s551 + $0x54] sm:$0xf]
        %v689 = vld [vmem:[%s551 + $0x58] sm:$0xf]
        %v690 = vld [vmem:[%s551 + $0x5c] sm:$0xf]
        %v691 = vld [vmem:[%s551 + $0x60] sm:$0xf]
        %v692 = vld [vmem:[%s551 + $0x64] sm:$0xf]
        %v693 = vld [vmem:[%s551 + $0x68] sm:$0xf]
        %v694 = vld [vmem:[%s551 + $0x6c] sm:$0xf]
        %v695 = vld [vmem:[%s551 + $0x70] sm:$0xf]
        %v696 = vld [vmem:[%s551 + $0x74] sm:$0xf]
        %v697 = vld [vmem:[%s551 + $0x78] sm:$0xf]
        %v698 = vld [vmem:[%s551 + $0x7c] sm:$0xf]
        %v699 = vld [vmem:[%s551 + $0x80] sm:$0xf]
        %v700 = vld [vmem:[%s551 + $0x84] sm:$0xf]
        %v701 = vld [vmem:[%s551 + $0x88] sm:$0xf]
        %v702 = vld [vmem:[%s551 + $0x8c] sm:$0xf]
        %v703 = vld [vmem:[%s551 + $0x90] sm:$0xf]
        %v704 = vld [vmem:[%s551 + $0x94] sm:$0xf]
        %v705 = vld [vmem:[%s551 + $0x98] sm:$0xf]
        %v706 = vld [vmem:[%s551 + $0x9c] sm:$0xf]
        %v707 = vld [vmem:[%s551 + $0xa0] sm:$0xf]
        %v708 = vld [vmem:[%s551 + $0xa4] sm:$0xf]
        %v709 = vld [vmem:[%s551 + $0xa8] sm:$0xf]
        %v710 = vld [vmem:[%s551 + $0xac] sm:$0xf]
        %v711 = vld [vmem:[%s551 + $0xb0] sm:$0xf]
        %v712 = vld [vmem:[%s551 + $0xb4] sm:$0xf]
        %v713 = vld [vmem:[%s551 + $0xb8] sm:$0xf]
        %v714 = vld [vmem:[%s551 + $0xbc] sm:$0xf]
        %v715 = vld [vmem:[%s551 + $0xc0] sm:$0xf]
        %v716 = vld [vmem:[%s551 + $0xc4] sm:$0xf]
        %v717 = vld [vmem:[%s551 + $0xc8] sm:$0xf]
        %v718 = vld [vmem:[%s551 + $0xcc] sm:$0xf]
        %v719 = vld [vmem:[%s551 + $0xd0] sm:$0xf]
        %v720 = vld [vmem:[%s551 + $0xd4] sm:$0xf]
        %v721 = vld [vmem:[%s551 + $0xd8] sm:$0xf]
        %v722 = vld [vmem:[%s551 + $0xdc] sm:$0xf]
        %v723 = vld [vmem:[%s551 + $0xe0] sm:$0xf]
        %v724 = vld [vmem:[%s551 + $0xe4] sm:$0xf]
        %v725 = vld [vmem:[%s551 + $0xe8] sm:$0xf]
        %v726 = vld [vmem:[%s551 + $0xec] sm:$0xf]
        %v727 = vld [vmem:[%s551 + $0xf0] sm:$0xf]
        %v728 = vld [vmem:[%s551 + $0xf4] sm:$0xf]
        %v729 = vld [vmem:[%s551 + $0xf8] sm:$0xf]
        %v730 = vld [vmem:[%s551 + $0xfc] sm:$0xf]
        %v763 = vunpack.c.l.b16 %v633
        %v764 = vunpack.c.h.b16 %v633
        %v765 = vunpack.c.l.b16 %v634
        %v766 = vunpack.c.h.b16 %v634
        %v767 = vunpack.c.l.b16 %v635
        %v768 = vunpack.c.h.b16 %v635
        %v769 = vunpack.c.l.b16 %v636
        %v770 = vunpack.c.h.b16 %v636
        %v771 = vunpack.c.l.b16 %v637
        %v772 = vunpack.c.h.b16 %v637
        %v773 = vunpack.c.l.b16 %v638
        %v774 = vunpack.c.h.b16 %v638
        %v775 = vunpack.c.l.b16 %v639
        %v776 = vunpack.c.h.b16 %v639
        %v777 = vunpack.c.l.b16 %v640
        %v778 = vunpack.c.h.b16 %v640
        %v779 = vunpack.c.l.b16 %v641
        %v780 = vunpack.c.h.b16 %v641
        %v781 = vunpack.c.l.b16 %v642
        %v782 = vunpack.c.h.b16 %v642
        %v783 = vunpack.c.l.b16 %v643
        %v784 = vunpack.c.h.b16 %v643
        %v785 = vunpack.c.l.b16 %v644
        %v786 = vunpack.c.h.b16 %v644
        %v787 = vunpack.c.l.b16 %v645
        %v788 = vunpack.c.h.b16 %v645
        %v789 = vunpack.c.l.b16 %v646
        %v790 = vunpack.c.h.b16 %v646
        %v791 = vunpack.c.l.b16 %v647
        %v792 = vunpack.c.h.b16 %v647
        %v793 = vunpack.c.l.b16 %v648
        %v794 = vunpack.c.h.b16 %v648
        %v795 = vunpack.c.l.b16 %v649
        %v796 = vunpack.c.h.b16 %v649
        %v797 = vunpack.c.l.b16 %v650
        %v798 = vunpack.c.h.b16 %v650
        %v799 = vunpack.c.l.b16 %v651
        %v800 = vunpack.c.h.b16 %v651
        %v801 = vunpack.c.l.b16 %v652
        %v802 = vunpack.c.h.b16 %v652
        %v803 = vunpack.c.l.b16 %v653
        %v804 = vunpack.c.h.b16 %v653
        %v805 = vunpack.c.l.b16 %v654
        %v806 = vunpack.c.h.b16 %v654
        %v807 = vunpack.c.l.b16 %v655
        %v808 = vunpack.c.h.b16 %v655
        %v809 = vunpack.c.l.b16 %v656
        %v810 = vunpack.c.h.b16 %v656
        %v811 = vunpack.c.l.b16 %v657
        %v812 = vunpack.c.h.b16 %v657
        %v813 = vunpack.c.l.b16 %v658
        %v814 = vunpack.c.h.b16 %v658
        %v815 = vunpack.c.l.b16 %v659
        %v816 = vunpack.c.h.b16 %v659
        %v817 = vunpack.c.l.b16 %v660
        %v818 = vunpack.c.h.b16 %v660
        %v819 = vunpack.c.l.b16 %v661
        %v820 = vunpack.c.h.b16 %v661
        %v821 = vunpack.c.l.b16 %v662
        %v822 = vunpack.c.h.b16 %v662
        %v823 = vunpack.c.l.b16 %v663
        %v824 = vunpack.c.h.b16 %v663
        %v825 = vunpack.c.l.b16 %v664
        %v826 = vunpack.c.h.b16 %v664
        %v827 = vpack.c.b16 %v765, %v763
        %v828 = vpack.c.b16 %v766, %v764
        %v829 = vpack.c.b16 %v769, %v767
        %v830 = vpack.c.b16 %v770, %v768
        %v831 = vpack.c.b16 %v773, %v771
        %v832 = vpack.c.b16 %v774, %v772
        %v833 = vpack.c.b16 %v777, %v775
        %v834 = vpack.c.b16 %v778, %v776
        %v835 = vpack.c.b16 %v781, %v779
        %v836 = vpack.c.b16 %v782, %v780
        %v837 = vpack.c.b16 %v785, %v783
        %v838 = vpack.c.b16 %v786, %v784
        %v839 = vpack.c.b16 %v789, %v787
        %v840 = vpack.c.b16 %v790, %v788
        %v841 = vpack.c.b16 %v793, %v791
        %v842 = vpack.c.b16 %v794, %v792
        %v843 = vpack.c.b16 %v797, %v795
        %v844 = vpack.c.b16 %v798, %v796
        %v845 = vpack.c.b16 %v801, %v799
        %v846 = vpack.c.b16 %v802, %v800
        %v847 = vpack.c.b16 %v805, %v803
        %v848 = vpack.c.b16 %v806, %v804
        %v849 = vpack.c.b16 %v809, %v807
        %v850 = vpack.c.b16 %v810, %v808
        %v851 = vpack.c.b16 %v813, %v811
        %v852 = vpack.c.b16 %v814, %v812
        %v853 = vpack.c.b16 %v817, %v815
        %v854 = vpack.c.b16 %v818, %v816
        %v855 = vpack.c.b16 %v821, %v819
        %v856 = vpack.c.b16 %v822, %v820
        %v857 = vpack.c.b16 %v825, %v823
        %v858 = vpack.c.b16 %v826, %v824
        %v923 = vunpack.c.l.b16 %v667
        %v924 = vunpack.c.l.b16 %v668
        %v925 = vunpack.c.l.b16 %v669
        %v926 = vunpack.c.l.b16 %v670
        %v927 = vunpack.c.l.b16 %v671
        %v928 = vunpack.c.l.b16 %v672
        %v929 = vunpack.c.l.b16 %v673
        %v930 = vunpack.c.l.b16 %v674
        %v931 = vunpack.c.l.b16 %v675
        %v932 = vunpack.c.l.b16 %v676
        %v933 = vunpack.c.l.b16 %v677
        %v934 = vunpack.c.l.b16 %v678
        %v935 = vunpack.c.l.b16 %v679
        %v936 = vunpack.c.l.b16 %v680
        %v937 = vunpack.c.l.b16 %v681
        %v938 = vunpack.c.l.b16 %v682
        %v939 = vunpack.c.l.b16 %v683
        %v940 = vunpack.c.l.b16 %v684
        %v941 = vunpack.c.l.b16 %v685
        %v942 = vunpack.c.l.b16 %v686
        %v943 = vunpack.c.l.b16 %v687
        %v944 = vunpack.c.l.b16 %v688
        %v945 = vunpack.c.l.b16 %v689
        %v946 = vunpack.c.l.b16 %v690
        %v947 = vunpack.c.l.b16 %v691
        %v948 = vunpack.c.l.b16 %v692
        %v949 = vunpack.c.l.b16 %v693
        %v950 = vunpack.c.l.b16 %v694
        %v951 = vunpack.c.l.b16 %v695
        %v952 = vunpack.c.l.b16 %v696
        %v953 = vunpack.c.l.b16 %v697
        %v954 = vunpack.c.l.b16 %v698
        %v955 = vpack.c.b16 %v924, %v923
        %v956 = vpack.c.b16 %v926, %v925
        %v957 = vpack.c.b16 %v928, %v927
        %v958 = vpack.c.b16 %v930, %v929
        %v959 = vpack.c.b16 %v932, %v931
        %v960 = vpack.c.b16 %v934, %v933
        %v961 = vpack.c.b16 %v936, %v935
        %v962 = vpack.c.b16 %v938, %v937
        %v963 = vpack.c.b16 %v940, %v939
        %v964 = vpack.c.b16 %v942, %v941
        %v965 = vpack.c.b16 %v944, %v943
        %v966 = vpack.c.b16 %v946, %v945
        %v967 = vpack.c.b16 %v948, %v947
        %v968 = vpack.c.b16 %v950, %v949
        %v969 = vpack.c.b16 %v952, %v951
        %v970 = vpack.c.b16 %v954, %v953
        %987 = vmatprep.subr.bf16.mxu0 0
        %988 = vmatpush1.bf16.msra.mxu0 %v955
        %989 = vmatprep.subr.bf16.mxu0 0
        %990 = vmatpush1.bf16.msra.mxu0 %v956
        %991 = vmatprep.subr.bf16.mxu0 0
        %992 = vmatpush1.bf16.msra.mxu0 %v957
        %993 = vmatprep.subr.bf16.mxu0 0
        %994 = vmatpush1.bf16.msra.mxu0 %v958
        %995 = vmatprep.subr.bf16.mxu0 0
        %996 = vmatpush1.bf16.msra.mxu0 %v959
        %997 = vmatprep.subr.bf16.mxu0 0
        %998 = vmatpush1.bf16.msra.mxu0 %v960
        %999 = vmatprep.subr.bf16.mxu0 0
        %1000 = vmatpush1.bf16.msra.mxu0 %v961
        %1001 = vmatprep.subr.bf16.mxu0 0
        %1002 = vmatpush1.bf16.msra.mxu0 %v962
        %1003 = vmatprep.subr.bf16.mxu0 0
        %1004 = vmatpush1.bf16.msra.mxu0 %v963
        %1005 = vmatprep.subr.bf16.mxu0 0
        %1006 = vmatpush1.bf16.msra.mxu0 %v964
        %1007 = vmatprep.subr.bf16.mxu0 0
        %1008 = vmatpush1.bf16.msra.mxu0 %v965
        %1009 = vmatprep.subr.bf16.mxu0 0
        %1010 = vmatpush1.bf16.msra.mxu0 %v966
        %1011 = vmatprep.subr.bf16.mxu0 0
        %1012 = vmatpush1.bf16.msra.mxu0 %v967
        %1013 = vmatprep.subr.bf16.mxu0 0
        %1014 = vmatpush1.bf16.msra.mxu0 %v968
        %1015 = vmatprep.subr.bf16.mxu0 0
        %1016 = vmatpush1.bf16.msra.mxu0 %v969
        %1017 = vmatprep.subr.bf16.mxu0 0
        %1018 = vmatpush1.bf16.msra.mxu0 %v970
        %1019 = vmatprep.mubr.bf16.mxu0 %v828
        %1020 = vmatmul.mubr.bf16.gmra.mrb[0].mxu0 %v827
        %v1021 = vpop.f32.mrb[0].mxu0
        %v1022 = vadd.f32 0.0, %v1021
        %v1023 = vpop.f32.mrb[0].mxu0
        %v1024 = vpop.f32.mrb[0].mxu0
        %v1025 = vadd.f32 0.0, %v1024
        %v1026 = vpop.f32.mrb[0].mxu0
        %1027 = vmatprep.mubr.bf16.mxu0 %v830
        %1028 = vmatmul.mubr.bf16.gmra.mrb[0].mxu0 %v829
        %v1029 = vpop.f32.mrb[0].mxu0
        %v1030 = vadd.f32 0.0, %v1029
        %v1031 = vpop.f32.mrb[0].mxu0
        %v1032 = vpop.f32.mrb[0].mxu0
        %v1033 = vadd.f32 0.0, %v1032
        %v1034 = vpop.f32.mrb[0].mxu0
        %1035 = vmatprep.mubr.bf16.mxu0 %v832
        %1036 = vmatmul.mubr.bf16.gmra.mrb[0].mxu0 %v831
        %v1037 = vpop.f32.mrb[0].mxu0
        %v1038 = vadd.f32 0.0, %v1037
        %v1039 = vpop.f32.mrb[0].mxu0
        %v1040 = vpop.f32.mrb[0].mxu0
        %v1041 = vadd.f32 0.0, %v1040
        %v1042 = vpop.f32.mrb[0].mxu0
        %1043 = vmatprep.mubr.bf16.mxu0 %v834
        %1044 = vmatmul.mubr.bf16.gmra.mrb[0].mxu0 %v833
        %v1045 = vpop.f32.mrb[0].mxu0
        %v1046 = vadd.f32 0.0, %v1045
        %v1047 = vpop.f32.mrb[0].mxu0
        %v1048 = vpop.f32.mrb[0].mxu0
        %v1049 = vadd.f32 0.0, %v1048
        %v1050 = vpop.f32.mrb[0].mxu0
        %1051 = vmatprep.mubr.bf16.mxu0 %v836
        %1052 = vmatmul.mubr.bf16.gmra.mrb[0].mxu0 %v835
        %v1053 = vpop.f32.mrb[0].mxu0
        %v1054 = vadd.f32 0.0, %v1053
        %v1055 = vpop.f32.mrb[0].mxu0
        %v1056 = vpop.f32.mrb[0].mxu0
        %v1057 = vadd.f32 0.0, %v1056
        %v1058 = vpop.f32.mrb[0].mxu0
        %1059 = vmatprep.mubr.bf16.mxu0 %v838
        %1060 = vmatmul.mubr.bf16.gmra.mrb[0].mxu0 %v837
        %v1061 = vpop.f32.mrb[0].mxu0
        %v1062 = vadd.f32 0.0, %v1061
        %v1063 = vpop.f32.mrb[0].mxu0
        %v1064 = vpop.f32.mrb[0].mxu0
        %v1065 = vadd.f32 0.0, %v1064
        %v1066 = vpop.f32.mrb[0].mxu0
        %1067 = vmatprep.mubr.bf16.mxu0 %v840
        %1068 = vmatmul.mubr.bf16.gmra.mrb[0].mxu0 %v839
        %v1069 = vpop.f32.mrb[0].mxu0
        %v1070 = vadd.f32 0.0, %v1069
        %v1071 = vpop.f32.mrb[0].mxu0
        %v1072 = vpop.f32.mrb[0].mxu0
        %v1073 = vadd.f32 0.0, %v1072
        %v1074 = vpop.f32.mrb[0].mxu0
        %1075 = vmatprep.mubr.bf16.mxu0 %v842
        %1076 = vmatmul.mubr.bf16.gmra.mrb[0].mxu0 %v841
        %v1077 = vpop.f32.mrb[0].mxu0
        %v1078 = vadd.f32 0.0, %v1077
        %v1079 = vpop.f32.mrb[0].mxu0
        %v1080 = vpop.f32.mrb[0].mxu0
        %v1081 = vadd.f32 0.0, %v1080
        %v1082 = vpop.f32.mrb[0].mxu0
        %1083 = vmatprep.mubr.bf16.mxu0 %v844
        %1084 = vmatmul.mubr.bf16.gmra.mrb[0].mxu0 %v843
        %v1085 = vpop.f32.mrb[0].mxu0
        %v1086 = vadd.f32 0.0, %v1085
        %v1087 = vpop.f32.mrb[0].mxu0
        %v1088 = vpop.f32.mrb[0].mxu0
        %v1089 = vadd.f32 0.0, %v1088
        %v1090 = vpop.f32.mrb[0].mxu0
        %1091 = vmatprep.mubr.bf16.mxu0 %v846
        %1092 = vmatmul.mubr.bf16.gmra.mrb[0].mxu0 %v845
        %v1093 = vpop.f32.mrb[0].mxu0
        %v1094 = vadd.f32 0.0, %v1093
        %v1095 = vpop.f32.mrb[0].mxu0
        %v1096 = vpop.f32.mrb[0].mxu0
        %v1097 = vadd.f32 0.0, %v1096
        %v1098 = vpop.f32.mrb[0].mxu0
        %1099 = vmatprep.mubr.bf16.mxu0 %v848
        %1100 = vmatmul.mubr.bf16.gmra.mrb[0].mxu0 %v847
        %v1101 = vpop.f32.mrb[0].mxu0
        %v1102 = vadd.f32 0.0, %v1101
        %v1103 = vpop.f32.mrb[0].mxu0
        %v1104 = vpop.f32.mrb[0].mxu0
        %v1105 = vadd.f32 0.0, %v1104
        %v1106 = vpop.f32.mrb[0].mxu0
        %1107 = vmatprep.mubr.bf16.mxu0 %v850
        %1108 = vmatmul.mubr.bf16.gmra.mrb[0].mxu0 %v849
        %v1109 = vpop.f32.mrb[0].mxu0
        %v1110 = vadd.f32 0.0, %v1109
        %v1111 = vpop.f32.mrb[0].mxu0
        %v1112 = vpop.f32.mrb[0].mxu0
        %v1113 = vadd.f32 0.0, %v1112
        %v1114 = vpop.f32.mrb[0].mxu0
        %1115 = vmatprep.mubr.bf16.mxu0 %v852
        %1116 = vmatmul.mubr.bf16.gmra.mrb[0].mxu0 %v851
        %v1117 = vpop.f32.mrb[0].mxu0
        %v1118 = vadd.f32 0.0, %v1117
        %v1119 = vpop.f32.mrb[0].mxu0
        %v1120 = vpop.f32.mrb[0].mxu0
        %v1121 = vadd.f32 0.0, %v1120
        %v1122 = vpop.f32.mrb[0].mxu0
        %1123 = vmatprep.mubr.bf16.mxu0 %v854
        %1124 = vmatmul.mubr.bf16.gmra.mrb[0].mxu0 %v853
        %v1125 = vpop.f32.mrb[0].mxu0
        %v1126 = vadd.f32 0.0, %v1125
        %v1127 = vpop.f32.mrb[0].mxu0
        %v1128 = vpop.f32.mrb[0].mxu0
        %v1129 = vadd.f32 0.0, %v1128
        %v1130 = vpop.f32.mrb[0].mxu0
        %1131 = vmatprep.mubr.bf16.mxu0 %v856
        %1132 = vmatmul.mubr.bf16.gmra.mrb[0].mxu0 %v855
        %v1133 = vpop.f32.mrb[0].mxu0
        %v1134 = vadd.f32 0.0, %v1133
        %v1135 = vpop.f32.mrb[0].mxu0
        %v1136 = vpop.f32.mrb[0].mxu0
        %v1137 = vadd.f32 0.0, %v1136
        %v1138 = vpop.f32.mrb[0].mxu0
        %1139 = vmatprep.mubr.bf16.mxu0 %v858
        %1140 = vmatmul.mubr.bf16.gmra.mrb[0].mxu0 %v857
        %v1141 = vpop.f32.mrb[0].mxu0
        %v1142 = vadd.f32 0.0, %v1141
        %v1143 = vpop.f32.mrb[0].mxu0
        %v1144 = vpop.f32.mrb[0].mxu0
        %v1145 = vadd.f32 0.0, %v1144
        %v1146 = vpop.f32.mrb[0].mxu0
        %1147 = vdwg.mxu0
        %v1180 = vunpack.c.l.b16 %v699
        %v1181 = vunpack.c.l.b16 %v700
        %v1182 = vunpack.c.l.b16 %v701
        %v1183 = vunpack.c.l.b16 %v702
        %v1184 = vunpack.c.l.b16 %v703
        %v1185 = vunpack.c.l.b16 %v704
        %v1186 = vunpack.c.l.b16 %v705
        %v1187 = vunpack.c.l.b16 %v706
        %v1188 = vunpack.c.l.b16 %v707
        %v1189 = vunpack.c.l.b16 %v708
        %v1190 = vunpack.c.l.b16 %v709
        %v1191 = vunpack.c.l.b16 %v710
        %v1192 = vunpack.c.l.b16 %v711
        %v1193 = vunpack.c.l.b16 %v712
        %v1194 = vunpack.c.l.b16 %v713
        %v1195 = vunpack.c.l.b16 %v714
        %v1196 = vunpack.c.l.b16 %v715
        %v1197 = vunpack.c.l.b16 %v716
        %v1198 = vunpack.c.l.b16 %v717
        %v1199 = vunpack.c.l.b16 %v718
        %v1200 = vunpack.c.l.b16 %v719
        %v1201 = vunpack.c.l.b16 %v720
        %v1202 = vunpack.c.l.b16 %v721
        %v1203 = vunpack.c.l.b16 %v722
        %v1204 = vunpack.c.l.b16 %v723
        %v1205 = vunpack.c.l.b16 %v724
        %v1206 = vunpack.c.l.b16 %v725
        %v1207 = vunpack.c.l.b16 %v726
        %v1208 = vunpack.c.l.b16 %v727
        %v1209 = vunpack.c.l.b16 %v728
        %v1210 = vunpack.c.l.b16 %v729
        %v1211 = vunpack.c.l.b16 %v730
        %v1212 = vpack.c.b16 %v1181, %v1180
        %v1213 = vpack.c.b16 %v1183, %v1182
        %v1214 = vpack.c.b16 %v1185, %v1184
        %v1215 = vpack.c.b16 %v1187, %v1186
        %v1216 = vpack.c.b16 %v1189, %v1188
        %v1217 = vpack.c.b16 %v1191, %v1190
        %v1218 = vpack.c.b16 %v1193, %v1192
        %v1219 = vpack.c.b16 %v1195, %v1194
        %v1220 = vpack.c.b16 %v1197, %v1196
        %v1221 = vpack.c.b16 %v1199, %v1198
        %v1222 = vpack.c.b16 %v1201, %v1200
        %v1223 = vpack.c.b16 %v1203, %v1202
        %v1224 = vpack.c.b16 %v1205, %v1204
        %v1225 = vpack.c.b16 %v1207, %v1206
        %v1226 = vpack.c.b16 %v1209, %v1208
        %v1227 = vpack.c.b16 %v1211, %v1210
        %1244 = vmatprep.subr.bf16.mxu0 0
        %1245 = vmatpush1.bf16.msra.mxu0 %v1212
        %1246 = vmatprep.subr.bf16.mxu0 0
        %1247 = vmatpush1.bf16.msra.mxu0 %v1213
        %1248 = vmatprep.subr.bf16.mxu0 0
        %1249 = vmatpush1.bf16.msra.mxu0 %v1214
        %1250 = vmatprep.subr.bf16.mxu0 0
        %1251 = vmatpush1.bf16.msra.mxu0 %v1215
        %1252 = vmatprep.subr.bf16.mxu0 0
        %1253 = vmatpush1.bf16.msra.mxu0 %v1216
        %1254 = vmatprep.subr.bf16.mxu0 0
        %1255 = vmatpush1.bf16.msra.mxu0 %v1217
        %1256 = vmatprep.subr.bf16.mxu0 0
        %1257 = vmatpush1.bf16.msra.mxu0 %v1218
        %1258 = vmatprep.subr.bf16.mxu0 0
        %1259 = vmatpush1.bf16.msra.mxu0 %v1219
        %1260 = vmatprep.subr.bf16.mxu0 0
        %1261 = vmatpush1.bf16.msra.mxu0 %v1220
        %1262 = vmatprep.subr.bf16.mxu0 0
        %1263 = vmatpush1.bf16.msra.mxu0 %v1221
        %1264 = vmatprep.subr.bf16.mxu0 0
        %1265 = vmatpush1.bf16.msra.mxu0 %v1222
        %1266 = vmatprep.subr.bf16.mxu0 0
        %1267 = vmatpush1.bf16.msra.mxu0 %v1223
        %1268 = vmatprep.subr.bf16.mxu0 0
        %1269 = vmatpush1.bf16.msra.mxu0 %v1224
        %1270 = vmatprep.subr.bf16.mxu0 0
        %1271 = vmatpush1.bf16.msra.mxu0 %v1225
        %1272 = vmatprep.subr.bf16.mxu0 0
        %1273 = vmatpush1.bf16.msra.mxu0 %v1226
        %1274 = vmatprep.subr.bf16.mxu0 0
        %1275 = vmatpush1.bf16.msra.mxu0 %v1227
        %1276 = vmatprep.mubr.bf16.mxu0 %v828
        %1277 = vmatmul.mubr.bf16.gmra.mrb[0].mxu0 %v827
        %v1278 = vpop.f32.mrb[0].mxu0
        %v1279 = vadd.f32 0.0, %v1278
        %v1280 = vpop.f32.mrb[0].mxu0
        %v1281 = vpop.f32.mrb[0].mxu0
        %v1282 = vadd.f32 0.0, %v1281
        %v1283 = vpop.f32.mrb[0].mxu0
        %1284 = vmatprep.mubr.bf16.mxu0 %v830
        %1285 = vmatmul.mubr.bf16.gmra.mrb[0].mxu0 %v829
        %v1286 = vpop.f32.mrb[0].mxu0
        %v1287 = vadd.f32 0.0, %v1286
        %v1288 = vpop.f32.mrb[0].mxu0
        %v1289 = vpop.f32.mrb[0].mxu0
        %v1290 = vadd.f32 0.0, %v1289
        %v1291 = vpop.f32.mrb[0].mxu0
        %1292 = vmatprep.mubr.bf16.mxu0 %v832
        %1293 = vmatmul.mubr.bf16.gmra.mrb[0].mxu0 %v831
        %v1294 = vpop.f32.mrb[0].mxu0
        %v1295 = vadd.f32 0.0, %v1294
        %v1296 = vpop.f32.mrb[0].mxu0
        %v1297 = vpop.f32.mrb[0].mxu0
        %v1298 = vadd.f32 0.0, %v1297
        %v1299 = vpop.f32.mrb[0].mxu0
        %1300 = vmatprep.mubr.bf16.mxu0 %v834
        %1301 = vmatmul.mubr.bf16.gmra.mrb[0].mxu0 %v833
        %v1302 = vpop.f32.mrb[0].mxu0
        %v1303 = vadd.f32 0.0, %v1302
        %v1304 = vpop.f32.mrb[0].mxu0
        %v1305 = vpop.f32.mrb[0].mxu0
        %v1306 = vadd.f32 0.0, %v1305
        %v1307 = vpop.f32.mrb[0].mxu0
        %1308 = vmatprep.mubr.bf16.mxu0 %v836
        %1309 = vmatmul.mubr.bf16.gmra.mrb[0].mxu0 %v835
        %v1310 = vpop.f32.mrb[0].mxu0
        %v1311 = vadd.f32 0.0, %v1310
        %v1312 = vpop.f32.mrb[0].mxu0
        %v1313 = vpop.f32.mrb[0].mxu0
        %v1314 = vadd.f32 0.0, %v1313
        %v1315 = vpop.f32.mrb[0].mxu0
        %1316 = vmatprep.mubr.bf16.mxu0 %v838
        %1317 = vmatmul.mubr.bf16.gmra.mrb[0].mxu0 %v837
        %v1318 = vpop.f32.mrb[0].mxu0
        %v1319 = vadd.f32 0.0, %v1318
        %v1320 = vpop.f32.mrb[0].mxu0
        %v1321 = vpop.f32.mrb[0].mxu0
        %v1322 = vadd.f32 0.0, %v1321
        %v1323 = vpop.f32.mrb[0].mxu0
        %1324 = vmatprep.mubr.bf16.mxu0 %v840
        %1325 = vmatmul.mubr.bf16.gmra.mrb[0].mxu0 %v839
        %v1326 = vpop.f32.mrb[0].mxu0
        %v1327 = vadd.f32 0.0, %v1326
        %v1328 = vpop.f32.mrb[0].mxu0
        %v1329 = vpop.f32.mrb[0].mxu0
        %v1330 = vadd.f32 0.0, %v1329
        %v1331 = vpop.f32.mrb[0].mxu0
        %1332 = vmatprep.mubr.bf16.mxu0 %v842
        %1333 = vmatmul.mubr.bf16.gmra.mrb[0].mxu0 %v841
        %v1334 = vpop.f32.mrb[0].mxu0
        %v1335 = vadd.f32 0.0, %v1334
        %v1336 = vpop.f32.mrb[0].mxu0
        %v1337 = vpop.f32.mrb[0].mxu0
        %v1338 = vadd.f32 0.0, %v1337
        %v1339 = vpop.f32.mrb[0].mxu0
        %1340 = vmatprep.mubr.bf16.mxu0 %v844
        %1341 = vmatmul.mubr.bf16.gmra.mrb[0].mxu0 %v843
        %v1342 = vpop.f32.mrb[0].mxu0
        %v1343 = vadd.f32 0.0, %v1342
        %v1344 = vpop.f32.mrb[0].mxu0
        %v1345 = vpop.f32.mrb[0].mxu0
        %v1346 = vadd.f32 0.0, %v1345
        %v1347 = vpop.f32.mrb[0].mxu0
        %1348 = vmatprep.mubr.bf16.mxu0 %v846
        %1349 = vmatmul.mubr.bf16.gmra.mrb[0].mxu0 %v845
        %v1350 = vpop.f32.mrb[0].mxu0
        %v1351 = vadd.f32 0.0, %v1350
        %v1352 = vpop.f32.mrb[0].mxu0
        %v1353 = vpop.f32.mrb[0].mxu0
        %v1354 = vadd.f32 0.0, %v1353
        %v1355 = vpop.f32.mrb[0].mxu0
        %1356 = vmatprep.mubr.bf16.mxu0 %v848
        %1357 = vmatmul.mubr.bf16.gmra.mrb[0].mxu0 %v847
        %v1358 = vpop.f32.mrb[0].mxu0
        %v1359 = vadd.f32 0.0, %v1358
        %v1360 = vpop.f32.mrb[0].mxu0
        %v1361 = vpop.f32.mrb[0].mxu0
        %v1362 = vadd.f32 0.0, %v1361
        %v1363 = vpop.f32.mrb[0].mxu0
        %1364 = vmatprep.mubr.bf16.mxu0 %v850
        %1365 = vmatmul.mubr.bf16.gmra.mrb[0].mxu0 %v849
        %v1366 = vpop.f32.mrb[0].mxu0
        %v1367 = vadd.f32 0.0, %v1366
        %v1368 = vpop.f32.mrb[0].mxu0
        %v1369 = vpop.f32.mrb[0].mxu0
        %v1370 = vadd.f32 0.0, %v1369
        %v1371 = vpop.f32.mrb[0].mxu0
        %1372 = vmatprep.mubr.bf16.mxu0 %v852
        %1373 = vmatmul.mubr.bf16.gmra.mrb[0].mxu0 %v851
        %v1374 = vpop.f32.mrb[0].mxu0
        %v1375 = vadd.f32 0.0, %v1374
        %v1376 = vpop.f32.mrb[0].mxu0
        %v1377 = vpop.f32.mrb[0].mxu0
        %v1378 = vadd.f32 0.0, %v1377
        %v1379 = vpop.f32.mrb[0].mxu0
        %1380 = vmatprep.mubr.bf16.mxu0 %v854
        %1381 = vmatmul.mubr.bf16.gmra.mrb[0].mxu0 %v853
        %v1382 = vpop.f32.mrb[0].mxu0
        %v1383 = vadd.f32 0.0, %v1382
        %v1384 = vpop.f32.mrb[0].mxu0
        %v1385 = vpop.f32.mrb[0].mxu0
        %v1386 = vadd.f32 0.0, %v1385
        %v1387 = vpop.f32.mrb[0].mxu0
        %1388 = vmatprep.mubr.bf16.mxu0 %v856
        %1389 = vmatmul.mubr.bf16.gmra.mrb[0].mxu0 %v855
        %v1390 = vpop.f32.mrb[0].mxu0
        %v1391 = vadd.f32 0.0, %v1390
        %v1392 = vpop.f32.mrb[0].mxu0
        %v1393 = vpop.f32.mrb[0].mxu0
        %v1394 = vadd.f32 0.0, %v1393
        %v1395 = vpop.f32.mrb[0].mxu0
        %1396 = vmatprep.mubr.bf16.mxu0 %v858
        %1397 = vmatmul.mubr.bf16.gmra.mrb[0].mxu0 %v857
        %v1398 = vpop.f32.mrb[0].mxu0
        %v1399 = vadd.f32 0.0, %v1398
        %v1400 = vpop.f32.mrb[0].mxu0
        %v1401 = vpop.f32.mrb[0].mxu0
        %v1402 = vadd.f32 0.0, %v1401
        %v1403 = vpop.f32.mrb[0].mxu0
        %1404 = vdwg.mxu0
        %v1405 = vpack.c.bf16 %v1025, %v1022
        %v1406 = vpack.c.bf16 %v1033, %v1030
        %v1407 = vpack.c.bf16 %v1041, %v1038
        %v1408 = vpack.c.bf16 %v1049, %v1046
        %v1409 = vpack.c.bf16 %v1057, %v1054
        %v1410 = vpack.c.bf16 %v1065, %v1062
        %v1411 = vpack.c.bf16 %v1073, %v1070
        %v1412 = vpack.c.bf16 %v1081, %v1078
        %v1413 = vpack.c.bf16 %v1089, %v1086
        %v1414 = vpack.c.bf16 %v1097, %v1094
        %v1415 = vpack.c.bf16 %v1105, %v1102
        %v1416 = vpack.c.bf16 %v1113, %v1110
        %v1417 = vpack.c.bf16 %v1121, %v1118
        %v1418 = vpack.c.bf16 %v1129, %v1126
        %v1419 = vpack.c.bf16 %v1137, %v1134
        %v1420 = vpack.c.bf16 %v1145, %v1142
        %v1421 = vpack.c.bf16 %v1282, %v1279
        %v1422 = vpack.c.bf16 %v1290, %v1287
        %v1423 = vpack.c.bf16 %v1298, %v1295
        %v1424 = vpack.c.bf16 %v1306, %v1303
        %v1425 = vpack.c.bf16 %v1314, %v1311
        %v1426 = vpack.c.bf16 %v1322, %v1319
        %v1427 = vpack.c.bf16 %v1330, %v1327
        %v1428 = vpack.c.bf16 %v1338, %v1335
        %v1429 = vpack.c.bf16 %v1346, %v1343
        %v1430 = vpack.c.bf16 %v1354, %v1351
        %v1431 = vpack.c.bf16 %v1362, %v1359
        %v1432 = vpack.c.bf16 %v1370, %v1367
        %v1433 = vpack.c.bf16 %v1378, %v1375
        %v1434 = vpack.c.bf16 %v1386, %v1383
        %v1435 = vpack.c.bf16 %v1394, %v1391
        %v1436 = vpack.c.bf16 %v1402, %v1399
        %v1437 = vld [vmem:[#allocation8] sm:$0xf]
        %v1438 = vld [vmem:[#allocation8 + $0x4] sm:$0xf]
        %v1439 = vld [vmem:[#allocation8 + $0x8] sm:$0xf]
        %v1440 = vld [vmem:[#allocation8 + $0xc] sm:$0xf]
        %v1441 = vld [vmem:[#allocation8 + $0x10] sm:$0xf]
        %v1442 = vld [vmem:[#allocation8 + $0x14] sm:$0xf]
        %v1443 = vld [vmem:[#allocation8 + $0x18] sm:$0xf]
        %v1444 = vld [vmem:[#allocation8 + $0x1c] sm:$0xf]
        %v1445 = vld [vmem:[#allocation8 + $0x20] sm:$0xf]
        %v1446 = vld [vmem:[#allocation8 + $0x24] sm:$0xf]
        %v1447 = vld [vmem:[#allocation8 + $0x28] sm:$0xf]
        %v1448 = vld [vmem:[#allocation8 + $0x2c] sm:$0xf]
        %v1449 = vld [vmem:[#allocation8 + $0x30] sm:$0xf]
        %v1450 = vld [vmem:[#allocation8 + $0x34] sm:$0xf]
        %v1451 = vld [vmem:[#allocation8 + $0x38] sm:$0xf]
        %v1452 = vld [vmem:[#allocation8 + $0x3c] sm:$0xf]
        %v1453 = vld [vmem:[%s4] sm:$0x1]
        %v1455 = vlaneseq
        %v1456 = vshrl.u32 %v1455, 7
        %v1457 = vsub.s32 0, %v1456
        %v1458 = vrot.slane %v1453, %v1457
        %v1476 = vunpack.c.l.b16 %v1437
        %v1477 = vunpack.c.l.b16 %v1438
        %v1478 = vunpack.c.l.b16 %v1439
        %v1479 = vunpack.c.l.b16 %v1440
        %v1480 = vunpack.c.l.b16 %v1441
        %v1481 = vunpack.c.l.b16 %v1442
        %v1482 = vunpack.c.l.b16 %v1443
        %v1483 = vunpack.c.l.b16 %v1444
        %v1484 = vunpack.c.l.b16 %v1445
        %v1485 = vunpack.c.l.b16 %v1446
        %v1486 = vunpack.c.l.b16 %v1447
        %v1487 = vunpack.c.l.b16 %v1448
        %v1488 = vunpack.c.l.b16 %v1449
        %v1489 = vunpack.c.l.b16 %v1450
        %v1490 = vunpack.c.l.b16 %v1451
        %v1491 = vunpack.c.l.b16 %v1452
        %v1492 = vpack.c.b16 %v1477, %v1476
        %v1493 = vpack.c.b16 %v1479, %v1478
        %v1494 = vpack.c.b16 %v1481, %v1480
        %v1495 = vpack.c.b16 %v1483, %v1482
        %v1496 = vpack.c.b16 %v1485, %v1484
        %v1497 = vpack.c.b16 %v1487, %v1486
        %v1498 = vpack.c.b16 %v1489, %v1488
        %v1499 = vpack.c.b16 %v1491, %v1490
        %1508 = vmatprep.subr.bf16.mxu0 0
        %1509 = vmatpush1.bf16.msra.mxu0 %v1492
        %1510 = vmatprep.subr.bf16.mxu0 0
        %1511 = vmatpush1.bf16.msra.mxu0 %v1493
        %1512 = vmatprep.subr.bf16.mxu0 0
        %1513 = vmatpush1.bf16.msra.mxu0 %v1494
        %1514 = vmatprep.subr.bf16.mxu0 0
        %1515 = vmatpush1.bf16.msra.mxu0 %v1495
        %1516 = vmatprep.subr.bf16.mxu0 0
        %1517 = vmatpush1.bf16.msra.mxu0 %v1496
        %1518 = vmatprep.subr.bf16.mxu0 0
        %1519 = vmatpush1.bf16.msra.mxu0 %v1497
        %1520 = vmatprep.subr.bf16.mxu0 0
        %1521 = vmatpush1.bf16.msra.mxu0 %v1498
        %1522 = vmatprep.subr.bf16.mxu0 0
        %1523 = vmatpush1.bf16.msra.mxu0 %v1499
        %1524 = vmatprep.subr.bf16.mxu0 0
        %1525 = vmatpush1.bf16.msra.mxu0 0
        %1526 = vmatprep.subr.bf16.mxu0 0
        %1527 = vmatpush1.bf16.msra.mxu0 0
        %1528 = vmatprep.subr.bf16.mxu0 0
        %1529 = vmatpush1.bf16.msra.mxu0 0
        %1530 = vmatprep.subr.bf16.mxu0 0
        %1531 = vmatpush1.bf16.msra.mxu0 0
        %1532 = vmatprep.subr.bf16.mxu0 0
        %1533 = vmatpush1.bf16.msra.mxu0 0
        %1534 = vmatprep.subr.bf16.mxu0 0
        %1535 = vmatpush1.bf16.msra.mxu0 0
        %1536 = vmatprep.subr.bf16.mxu0 0
        %1537 = vmatpush1.bf16.msra.mxu0 0
        %1538 = vmatprep.subr.bf16.mxu0 0
        %1539 = vmatpush1.bf16.msra.mxu0 0
        %1540 = vmatprep.mubr.bf16.mxu0 0
        %1541 = vmatmul.mubr.bf16.gmra.mrb[0].mxu0 %v1405
        %v1542 = vpop.f32.mrb[0].mxu0
        %v1543 = vadd.f32 %v1458, %v1542
        %v1544 = vpop.f32.mrb[0].mxu0
        %v1545 = vpop.f32.mrb[0].mxu0
        %v1546 = vadd.f32 %v1458, %v1545
        %v1547 = vpop.f32.mrb[0].mxu0
        %1548 = vmatprep.mubr.bf16.mxu0 0
        %1549 = vmatmul.mubr.bf16.gmra.mrb[0].mxu0 %v1406
        %v1550 = vpop.f32.mrb[0].mxu0
        %v1551 = vadd.f32 %v1458, %v1550
        %v1552 = vpop.f32.mrb[0].mxu0
        %v1553 = vpop.f32.mrb[0].mxu0
        %v1554 = vadd.f32 %v1458, %v1553
        %v1555 = vpop.f32.mrb[0].mxu0
        %1556 = vmatprep.mubr.bf16.mxu0 0
        %1557 = vmatmul.mubr.bf16.gmra.mrb[0].mxu0 %v1407
        %v1558 = vpop.f32.mrb[0].mxu0
        %v1559 = vadd.f32 %v1458, %v1558
        %v1560 = vpop.f32.mrb[0].mxu0
        %v1561 = vpop.f32.mrb[0].mxu0
        %v1562 = vadd.f32 %v1458, %v1561
        %v1563 = vpop.f32.mrb[0].mxu0
        %1564 = vmatprep.mubr.bf16.mxu0 0
        %1565 = vmatmul.mubr.bf16.gmra.mrb[0].mxu0 %v1408
        %v1566 = vpop.f32.mrb[0].mxu0
        %v1567 = vadd.f32 %v1458, %v1566
        %v1568 = vpop.f32.mrb[0].mxu0
        %v1569 = vpop.f32.mrb[0].mxu0
        %v1570 = vadd.f32 %v1458, %v1569
        %v1571 = vpop.f32.mrb[0].mxu0
        %1572 = vmatprep.mubr.bf16.mxu0 0
        %1573 = vmatmul.mubr.bf16.gmra.mrb[0].mxu0 %v1409
        %v1574 = vpop.f32.mrb[0].mxu0
        %v1575 = vadd.f32 %v1458, %v1574
        %v1576 = vpop.f32.mrb[0].mxu0
        %v1577 = vpop.f32.mrb[0].mxu0
        %v1578 = vadd.f32 %v1458, %v1577
        %v1579 = vpop.f32.mrb[0].mxu0
        %1580 = vmatprep.mubr.bf16.mxu0 0
        %1581 = vmatmul.mubr.bf16.gmra.mrb[0].mxu0 %v1410
        %v1582 = vpop.f32.mrb[0].mxu0
        %v1583 = vadd.f32 %v1458, %v1582
        %v1584 = vpop.f32.mrb[0].mxu0
        %v1585 = vpop.f32.mrb[0].mxu0
        %v1586 = vadd.f32 %v1458, %v1585
        %v1587 = vpop.f32.mrb[0].mxu0
        %1588 = vmatprep.mubr.bf16.mxu0 0
        %1589 = vmatmul.mubr.bf16.gmra.mrb[0].mxu0 %v1411
        %v1590 = vpop.f32.mrb[0].mxu0
        %v1591 = vadd.f32 %v1458, %v1590
        %v1592 = vpop.f32.mrb[0].mxu0
        %v1593 = vpop.f32.mrb[0].mxu0
        %v1594 = vadd.f32 %v1458, %v1593
        %v1595 = vpop.f32.mrb[0].mxu0
        %1596 = vmatprep.mubr.bf16.mxu0 0
        %1597 = vmatmul.mubr.bf16.gmra.mrb[0].mxu0 %v1412
        %v1598 = vpop.f32.mrb[0].mxu0
        %v1599 = vadd.f32 %v1458, %v1598
        %v1600 = vpop.f32.mrb[0].mxu0
        %v1601 = vpop.f32.mrb[0].mxu0
        %v1602 = vadd.f32 %v1458, %v1601
        %v1603 = vpop.f32.mrb[0].mxu0
        %1604 = vmatprep.mubr.bf16.mxu0 0
        %1605 = vmatmul.mubr.bf16.gmra.mrb[0].mxu0 %v1413
        %v1606 = vpop.f32.mrb[0].mxu0
        %v1607 = vadd.f32 %v1458, %v1606
        %v1608 = vpop.f32.mrb[0].mxu0
        %v1609 = vpop.f32.mrb[0].mxu0
        %v1610 = vadd.f32 %v1458, %v1609
        %v1611 = vpop.f32.mrb[0].mxu0
        %1612 = vmatprep.mubr.bf16.mxu0 0
        %1613 = vmatmul.mubr.bf16.gmra.mrb[0].mxu0 %v1414
        %v1614 = vpop.f32.mrb[0].mxu0
        %v1615 = vadd.f32 %v1458, %v1614
        %v1616 = vpop.f32.mrb[0].mxu0
        %v1617 = vpop.f32.mrb[0].mxu0
        %v1618 = vadd.f32 %v1458, %v1617
        %v1619 = vpop.f32.mrb[0].mxu0
        %1620 = vmatprep.mubr.bf16.mxu0 0
        %1621 = vmatmul.mubr.bf16.gmra.mrb[0].mxu0 %v1415
        %v1622 = vpop.f32.mrb[0].mxu0
        %v1623 = vadd.f32 %v1458, %v1622
        %v1624 = vpop.f32.mrb[0].mxu0
        %v1625 = vpop.f32.mrb[0].mxu0
        %v1626 = vadd.f32 %v1458, %v1625
        %v1627 = vpop.f32.mrb[0].mxu0
        %1628 = vmatprep.mubr.bf16.mxu0 0
        %1629 = vmatmul.mubr.bf16.gmra.mrb[0].mxu0 %v1416
        %v1630 = vpop.f32.mrb[0].mxu0
        %v1631 = vadd.f32 %v1458, %v1630
        %v1632 = vpop.f32.mrb[0].mxu0
        %v1633 = vpop.f32.mrb[0].mxu0
        %v1634 = vadd.f32 %v1458, %v1633
        %v1635 = vpop.f32.mrb[0].mxu0
        %1636 = vmatprep.mubr.bf16.mxu0 0
        %1637 = vmatmul.mubr.bf16.gmra.mrb[0].mxu0 %v1417
        %v1638 = vpop.f32.mrb[0].mxu0
        %v1639 = vadd.f32 %v1458, %v1638
        %v1640 = vpop.f32.mrb[0].mxu0
        %v1641 = vpop.f32.mrb[0].mxu0
        %v1642 = vadd.f32 %v1458, %v1641
        %v1643 = vpop.f32.mrb[0].mxu0
        %1644 = vmatprep.mubr.bf16.mxu0 0
        %1645 = vmatmul.mubr.bf16.gmra.mrb[0].mxu0 %v1418
        %v1646 = vpop.f32.mrb[0].mxu0
        %v1647 = vadd.f32 %v1458, %v1646
        %v1648 = vpop.f32.mrb[0].mxu0
        %v1649 = vpop.f32.mrb[0].mxu0
        %v1650 = vadd.f32 %v1458, %v1649
        %v1651 = vpop.f32.mrb[0].mxu0
        %1652 = vmatprep.mubr.bf16.mxu0 0
        %1653 = vmatmul.mubr.bf16.gmra.mrb[0].mxu0 %v1419
        %v1654 = vpop.f32.mrb[0].mxu0
        %v1655 = vadd.f32 %v1458, %v1654
        %v1656 = vpop.f32.mrb[0].mxu0
        %v1657 = vpop.f32.mrb[0].mxu0
        %v1658 = vadd.f32 %v1458, %v1657
        %v1659 = vpop.f32.mrb[0].mxu0
        %1660 = vmatprep.mubr.bf16.mxu0 0
        %1661 = vmatmul.mubr.bf16.gmra.mrb[0].mxu0 %v1420
        %v1662 = vpop.f32.mrb[0].mxu0
        %v1663 = vadd.f32 %v1458, %v1662
        %v1664 = vpop.f32.mrb[0].mxu0
        %v1665 = vpop.f32.mrb[0].mxu0
        %v1666 = vadd.f32 %v1458, %v1665
        %v1667 = vpop.f32.mrb[0].mxu0
        %1668 = vmatprep.mubr.bf16.mxu0 0
        %1669 = vmatmul.mubr.bf16.gmra.mrb[0].mxu0 %v1421
        %v1670 = vpop.f32.mrb[0].mxu0
        %v1671 = vadd.f32 %v1458, %v1670
        %v1672 = vpop.f32.mrb[0].mxu0
        %v1673 = vpop.f32.mrb[0].mxu0
        %v1674 = vadd.f32 %v1458, %v1673
        %v1675 = vpop.f32.mrb[0].mxu0
        %1676 = vmatprep.mubr.bf16.mxu0 0
        %1677 = vmatmul.mubr.bf16.gmra.mrb[0].mxu0 %v1422
        %v1678 = vpop.f32.mrb[0].mxu0
        %v1679 = vadd.f32 %v1458, %v1678
        %v1680 = vpop.f32.mrb[0].mxu0
        %v1681 = vpop.f32.mrb[0].mxu0
        %v1682 = vadd.f32 %v1458, %v1681
        %v1683 = vpop.f32.mrb[0].mxu0
        %1684 = vmatprep.mubr.bf16.mxu0 0
        %1685 = vmatmul.mubr.bf16.gmra.mrb[0].mxu0 %v1423
        %v1686 = vpop.f32.mrb[0].mxu0
        %v1687 = vadd.f32 %v1458, %v1686
        %v1688 = vpop.f32.mrb[0].mxu0
        %v1689 = vpop.f32.mrb[0].mxu0
        %v1690 = vadd.f32 %v1458, %v1689
        %v1691 = vpop.f32.mrb[0].mxu0
        %1692 = vmatprep.mubr.bf16.mxu0 0
        %1693 = vmatmul.mubr.bf16.gmra.mrb[0].mxu0 %v1424
        %v1694 = vpop.f32.mrb[0].mxu0
        %v1695 = vadd.f32 %v1458, %v1694
        %v1696 = vpop.f32.mrb[0].mxu0
        %v1697 = vpop.f32.mrb[0].mxu0
        %v1698 = vadd.f32 %v1458, %v1697
        %v1699 = vpop.f32.mrb[0].mxu0
        %1700 = vmatprep.mubr.bf16.mxu0 0
        %1701 = vmatmul.mubr.bf16.gmra.mrb[0].mxu0 %v1425
        %v1702 = vpop.f32.mrb[0].mxu0
        %v1703 = vadd.f32 %v1458, %v1702
        %v1704 = vpop.f32.mrb[0].mxu0
        %v1705 = vpop.f32.mrb[0].mxu0
        %v1706 = vadd.f32 %v1458, %v1705
        %v1707 = vpop.f32.mrb[0].mxu0
        %1708 = vmatprep.mubr.bf16.mxu0 0
        %1709 = vmatmul.mubr.bf16.gmra.mrb[0].mxu0 %v1426
        %v1710 = vpop.f32.mrb[0].mxu0
        %v1711 = vadd.f32 %v1458, %v1710
        %v1712 = vpop.f32.mrb[0].mxu0
        %v1713 = vpop.f32.mrb[0].mxu0
        %v1714 = vadd.f32 %v1458, %v1713
        %v1715 = vpop.f32.mrb[0].mxu0
        %1716 = vmatprep.mubr.bf16.mxu0 0
        %1717 = vmatmul.mubr.bf16.gmra.mrb[0].mxu0 %v1427
        %v1718 = vpop.f32.mrb[0].mxu0
        %v1719 = vadd.f32 %v1458, %v1718
        %v1720 = vpop.f32.mrb[0].mxu0
        %v1721 = vpop.f32.mrb[0].mxu0
        %v1722 = vadd.f32 %v1458, %v1721
        %v1723 = vpop.f32.mrb[0].mxu0
        %1724 = vmatprep.mubr.bf16.mxu0 0
        %1725 = vmatmul.mubr.bf16.gmra.mrb[0].mxu0 %v1428
        %v1726 = vpop.f32.mrb[0].mxu0
        %v1727 = vadd.f32 %v1458, %v1726
        %v1728 = vpop.f32.mrb[0].mxu0
        %v1729 = vpop.f32.mrb[0].mxu0
        %v1730 = vadd.f32 %v1458, %v1729
        %v1731 = vpop.f32.mrb[0].mxu0
        %1732 = vmatprep.mubr.bf16.mxu0 0
        %1733 = vmatmul.mubr.bf16.gmra.mrb[0].mxu0 %v1429
        %v1734 = vpop.f32.mrb[0].mxu0
        %v1735 = vadd.f32 %v1458, %v1734
        %v1736 = vpop.f32.mrb[0].mxu0
        %v1737 = vpop.f32.mrb[0].mxu0
        %v1738 = vadd.f32 %v1458, %v1737
        %v1739 = vpop.f32.mrb[0].mxu0
        %1740 = vmatprep.mubr.bf16.mxu0 0
        %1741 = vmatmul.mubr.bf16.gmra.mrb[0].mxu0 %v1430
        %v1742 = vpop.f32.mrb[0].mxu0
        %v1743 = vadd.f32 %v1458, %v1742
        %v1744 = vpop.f32.mrb[0].mxu0
        %v1745 = vpop.f32.mrb[0].mxu0
        %v1746 = vadd.f32 %v1458, %v1745
        %v1747 = vpop.f32.mrb[0].mxu0
        %1748 = vmatprep.mubr.bf16.mxu0 0
        %1749 = vmatmul.mubr.bf16.gmra.mrb[0].mxu0 %v1431
        %v1750 = vpop.f32.mrb[0].mxu0
        %v1751 = vadd.f32 %v1458, %v1750
        %v1752 = vpop.f32.mrb[0].mxu0
        %v1753 = vpop.f32.mrb[0].mxu0
        %v1754 = vadd.f32 %v1458, %v1753
        %v1755 = vpop.f32.mrb[0].mxu0
        %1756 = vmatprep.mubr.bf16.mxu0 0
        %1757 = vmatmul.mubr.bf16.gmra.mrb[0].mxu0 %v1432
        %v1758 = vpop.f32.mrb[0].mxu0
        %v1759 = vadd.f32 %v1458, %v1758
        %v1760 = vpop.f32.mrb[0].mxu0
        %v1761 = vpop.f32.mrb[0].mxu0
        %v1762 = vadd.f32 %v1458, %v1761
        %v1763 = vpop.f32.mrb[0].mxu0
        %1764 = vmatprep.mubr.bf16.mxu0 0
        %1765 = vmatmul.mubr.bf16.gmra.mrb[0].mxu0 %v1433
        %v1766 = vpop.f32.mrb[0].mxu0
        %v1767 = vadd.f32 %v1458, %v1766
        %v1768 = vpop.f32.mrb[0].mxu0
        %v1769 = vpop.f32.mrb[0].mxu0
        %v1770 = vadd.f32 %v1458, %v1769
        %v1771 = vpop.f32.mrb[0].mxu0
        %1772 = vmatprep.mubr.bf16.mxu0 0
        %1773 = vmatmul.mubr.bf16.gmra.mrb[0].mxu0 %v1434
        %v1774 = vpop.f32.mrb[0].mxu0
        %v1775 = vadd.f32 %v1458, %v1774
        %v1776 = vpop.f32.mrb[0].mxu0
        %v1777 = vpop.f32.mrb[0].mxu0
        %v1778 = vadd.f32 %v1458, %v1777
        %v1779 = vpop.f32.mrb[0].mxu0
        %1780 = vmatprep.mubr.bf16.mxu0 0
        %1781 = vmatmul.mubr.bf16.gmra.mrb[0].mxu0 %v1435
        %v1782 = vpop.f32.mrb[0].mxu0
        %v1783 = vadd.f32 %v1458, %v1782
        %v1784 = vpop.f32.mrb[0].mxu0
        %v1785 = vpop.f32.mrb[0].mxu0
        %v1786 = vadd.f32 %v1458, %v1785
        %v1787 = vpop.f32.mrb[0].mxu0
        %1788 = vmatprep.mubr.bf16.mxu0 0
        %1789 = vmatmul.mubr.bf16.gmra.mrb[0].mxu0 %v1436
        %v1790 = vpop.f32.mrb[0].mxu0
        %v1791 = vadd.f32 %v1458, %v1790
        %v1792 = vpop.f32.mrb[0].mxu0
        %v1793 = vpop.f32.mrb[0].mxu0
        %v1794 = vadd.f32 %v1458, %v1793
        %v1795 = vpop.f32.mrb[0].mxu0
        %1796 = vdwg.mxu0
        %v1797 = vmax.f32 %v1543, 0.0
        %v1798 = vmax.f32 %v1546, 0.0
        %v1799 = vmax.f32 %v1551, 0.0
        %v1800 = vmax.f32 %v1554, 0.0
        %v1801 = vmax.f32 %v1559, 0.0
        %v1802 = vmax.f32 %v1562, 0.0
        %v1803 = vmax.f32 %v1567, 0.0
        %v1804 = vmax.f32 %v1570, 0.0
        %v1805 = vmax.f32 %v1575, 0.0
        %v1806 = vmax.f32 %v1578, 0.0
        %v1807 = vmax.f32 %v1583, 0.0
        %v1808 = vmax.f32 %v1586, 0.0
        %v1809 = vmax.f32 %v1591, 0.0
        %v1810 = vmax.f32 %v1594, 0.0
        %v1811 = vmax.f32 %v1599, 0.0
        %v1812 = vmax.f32 %v1602, 0.0
        %v1813 = vmax.f32 %v1607, 0.0
        %v1814 = vmax.f32 %v1610, 0.0
        %v1815 = vmax.f32 %v1615, 0.0
        %v1816 = vmax.f32 %v1618, 0.0
        %v1817 = vmax.f32 %v1623, 0.0
        %v1818 = vmax.f32 %v1626, 0.0
        %v1819 = vmax.f32 %v1631, 0.0
        %v1820 = vmax.f32 %v1634, 0.0
        %v1821 = vmax.f32 %v1639, 0.0
        %v1822 = vmax.f32 %v1642, 0.0
        %v1823 = vmax.f32 %v1647, 0.0
        %v1824 = vmax.f32 %v1650, 0.0
        %v1825 = vmax.f32 %v1655, 0.0
        %v1826 = vmax.f32 %v1658, 0.0
        %v1827 = vmax.f32 %v1663, 0.0
        %v1828 = vmax.f32 %v1666, 0.0
        %v1829 = vmax.f32 %v1671, 0.0
        %v1830 = vmax.f32 %v1674, 0.0
        %v1831 = vmax.f32 %v1679, 0.0
        %v1832 = vmax.f32 %v1682, 0.0
        %v1833 = vmax.f32 %v1687, 0.0
        %v1834 = vmax.f32 %v1690, 0.0
        %v1835 = vmax.f32 %v1695, 0.0
        %v1836 = vmax.f32 %v1698, 0.0
        %v1837 = vmax.f32 %v1703, 0.0
        %v1838 = vmax.f32 %v1706, 0.0
        %v1839 = vmax.f32 %v1711, 0.0
        %v1840 = vmax.f32 %v1714, 0.0
        %v1841 = vmax.f32 %v1719, 0.0
        %v1842 = vmax.f32 %v1722, 0.0
        %v1843 = vmax.f32 %v1727, 0.0
        %v1844 = vmax.f32 %v1730, 0.0
        %v1845 = vmax.f32 %v1735, 0.0
        %v1846 = vmax.f32 %v1738, 0.0
        %v1847 = vmax.f32 %v1743, 0.0
        %v1848 = vmax.f32 %v1746, 0.0
        %v1849 = vmax.f32 %v1751, 0.0
        %v1850 = vmax.f32 %v1754, 0.0
        %v1851 = vmax.f32 %v1759, 0.0
        %v1852 = vmax.f32 %v1762, 0.0
        %v1853 = vmax.f32 %v1767, 0.0
        %v1854 = vmax.f32 %v1770, 0.0
        %v1855 = vmax.f32 %v1775, 0.0
        %v1856 = vmax.f32 %v1778, 0.0
        %v1857 = vmax.f32 %v1783, 0.0
        %v1858 = vmax.f32 %v1786, 0.0
        %v1859 = vmax.f32 %v1791, 0.0
        %v1860 = vmax.f32 %v1794, 0.0
        %v1861 = vpack.c.bf16 %v1798, %v1797
        %v1862 = vpack.c.bf16 %v1800, %v1799
        %v1863 = vpack.c.bf16 %v1802, %v1801
        %v1864 = vpack.c.bf16 %v1804, %v1803
        %v1865 = vpack.c.bf16 %v1806, %v1805
        %v1866 = vpack.c.bf16 %v1808, %v1807
        %v1867 = vpack.c.bf16 %v1810, %v1809
        %v1868 = vpack.c.bf16 %v1812, %v1811
        %v1869 = vpack.c.bf16 %v1814, %v1813
        %v1870 = vpack.c.bf16 %v1816, %v1815
        %v1871 = vpack.c.bf16 %v1818, %v1817
        %v1872 = vpack.c.bf16 %v1820, %v1819
        %v1873 = vpack.c.bf16 %v1822, %v1821
        %v1874 = vpack.c.bf16 %v1824, %v1823
        %v1875 = vpack.c.bf16 %v1826, %v1825
        %v1876 = vpack.c.bf16 %v1828, %v1827
        %v1877 = vpack.c.bf16 %v1830, %v1829
        %v1878 = vpack.c.bf16 %v1832, %v1831
        %v1879 = vpack.c.bf16 %v1834, %v1833
        %v1880 = vpack.c.bf16 %v1836, %v1835
        %v1881 = vpack.c.bf16 %v1838, %v1837
        %v1882 = vpack.c.bf16 %v1840, %v1839
        %v1883 = vpack.c.bf16 %v1842, %v1841
        %v1884 = vpack.c.bf16 %v1844, %v1843
        %v1885 = vpack.c.bf16 %v1846, %v1845
        %v1886 = vpack.c.bf16 %v1848, %v1847
        %v1887 = vpack.c.bf16 %v1850, %v1849
        %v1888 = vpack.c.bf16 %v1852, %v1851
        %v1889 = vpack.c.bf16 %v1854, %v1853
        %v1890 = vpack.c.bf16 %v1856, %v1855
        %v1891 = vpack.c.bf16 %v1858, %v1857
        %v1892 = vpack.c.bf16 %v1860, %v1859
        %v1893 = vld [vmem:[#allocation10] sm:$0xf]
        %v1894 = vld [vmem:[#allocation10 + $0x4] sm:$0xf]
        %v1895 = vld [vmem:[#allocation10 + $0x8] sm:$0xf]
        %v1896 = vld [vmem:[#allocation10 + $0xc] sm:$0xf]
        %v1897 = vld [vmem:[#allocation10 + $0x10] sm:$0xf]
        %v1898 = vld [vmem:[#allocation10 + $0x14] sm:$0xf]
        %v1899 = vld [vmem:[#allocation10 + $0x18] sm:$0xf]
        %v1900 = vld [vmem:[#allocation10 + $0x1c] sm:$0xf]
        %v1901 = vld [vmem:[#allocation10 + $0x20] sm:$0xf]
        %v1902 = vld [vmem:[#allocation10 + $0x24] sm:$0xf]
        %v1903 = vld [vmem:[#allocation10 + $0x28] sm:$0xf]
        %v1904 = vld [vmem:[#allocation10 + $0x2c] sm:$0xf]
        %v1905 = vld [vmem:[#allocation10 + $0x30] sm:$0xf]
        %v1906 = vld [vmem:[#allocation10 + $0x34] sm:$0xf]
        %v1907 = vld [vmem:[#allocation10 + $0x38] sm:$0xf]
        %v1908 = vld [vmem:[#allocation10 + $0x3c] sm:$0xf]
        %v1925 = vunpack.c.l.b16 %v1893
        %v1926 = vunpack.c.l.b16 %v1894
        %v1927 = vunpack.c.l.b16 %v1895
        %v1928 = vunpack.c.l.b16 %v1896
        %v1929 = vunpack.c.l.b16 %v1897
        %v1930 = vunpack.c.l.b16 %v1898
        %v1931 = vunpack.c.l.b16 %v1899
        %v1932 = vunpack.c.l.b16 %v1900
        %v1933 = vunpack.c.l.b16 %v1901
        %v1934 = vunpack.c.l.b16 %v1902
        %v1935 = vunpack.c.l.b16 %v1903
        %v1936 = vunpack.c.l.b16 %v1904
        %v1937 = vunpack.c.l.b16 %v1905
        %v1938 = vunpack.c.l.b16 %v1906
        %v1939 = vunpack.c.l.b16 %v1907
        %v1940 = vunpack.c.l.b16 %v1908
        %v1941 = vpack.c.b16 %v1926, %v1925
        %v1942 = vpack.c.b16 %v1928, %v1927
        %v1943 = vpack.c.b16 %v1930, %v1929
        %v1944 = vpack.c.b16 %v1932, %v1931
        %v1945 = vpack.c.b16 %v1934, %v1933
        %v1946 = vpack.c.b16 %v1936, %v1935
        %v1947 = vpack.c.b16 %v1938, %v1937
        %v1948 = vpack.c.b16 %v1940, %v1939
        %1957 = vmatprep.subr.bf16.mxu0 0
        %1958 = vmatpush1.bf16.msra.mxu0 %v1941
        %1959 = vmatprep.subr.bf16.mxu0 0
        %1960 = vmatpush1.bf16.msra.mxu0 %v1942
        %1961 = vmatprep.subr.bf16.mxu0 0
        %1962 = vmatpush1.bf16.msra.mxu0 %v1943
        %1963 = vmatprep.subr.bf16.mxu0 0
        %1964 = vmatpush1.bf16.msra.mxu0 %v1944
        %1965 = vmatprep.subr.bf16.mxu0 0
        %1966 = vmatpush1.bf16.msra.mxu0 %v1945
        %1967 = vmatprep.subr.bf16.mxu0 0
        %1968 = vmatpush1.bf16.msra.mxu0 %v1946
        %1969 = vmatprep.subr.bf16.mxu0 0
        %1970 = vmatpush1.bf16.msra.mxu0 %v1947
        %1971 = vmatprep.subr.bf16.mxu0 0
        %1972 = vmatpush1.bf16.msra.mxu0 %v1948
        %1973 = vmatprep.subr.bf16.mxu0 0
        %1974 = vmatpush1.bf16.msra.mxu0 0
        %1975 = vmatprep.subr.bf16.mxu0 0
        %1976 = vmatpush1.bf16.msra.mxu0 0
        %1977 = vmatprep.subr.bf16.mxu0 0
        %1978 = vmatpush1.bf16.msra.mxu0 0
        %1979 = vmatprep.subr.bf16.mxu0 0
        %1980 = vmatpush1.bf16.msra.mxu0 0
        %1981 = vmatprep.subr.bf16.mxu0 0
        %1982 = vmatpush1.bf16.msra.mxu0 0
        %1983 = vmatprep.subr.bf16.mxu0 0
        %1984 = vmatpush1.bf16.msra.mxu0 0
        %1985 = vmatprep.subr.bf16.mxu0 0
        %1986 = vmatpush1.bf16.msra.mxu0 0
        %1987 = vmatprep.subr.bf16.mxu0 0
        %1988 = vmatpush1.bf16.msra.mxu0 0
        %1989 = vmatprep.mubr.bf16.mxu0 0
        %1990 = vmatmul.mubr.bf16.gmra.mrb[0].mxu0 %v1861
        %v1991 = vpop.f32.mrb[0].mxu0
        %v1992 = vadd.f32 0.0, %v1991
        %v1993 = vpop.f32.mrb[0].mxu0
        %v1994 = vpop.f32.mrb[0].mxu0
        %v1995 = vadd.f32 0.0, %v1994
        %v1996 = vpop.f32.mrb[0].mxu0
        %1997 = vmatprep.mubr.bf16.mxu0 0
        %1998 = vmatmul.mubr.bf16.gmra.mrb[0].mxu0 %v1862
        %v1999 = vpop.f32.mrb[0].mxu0
        %v2000 = vadd.f32 0.0, %v1999
        %v2001 = vpop.f32.mrb[0].mxu0
        %v2002 = vpop.f32.mrb[0].mxu0
        %v2003 = vadd.f32 0.0, %v2002
        %v2004 = vpop.f32.mrb[0].mxu0
        %2005 = vmatprep.mubr.bf16.mxu0 0
        %2006 = vmatmul.mubr.bf16.gmra.mrb[0].mxu0 %v1863
        %v2007 = vpop.f32.mrb[0].mxu0
        %v2008 = vadd.f32 0.0, %v2007
        %v2009 = vpop.f32.mrb[0].mxu0
        %v2010 = vpop.f32.mrb[0].mxu0
        %v2011 = vadd.f32 0.0, %v2010
        %v2012 = vpop.f32.mrb[0].mxu0
        %2013 = vmatprep.mubr.bf16.mxu0 0
        %2014 = vmatmul.mubr.bf16.gmra.mrb[0].mxu0 %v1864
        %v2015 = vpop.f32.mrb[0].mxu0
        %v2016 = vadd.f32 0.0, %v2015
        %v2017 = vpop.f32.mrb[0].mxu0
        %v2018 = vpop.f32.mrb[0].mxu0
        %v2019 = vadd.f32 0.0, %v2018
        %v2020 = vpop.f32.mrb[0].mxu0
        %2021 = vmatprep.mubr.bf16.mxu0 0
        %2022 = vmatmul.mubr.bf16.gmra.mrb[0].mxu0 %v1865
        %v2023 = vpop.f32.mrb[0].mxu0
        %v2024 = vadd.f32 0.0, %v2023
        %v2025 = vpop.f32.mrb[0].mxu0
        %v2026 = vpop.f32.mrb[0].mxu0
        %v2027 = vadd.f32 0.0, %v2026
        %v2028 = vpop.f32.mrb[0].mxu0
        %2029 = vmatprep.mubr.bf16.mxu0 0
        %2030 = vmatmul.mubr.bf16.gmra.mrb[0].mxu0 %v1866
        %v2031 = vpop.f32.mrb[0].mxu0
        %v2032 = vadd.f32 0.0, %v2031
        %v2033 = vpop.f32.mrb[0].mxu0
        %v2034 = vpop.f32.mrb[0].mxu0
        %v2035 = vadd.f32 0.0, %v2034
        %v2036 = vpop.f32.mrb[0].mxu0
        %2037 = vmatprep.mubr.bf16.mxu0 0
        %2038 = vmatmul.mubr.bf16.gmra.mrb[0].mxu0 %v1867
        %v2039 = vpop.f32.mrb[0].mxu0
        %v2040 = vadd.f32 0.0, %v2039
        %v2041 = vpop.f32.mrb[0].mxu0
        %v2042 = vpop.f32.mrb[0].mxu0
        %v2043 = vadd.f32 0.0, %v2042
        %v2044 = vpop.f32.mrb[0].mxu0
        %2045 = vmatprep.mubr.bf16.mxu0 0
        %2046 = vmatmul.mubr.bf16.gmra.mrb[0].mxu0 %v1868
        %v2047 = vpop.f32.mrb[0].mxu0
        %v2048 = vadd.f32 0.0, %v2047
        %v2049 = vpop.f32.mrb[0].mxu0
        %v2050 = vpop.f32.mrb[0].mxu0
        %v2051 = vadd.f32 0.0, %v2050
        %v2052 = vpop.f32.mrb[0].mxu0
        %2053 = vmatprep.mubr.bf16.mxu0 0
        %2054 = vmatmul.mubr.bf16.gmra.mrb[0].mxu0 %v1869
        %v2055 = vpop.f32.mrb[0].mxu0
        %v2056 = vadd.f32 0.0, %v2055
        %v2057 = vpop.f32.mrb[0].mxu0
        %v2058 = vpop.f32.mrb[0].mxu0
        %v2059 = vadd.f32 0.0, %v2058
        %v2060 = vpop.f32.mrb[0].mxu0
        %2061 = vmatprep.mubr.bf16.mxu0 0
        %2062 = vmatmul.mubr.bf16.gmra.mrb[0].mxu0 %v1870
        %v2063 = vpop.f32.mrb[0].mxu0
        %v2064 = vadd.f32 0.0, %v2063
        %v2065 = vpop.f32.mrb[0].mxu0
        %v2066 = vpop.f32.mrb[0].mxu0
        %v2067 = vadd.f32 0.0, %v2066
        %v2068 = vpop.f32.mrb[0].mxu0
        %2069 = vmatprep.mubr.bf16.mxu0 0
        %2070 = vmatmul.mubr.bf16.gmra.mrb[0].mxu0 %v1871
        %v2071 = vpop.f32.mrb[0].mxu0
        %v2072 = vadd.f32 0.0, %v2071
        %v2073 = vpop.f32.mrb[0].mxu0
        %v2074 = vpop.f32.mrb[0].mxu0
        %v2075 = vadd.f32 0.0, %v2074
        %v2076 = vpop.f32.mrb[0].mxu0
        %2077 = vmatprep.mubr.bf16.mxu0 0
        %2078 = vmatmul.mubr.bf16.gmra.mrb[0].mxu0 %v1872
        %v2079 = vpop.f32.mrb[0].mxu0
        %v2080 = vadd.f32 0.0, %v2079
        %v2081 = vpop.f32.mrb[0].mxu0
        %v2082 = vpop.f32.mrb[0].mxu0
        %v2083 = vadd.f32 0.0, %v2082
        %v2084 = vpop.f32.mrb[0].mxu0
        %2085 = vmatprep.mubr.bf16.mxu0 0
        %2086 = vmatmul.mubr.bf16.gmra.mrb[0].mxu0 %v1873
        %v2087 = vpop.f32.mrb[0].mxu0
        %v2088 = vadd.f32 0.0, %v2087
        %v2089 = vpop.f32.mrb[0].mxu0
        %v2090 = vpop.f32.mrb[0].mxu0
        %v2091 = vadd.f32 0.0, %v2090
        %v2092 = vpop.f32.mrb[0].mxu0
        %2093 = vmatprep.mubr.bf16.mxu0 0
        %2094 = vmatmul.mubr.bf16.gmra.mrb[0].mxu0 %v1874
        %v2095 = vpop.f32.mrb[0].mxu0
        %v2096 = vadd.f32 0.0, %v2095
        %v2097 = vpop.f32.mrb[0].mxu0
        %v2098 = vpop.f32.mrb[0].mxu0
        %v2099 = vadd.f32 0.0, %v2098
        %v2100 = vpop.f32.mrb[0].mxu0
        %2101 = vmatprep.mubr.bf16.mxu0 0
        %2102 = vmatmul.mubr.bf16.gmra.mrb[0].mxu0 %v1875
        %v2103 = vpop.f32.mrb[0].mxu0
        %v2104 = vadd.f32 0.0, %v2103
        %v2105 = vpop.f32.mrb[0].mxu0
        %v2106 = vpop.f32.mrb[0].mxu0
        %v2107 = vadd.f32 0.0, %v2106
        %v2108 = vpop.f32.mrb[0].mxu0
        %2109 = vmatprep.mubr.bf16.mxu0 0
        %2110 = vmatmul.mubr.bf16.gmra.mrb[0].mxu0 %v1876
        %v2111 = vpop.f32.mrb[0].mxu0
        %v2112 = vadd.f32 0.0, %v2111
        %v2113 = vpop.f32.mrb[0].mxu0
        %v2114 = vpop.f32.mrb[0].mxu0
        %v2115 = vadd.f32 0.0, %v2114
        %v2116 = vpop.f32.mrb[0].mxu0
        %2117 = vmatprep.mubr.bf16.mxu0 0
        %2118 = vmatmul.mubr.bf16.gmra.mrb[0].mxu0 %v1877
        %v2119 = vpop.f32.mrb[0].mxu0
        %v2120 = vadd.f32 0.0, %v2119
        %v2121 = vpop.f32.mrb[0].mxu0
        %v2122 = vpop.f32.mrb[0].mxu0
        %v2123 = vadd.f32 0.0, %v2122
        %v2124 = vpop.f32.mrb[0].mxu0
        %2125 = vmatprep.mubr.bf16.mxu0 0
        %2126 = vmatmul.mubr.bf16.gmra.mrb[0].mxu0 %v1878
        %v2127 = vpop.f32.mrb[0].mxu0
        %v2128 = vadd.f32 0.0, %v2127
        %v2129 = vpop.f32.mrb[0].mxu0
        %v2130 = vpop.f32.mrb[0].mxu0
        %v2131 = vadd.f32 0.0, %v2130
        %v2132 = vpop.f32.mrb[0].mxu0
        %2133 = vmatprep.mubr.bf16.mxu0 0
        %2134 = vmatmul.mubr.bf16.gmra.mrb[0].mxu0 %v1879
        %v2135 = vpop.f32.mrb[0].mxu0
        %v2136 = vadd.f32 0.0, %v2135
        %v2137 = vpop.f32.mrb[0].mxu0
        %v2138 = vpop.f32.mrb[0].mxu0
        %v2139 = vadd.f32 0.0, %v2138
        %v2140 = vpop.f32.mrb[0].mxu0
        %2141 = vmatprep.mubr.bf16.mxu0 0
        %2142 = vmatmul.mubr.bf16.gmra.mrb[0].mxu0 %v1880
        %v2143 = vpop.f32.mrb[0].mxu0
        %v2144 = vadd.f32 0.0, %v2143
        %v2145 = vpop.f32.mrb[0].mxu0
        %v2146 = vpop.f32.mrb[0].mxu0
        %v2147 = vadd.f32 0.0, %v2146
        %v2148 = vpop.f32.mrb[0].mxu0
        %2149 = vmatprep.mubr.bf16.mxu0 0
        %2150 = vmatmul.mubr.bf16.gmra.mrb[0].mxu0 %v1881
        %v2151 = vpop.f32.mrb[0].mxu0
        %v2152 = vadd.f32 0.0, %v2151
        %v2153 = vpop.f32.mrb[0].mxu0
        %v2154 = vpop.f32.mrb[0].mxu0
        %v2155 = vadd.f32 0.0, %v2154
        %v2156 = vpop.f32.mrb[0].mxu0
        %2157 = vmatprep.mubr.bf16.mxu0 0
        %2158 = vmatmul.mubr.bf16.gmra.mrb[0].mxu0 %v1882
        %v2159 = vpop.f32.mrb[0].mxu0
        %v2160 = vadd.f32 0.0, %v2159
        %v2161 = vpop.f32.mrb[0].mxu0
        %v2162 = vpop.f32.mrb[0].mxu0
        %v2163 = vadd.f32 0.0, %v2162
        %v2164 = vpop.f32.mrb[0].mxu0
        %2165 = vmatprep.mubr.bf16.mxu0 0
        %2166 = vmatmul.mubr.bf16.gmra.mrb[0].mxu0 %v1883
        %v2167 = vpop.f32.mrb[0].mxu0
        %v2168 = vadd.f32 0.0, %v2167
        %v2169 = vpop.f32.mrb[0].mxu0
        %v2170 = vpop.f32.mrb[0].mxu0
        %v2171 = vadd.f32 0.0, %v2170
        %v2172 = vpop.f32.mrb[0].mxu0
        %2173 = vmatprep.mubr.bf16.mxu0 0
        %2174 = vmatmul.mubr.bf16.gmra.mrb[0].mxu0 %v1884
        %v2175 = vpop.f32.mrb[0].mxu0
        %v2176 = vadd.f32 0.0, %v2175
        %v2177 = vpop.f32.mrb[0].mxu0
        %v2178 = vpop.f32.mrb[0].mxu0
        %v2179 = vadd.f32 0.0, %v2178
        %v2180 = vpop.f32.mrb[0].mxu0
        %2181 = vmatprep.mubr.bf16.mxu0 0
        %2182 = vmatmul.mubr.bf16.gmra.mrb[0].mxu0 %v1885
        %v2183 = vpop.f32.mrb[0].mxu0
        %v2184 = vadd.f32 0.0, %v2183
        %v2185 = vpop.f32.mrb[0].mxu0
        %v2186 = vpop.f32.mrb[0].mxu0
        %v2187 = vadd.f32 0.0, %v2186
        %v2188 = vpop.f32.mrb[0].mxu0
        %2189 = vmatprep.mubr.bf16.mxu0 0
        %2190 = vmatmul.mubr.bf16.gmra.mrb[0].mxu0 %v1886
        %v2191 = vpop.f32.mrb[0].mxu0
        %v2192 = vadd.f32 0.0, %v2191
        %v2193 = vpop.f32.mrb[0].mxu0
        %v2194 = vpop.f32.mrb[0].mxu0
        %v2195 = vadd.f32 0.0, %v2194
        %v2196 = vpop.f32.mrb[0].mxu0
        %2197 = vmatprep.mubr.bf16.mxu0 0
        %2198 = vmatmul.mubr.bf16.gmra.mrb[0].mxu0 %v1887
        %v2199 = vpop.f32.mrb[0].mxu0
        %v2200 = vadd.f32 0.0, %v2199
        %v2201 = vpop.f32.mrb[0].mxu0
        %v2202 = vpop.f32.mrb[0].mxu0
        %v2203 = vadd.f32 0.0, %v2202
        %v2204 = vpop.f32.mrb[0].mxu0
        %2205 = vmatprep.mubr.bf16.mxu0 0
        %2206 = vmatmul.mubr.bf16.gmra.mrb[0].mxu0 %v1888
        %v2207 = vpop.f32.mrb[0].mxu0
        %v2208 = vadd.f32 0.0, %v2207
        %v2209 = vpop.f32.mrb[0].mxu0
        %v2210 = vpop.f32.mrb[0].mxu0
        %v2211 = vadd.f32 0.0, %v2210
        %v2212 = vpop.f32.mrb[0].mxu0
        %2213 = vmatprep.mubr.bf16.mxu0 0
        %2214 = vmatmul.mubr.bf16.gmra.mrb[0].mxu0 %v1889
        %v2215 = vpop.f32.mrb[0].mxu0
        %v2216 = vadd.f32 0.0, %v2215
        %v2217 = vpop.f32.mrb[0].mxu0
        %v2218 = vpop.f32.mrb[0].mxu0
        %v2219 = vadd.f32 0.0, %v2218
        %v2220 = vpop.f32.mrb[0].mxu0
        %2221 = vmatprep.mubr.bf16.mxu0 0
        %2222 = vmatmul.mubr.bf16.gmra.mrb[0].mxu0 %v1890
        %v2223 = vpop.f32.mrb[0].mxu0
        %v2224 = vadd.f32 0.0, %v2223
        %v2225 = vpop.f32.mrb[0].mxu0
        %v2226 = vpop.f32.mrb[0].mxu0
        %v2227 = vadd.f32 0.0, %v2226
        %v2228 = vpop.f32.mrb[0].mxu0
        %2229 = vmatprep.mubr.bf16.mxu0 0
        %2230 = vmatmul.mubr.bf16.gmra.mrb[0].mxu0 %v1891
        %v2231 = vpop.f32.mrb[0].mxu0
        %v2232 = vadd.f32 0.0, %v2231
        %v2233 = vpop.f32.mrb[0].mxu0
        %v2234 = vpop.f32.mrb[0].mxu0
        %v2235 = vadd.f32 0.0, %v2234
        %v2236 = vpop.f32.mrb[0].mxu0
        %2237 = vmatprep.mubr.bf16.mxu0 0
        %2238 = vmatmul.mubr.bf16.gmra.mrb[0].mxu0 %v1892
        %v2239 = vpop.f32.mrb[0].mxu0
        %v2240 = vadd.f32 0.0, %v2239
        %v2241 = vpop.f32.mrb[0].mxu0
        %v2242 = vpop.f32.mrb[0].mxu0
        %v2243 = vadd.f32 0.0, %v2242
        %v2244 = vpop.f32.mrb[0].mxu0
        %2245 = vdwg.mxu0
        %v2246 = vpack.c.bf16 %v1995, %v1992
        %v2247 = vpack.c.bf16 %v2003, %v2000
        %v2248 = vpack.c.bf16 %v2011, %v2008
        %v2249 = vpack.c.bf16 %v2019, %v2016
        %v2250 = vpack.c.bf16 %v2027, %v2024
        %v2251 = vpack.c.bf16 %v2035, %v2032
        %v2252 = vpack.c.bf16 %v2043, %v2040
        %v2253 = vpack.c.bf16 %v2051, %v2048
        %v2254 = vpack.c.bf16 %v2059, %v2056
        %v2255 = vpack.c.bf16 %v2067, %v2064
        %v2256 = vpack.c.bf16 %v2075, %v2072
        %v2257 = vpack.c.bf16 %v2083, %v2080
        %v2258 = vpack.c.bf16 %v2091, %v2088
        %v2259 = vpack.c.bf16 %v2099, %v2096
        %v2260 = vpack.c.bf16 %v2107, %v2104
        %v2261 = vpack.c.bf16 %v2115, %v2112
        %v2262 = vpack.c.bf16 %v2123, %v2120
        %v2263 = vpack.c.bf16 %v2131, %v2128
        %v2264 = vpack.c.bf16 %v2139, %v2136
        %v2265 = vpack.c.bf16 %v2147, %v2144
        %v2266 = vpack.c.bf16 %v2155, %v2152
        %v2267 = vpack.c.bf16 %v2163, %v2160
        %v2268 = vpack.c.bf16 %v2171, %v2168
        %v2269 = vpack.c.bf16 %v2179, %v2176
        %v2270 = vpack.c.bf16 %v2187, %v2184
        %v2271 = vpack.c.bf16 %v2195, %v2192
        %v2272 = vpack.c.bf16 %v2203, %v2200
        %v2273 = vpack.c.bf16 %v2211, %v2208
        %v2274 = vpack.c.bf16 %v2219, %v2216
        %v2275 = vpack.c.bf16 %v2227, %v2224
        %v2276 = vpack.c.bf16 %v2235, %v2232
        %v2277 = vpack.c.bf16 %v2243, %v2240
        %2278 = vmatprep.subr.bf16.mxu0 0
        %2279 = vmatpush1.bf16.msra.mxu0 %v2246
        %2280 = vmatprep.subr.bf16.mxu0 0
        %2281 = vmatpush1.bf16.msra.mxu0 %v2247
        %2282 = vmatprep.subr.bf16.mxu0 0
        %2283 = vmatpush1.bf16.msra.mxu0 %v2248
        %2284 = vmatprep.subr.bf16.mxu0 0
        %2285 = vmatpush1.bf16.msra.mxu0 %v2249
        %2286 = vmatprep.subr.bf16.mxu0 0
        %2287 = vmatpush1.bf16.msra.mxu0 %v2250
        %2288 = vmatprep.subr.bf16.mxu0 0
        %2289 = vmatpush1.bf16.msra.mxu0 %v2251
        %2290 = vmatprep.subr.bf16.mxu0 0
        %2291 = vmatpush1.bf16.msra.mxu0 %v2252
        %2292 = vmatprep.subr.bf16.mxu0 0
        %2293 = vmatpush1.bf16.msra.mxu0 %v2253
        %2294 = vmatprep.subr.bf16.mxu0 0
        %2295 = vmatpush1.bf16.msra.mxu0 %v2254
        %2296 = vmatprep.subr.bf16.mxu0 0
        %2297 = vmatpush1.bf16.msra.mxu0 %v2255
        %2298 = vmatprep.subr.bf16.mxu0 0
        %2299 = vmatpush1.bf16.msra.mxu0 %v2256
        %2300 = vmatprep.subr.bf16.mxu0 0
        %2301 = vmatpush1.bf16.msra.mxu0 %v2257
        %2302 = vmatprep.subr.bf16.mxu0 0
        %2303 = vmatpush1.bf16.msra.mxu0 %v2258
        %2304 = vmatprep.subr.bf16.mxu0 0
        %2305 = vmatpush1.bf16.msra.mxu0 %v2259
        %2306 = vmatprep.subr.bf16.mxu0 0
        %2307 = vmatpush1.bf16.msra.mxu0 %v2260
        %2308 = vmatprep.subr.bf16.mxu0 0
        %2309 = vmatpush1.bf16.msra.mxu0 %v2261
        %2310 = vmatprep.mubr.bf16.mxu0 %v828
        %2311 = vmatmul.mubr.bf16.gmra.mrb[0].mxu0 %v827
        %v2312 = vpop.f32.mrb[0].mxu0
        %v2313 = vadd.f32 0.0, %v2312
        %v2314 = vpop.f32.mrb[0].mxu0
        %v2315 = vpop.f32.mrb[0].mxu0
        %v2316 = vadd.f32 0.0, %v2315
        %v2317 = vpop.f32.mrb[0].mxu0
        %2318 = vmatprep.mubr.bf16.mxu0 %v830
        %2319 = vmatmul.mubr.bf16.gmra.mrb[0].mxu0 %v829
        %v2320 = vpop.f32.mrb[0].mxu0
        %v2321 = vadd.f32 0.0, %v2320
        %v2322 = vpop.f32.mrb[0].mxu0
        %v2323 = vpop.f32.mrb[0].mxu0
        %v2324 = vadd.f32 0.0, %v2323
        %v2325 = vpop.f32.mrb[0].mxu0
        %2326 = vmatprep.mubr.bf16.mxu0 %v832
        %2327 = vmatmul.mubr.bf16.gmra.mrb[0].mxu0 %v831
        %v2328 = vpop.f32.mrb[0].mxu0
        %v2329 = vadd.f32 0.0, %v2328
        %v2330 = vpop.f32.mrb[0].mxu0
        %v2331 = vpop.f32.mrb[0].mxu0
        %v2332 = vadd.f32 0.0, %v2331
        %v2333 = vpop.f32.mrb[0].mxu0
        %2334 = vmatprep.mubr.bf16.mxu0 %v834
        %2335 = vmatmul.mubr.bf16.gmra.mrb[0].mxu0 %v833
        %v2336 = vpop.f32.mrb[0].mxu0
        %v2337 = vadd.f32 0.0, %v2336
        %v2338 = vpop.f32.mrb[0].mxu0
        %v2339 = vpop.f32.mrb[0].mxu0
        %v2340 = vadd.f32 0.0, %v2339
        %v2341 = vpop.f32.mrb[0].mxu0
        %2342 = vmatprep.mubr.bf16.mxu0 %v836
        %2343 = vmatmul.mubr.bf16.gmra.mrb[0].mxu0 %v835
        %v2344 = vpop.f32.mrb[0].mxu0
        %v2345 = vadd.f32 0.0, %v2344
        %v2346 = vpop.f32.mrb[0].mxu0
        %v2347 = vpop.f32.mrb[0].mxu0
        %v2348 = vadd.f32 0.0, %v2347
        %v2349 = vpop.f32.mrb[0].mxu0
        %2350 = vmatprep.mubr.bf16.mxu0 %v838
        %2351 = vmatmul.mubr.bf16.gmra.mrb[0].mxu0 %v837
        %v2352 = vpop.f32.mrb[0].mxu0
        %v2353 = vadd.f32 0.0, %v2352
        %v2354 = vpop.f32.mrb[0].mxu0
        %v2355 = vpop.f32.mrb[0].mxu0
        %v2356 = vadd.f32 0.0, %v2355
        %v2357 = vpop.f32.mrb[0].mxu0
        %2358 = vmatprep.mubr.bf16.mxu0 %v840
        %2359 = vmatmul.mubr.bf16.gmra.mrb[0].mxu0 %v839
        %v2360 = vpop.f32.mrb[0].mxu0
        %v2361 = vadd.f32 0.0, %v2360
        %v2362 = vpop.f32.mrb[0].mxu0
        %v2363 = vpop.f32.mrb[0].mxu0
        %v2364 = vadd.f32 0.0, %v2363
        %v2365 = vpop.f32.mrb[0].mxu0
        %2366 = vmatprep.mubr.bf16.mxu0 %v842
        %2367 = vmatmul.mubr.bf16.gmra.mrb[0].mxu0 %v841
        %v2368 = vpop.f32.mrb[0].mxu0
        %v2369 = vadd.f32 0.0, %v2368
        %v2370 = vpop.f32.mrb[0].mxu0
        %v2371 = vpop.f32.mrb[0].mxu0
        %v2372 = vadd.f32 0.0, %v2371
        %v2373 = vpop.f32.mrb[0].mxu0
        %2374 = vmatprep.mubr.bf16.mxu0 %v844
        %2375 = vmatmul.mubr.bf16.gmra.mrb[0].mxu0 %v843
        %v2376 = vpop.f32.mrb[0].mxu0
        %v2377 = vadd.f32 0.0, %v2376
        %v2378 = vpop.f32.mrb[0].mxu0
        %v2379 = vpop.f32.mrb[0].mxu0
        %v2380 = vadd.f32 0.0, %v2379
        %v2381 = vpop.f32.mrb[0].mxu0
        %2382 = vmatprep.mubr.bf16.mxu0 %v846
        %2383 = vmatmul.mubr.bf16.gmra.mrb[0].mxu0 %v845
        %v2384 = vpop.f32.mrb[0].mxu0
        %v2385 = vadd.f32 0.0, %v2384
        %v2386 = vpop.f32.mrb[0].mxu0
        %v2387 = vpop.f32.mrb[0].mxu0
        %v2388 = vadd.f32 0.0, %v2387
        %v2389 = vpop.f32.mrb[0].mxu0
        %2390 = vmatprep.mubr.bf16.mxu0 %v848
        %2391 = vmatmul.mubr.bf16.gmra.mrb[0].mxu0 %v847
        %v2392 = vpop.f32.mrb[0].mxu0
        %v2393 = vadd.f32 0.0, %v2392
        %v2394 = vpop.f32.mrb[0].mxu0
        %v2395 = vpop.f32.mrb[0].mxu0
        %v2396 = vadd.f32 0.0, %v2395
        %v2397 = vpop.f32.mrb[0].mxu0
        %2398 = vmatprep.mubr.bf16.mxu0 %v850
        %2399 = vmatmul.mubr.bf16.gmra.mrb[0].mxu0 %v849
        %v2400 = vpop.f32.mrb[0].mxu0
        %v2401 = vadd.f32 0.0, %v2400
        %v2402 = vpop.f32.mrb[0].mxu0
        %v2403 = vpop.f32.mrb[0].mxu0
        %v2404 = vadd.f32 0.0, %v2403
        %v2405 = vpop.f32.mrb[0].mxu0
        %2406 = vmatprep.mubr.bf16.mxu0 %v852
        %2407 = vmatmul.mubr.bf16.gmra.mrb[0].mxu0 %v851
        %v2408 = vpop.f32.mrb[0].mxu0
        %v2409 = vadd.f32 0.0, %v2408
        %v2410 = vpop.f32.mrb[0].mxu0
        %v2411 = vpop.f32.mrb[0].mxu0
        %v2412 = vadd.f32 0.0, %v2411
        %v2413 = vpop.f32.mrb[0].mxu0
        %2414 = vmatprep.mubr.bf16.mxu0 %v854
        %2415 = vmatmul.mubr.bf16.gmra.mrb[0].mxu0 %v853
        %v2416 = vpop.f32.mrb[0].mxu0
        %v2417 = vadd.f32 0.0, %v2416
        %v2418 = vpop.f32.mrb[0].mxu0
        %v2419 = vpop.f32.mrb[0].mxu0
        %v2420 = vadd.f32 0.0, %v2419
        %v2421 = vpop.f32.mrb[0].mxu0
        %2422 = vmatprep.mubr.bf16.mxu0 %v856
        %2423 = vmatmul.mubr.bf16.gmra.mrb[0].mxu0 %v855
        %v2424 = vpop.f32.mrb[0].mxu0
        %v2425 = vadd.f32 0.0, %v2424
        %v2426 = vpop.f32.mrb[0].mxu0
        %v2427 = vpop.f32.mrb[0].mxu0
        %v2428 = vadd.f32 0.0, %v2427
        %v2429 = vpop.f32.mrb[0].mxu0
        %2430 = vmatprep.mubr.bf16.mxu0 %v858
        %2431 = vmatmul.mubr.bf16.gmra.mrb[0].mxu0 %v857
        %v2432 = vpop.f32.mrb[0].mxu0
        %v2433 = vadd.f32 0.0, %v2432
        %v2434 = vpop.f32.mrb[0].mxu0
        %v2435 = vpop.f32.mrb[0].mxu0
        %v2436 = vadd.f32 0.0, %v2435
        %v2437 = vpop.f32.mrb[0].mxu0
        %2438 = vdwg.mxu0
        %2439 = vmatprep.subr.bf16.mxu0 0
        %2440 = vmatpush1.bf16.msra.mxu0 %v2262
        %2441 = vmatprep.subr.bf16.mxu0 0
        %2442 = vmatpush1.bf16.msra.mxu0 %v2263
        %2443 = vmatprep.subr.bf16.mxu0 0
        %2444 = vmatpush1.bf16.msra.mxu0 %v2264
        %2445 = vmatprep.subr.bf16.mxu0 0
        %2446 = vmatpush1.bf16.msra.mxu0 %v2265
        %2447 = vmatprep.subr.bf16.mxu0 0
        %2448 = vmatpush1.bf16.msra.mxu0 %v2266
        %2449 = vmatprep.subr.bf16.mxu0 0
        %2450 = vmatpush1.bf16.msra.mxu0 %v2267
        %2451 = vmatprep.subr.bf16.mxu0 0
        %2452 = vmatpush1.bf16.msra.mxu0 %v2268
        %2453 = vmatprep.subr.bf16.mxu0 0
        %2454 = vmatpush1.bf16.msra.mxu0 %v2269
        %2455 = vmatprep.subr.bf16.mxu0 0
        %2456 = vmatpush1.bf16.msra.mxu0 %v2270
        %2457 = vmatprep.subr.bf16.mxu0 0
        %2458 = vmatpush1.bf16.msra.mxu0 %v2271
        %2459 = vmatprep.subr.bf16.mxu0 0
        %2460 = vmatpush1.bf16.msra.mxu0 %v2272
        %2461 = vmatprep.subr.bf16.mxu0 0
        %2462 = vmatpush1.bf16.msra.mxu0 %v2273
        %2463 = vmatprep.subr.bf16.mxu0 0
        %2464 = vmatpush1.bf16.msra.mxu0 %v2274
        %2465 = vmatprep.subr.bf16.mxu0 0
        %2466 = vmatpush1.bf16.msra.mxu0 %v2275
        %2467 = vmatprep.subr.bf16.mxu0 0
        %2468 = vmatpush1.bf16.msra.mxu0 %v2276
        %2469 = vmatprep.subr.bf16.mxu0 0
        %2470 = vmatpush1.bf16.msra.mxu0 %v2277
        %2471 = vmatprep.mubr.bf16.mxu0 %v828
        %2472 = vmatmul.mubr.bf16.gmra.mrb[0].mxu0 %v827
        %v2473 = vpop.f32.mrb[0].mxu0
        %v2474 = vadd.f32 0.0, %v2473
        %v2475 = vpop.f32.mrb[0].mxu0
        %v2476 = vpop.f32.mrb[0].mxu0
        %v2477 = vadd.f32 0.0, %v2476
        %v2478 = vpop.f32.mrb[0].mxu0
        %2479 = vmatprep.mubr.bf16.mxu0 %v830
        %2480 = vmatmul.mubr.bf16.gmra.mrb[0].mxu0 %v829
        %v2481 = vpop.f32.mrb[0].mxu0
        %v2482 = vadd.f32 0.0, %v2481
        %v2483 = vpop.f32.mrb[0].mxu0
        %v2484 = vpop.f32.mrb[0].mxu0
        %v2485 = vadd.f32 0.0, %v2484
        %v2486 = vpop.f32.mrb[0].mxu0
        %2487 = vmatprep.mubr.bf16.mxu0 %v832
        %2488 = vmatmul.mubr.bf16.gmra.mrb[0].mxu0 %v831
        %v2489 = vpop.f32.mrb[0].mxu0
        %v2490 = vadd.f32 0.0, %v2489
        %v2491 = vpop.f32.mrb[0].mxu0
        %v2492 = vpop.f32.mrb[0].mxu0
        %v2493 = vadd.f32 0.0, %v2492
        %v2494 = vpop.f32.mrb[0].mxu0
        %2495 = vmatprep.mubr.bf16.mxu0 %v834
        %2496 = vmatmul.mubr.bf16.gmra.mrb[0].mxu0 %v833
        %v2497 = vpop.f32.mrb[0].mxu0
        %v2498 = vadd.f32 0.0, %v2497
        %v2499 = vpop.f32.mrb[0].mxu0
        %v2500 = vpop.f32.mrb[0].mxu0
        %v2501 = vadd.f32 0.0, %v2500
        %v2502 = vpop.f32.mrb[0].mxu0
        %2503 = vmatprep.mubr.bf16.mxu0 %v836
        %2504 = vmatmul.mubr.bf16.gmra.mrb[0].mxu0 %v835
        %v2505 = vpop.f32.mrb[0].mxu0
        %v2506 = vadd.f32 0.0, %v2505
        %v2507 = vpop.f32.mrb[0].mxu0
        %v2508 = vpop.f32.mrb[0].mxu0
        %v2509 = vadd.f32 0.0, %v2508
        %v2510 = vpop.f32.mrb[0].mxu0
        %2511 = vmatprep.mubr.bf16.mxu0 %v838
        %2512 = vmatmul.mubr.bf16.gmra.mrb[0].mxu0 %v837
        %v2513 = vpop.f32.mrb[0].mxu0
        %v2514 = vadd.f32 0.0, %v2513
        %v2515 = vpop.f32.mrb[0].mxu0
        %v2516 = vpop.f32.mrb[0].mxu0
        %v2517 = vadd.f32 0.0, %v2516
        %v2518 = vpop.f32.mrb[0].mxu0
        %2519 = vmatprep.mubr.bf16.mxu0 %v840
        %2520 = vmatmul.mubr.bf16.gmra.mrb[0].mxu0 %v839
        %v2521 = vpop.f32.mrb[0].mxu0
        %v2522 = vadd.f32 0.0, %v2521
        %v2523 = vpop.f32.mrb[0].mxu0
        %v2524 = vpop.f32.mrb[0].mxu0
        %v2525 = vadd.f32 0.0, %v2524
        %v2526 = vpop.f32.mrb[0].mxu0
        %2527 = vmatprep.mubr.bf16.mxu0 %v842
        %2528 = vmatmul.mubr.bf16.gmra.mrb[0].mxu0 %v841
        %v2529 = vpop.f32.mrb[0].mxu0
        %v2530 = vadd.f32 0.0, %v2529
        %v2531 = vpop.f32.mrb[0].mxu0
        %v2532 = vpop.f32.mrb[0].mxu0
        %v2533 = vadd.f32 0.0, %v2532
        %v2534 = vpop.f32.mrb[0].mxu0
        %2535 = vmatprep.mubr.bf16.mxu0 %v844
        %2536 = vmatmul.mubr.bf16.gmra.mrb[0].mxu0 %v843
        %v2537 = vpop.f32.mrb[0].mxu0
        %v2538 = vadd.f32 0.0, %v2537
        %v2539 = vpop.f32.mrb[0].mxu0
        %v2540 = vpop.f32.mrb[0].mxu0
        %v2541 = vadd.f32 0.0, %v2540
        %v2542 = vpop.f32.mrb[0].mxu0
        %2543 = vmatprep.mubr.bf16.mxu0 %v846
        %2544 = vmatmul.mubr.bf16.gmra.mrb[0].mxu0 %v845
        %v2545 = vpop.f32.mrb[0].mxu0
        %v2546 = vadd.f32 0.0, %v2545
        %v2547 = vpop.f32.mrb[0].mxu0
        %v2548 = vpop.f32.mrb[0].mxu0
        %v2549 = vadd.f32 0.0, %v2548
        %v2550 = vpop.f32.mrb[0].mxu0
        %2551 = vmatprep.mubr.bf16.mxu0 %v848
        %2552 = vmatmul.mubr.bf16.gmra.mrb[0].mxu0 %v847
        %v2553 = vpop.f32.mrb[0].mxu0
        %v2554 = vadd.f32 0.0, %v2553
        %v2555 = vpop.f32.mrb[0].mxu0
        %v2556 = vpop.f32.mrb[0].mxu0
        %v2557 = vadd.f32 0.0, %v2556
        %v2558 = vpop.f32.mrb[0].mxu0
        %2559 = vmatprep.mubr.bf16.mxu0 %v850
        %2560 = vmatmul.mubr.bf16.gmra.mrb[0].mxu0 %v849
        %v2561 = vpop.f32.mrb[0].mxu0
        %v2562 = vadd.f32 0.0, %v2561
        %v2563 = vpop.f32.mrb[0].mxu0
        %v2564 = vpop.f32.mrb[0].mxu0
        %v2565 = vadd.f32 0.0, %v2564
        %v2566 = vpop.f32.mrb[0].mxu0
        %2567 = vmatprep.mubr.bf16.mxu0 %v852
        %2568 = vmatmul.mubr.bf16.gmra.mrb[0].mxu0 %v851
        %v2569 = vpop.f32.mrb[0].mxu0
        %v2570 = vadd.f32 0.0, %v2569
        %v2571 = vpop.f32.mrb[0].mxu0
        %v2572 = vpop.f32.mrb[0].mxu0
        %v2573 = vadd.f32 0.0, %v2572
        %v2574 = vpop.f32.mrb[0].mxu0
        %2575 = vmatprep.mubr.bf16.mxu0 %v854
        %2576 = vmatmul.mubr.bf16.gmra.mrb[0].mxu0 %v853
        %v2577 = vpop.f32.mrb[0].mxu0
        %v2578 = vadd.f32 0.0, %v2577
        %v2579 = vpop.f32.mrb[0].mxu0
        %v2580 = vpop.f32.mrb[0].mxu0
        %v2581 = vadd.f32 0.0, %v2580
        %v2582 = vpop.f32.mrb[0].mxu0
        %2583 = vmatprep.mubr.bf16.mxu0 %v856
        %2584 = vmatmul.mubr.bf16.gmra.mrb[0].mxu0 %v855
        %v2585 = vpop.f32.mrb[0].mxu0
        %v2586 = vadd.f32 0.0, %v2585
        %v2587 = vpop.f32.mrb[0].mxu0
        %v2588 = vpop.f32.mrb[0].mxu0
        %v2589 = vadd.f32 0.0, %v2588
        %v2590 = vpop.f32.mrb[0].mxu0
        %2591 = vmatprep.mubr.bf16.mxu0 %v858
        %2592 = vmatmul.mubr.bf16.gmra.mrb[0].mxu0 %v857
        %v2593 = vpop.f32.mrb[0].mxu0
        %v2594 = vadd.f32 0.0, %v2593
        %v2595 = vpop.f32.mrb[0].mxu0
        %v2596 = vpop.f32.mrb[0].mxu0
        %v2597 = vadd.f32 0.0, %v2596
        %v2598 = vpop.f32.mrb[0].mxu0
        %2599 = vdwg.mxu0
        %v2600 = vld [vmem:[%s6] sm:$0x1]
        %v2602 = vlaneseq
        %v2603 = vshrl.u32 %v2602, 7
        %v2604 = vsub.s32 0, %v2603
        %v2605 = vrot.slane %v2600, %v2604
        %v2607 = vadd.f32 %v2313, %v2605
        %v2608 = vadd.f32 %v2316, %v2605
        %v2609 = vadd.f32 %v2321, %v2605
        %v2610 = vadd.f32 %v2324, %v2605
        %v2611 = vadd.f32 %v2329, %v2605
        %v2612 = vadd.f32 %v2332, %v2605
        %v2613 = vadd.f32 %v2337, %v2605
        %v2614 = vadd.f32 %v2340, %v2605
        %v2615 = vadd.f32 %v2345, %v2605
        %v2616 = vadd.f32 %v2348, %v2605
        %v2617 = vadd.f32 %v2353, %v2605
        %v2618 = vadd.f32 %v2356, %v2605
        %v2619 = vadd.f32 %v2361, %v2605
        %v2620 = vadd.f32 %v2364, %v2605
        %v2621 = vadd.f32 %v2369, %v2605
        %v2622 = vadd.f32 %v2372, %v2605
        %v2623 = vadd.f32 %v2377, %v2605
        %v2624 = vadd.f32 %v2380, %v2605
        %v2625 = vadd.f32 %v2385, %v2605
        %v2626 = vadd.f32 %v2388, %v2605
        %v2627 = vadd.f32 %v2393, %v2605
        %v2628 = vadd.f32 %v2396, %v2605
        %v2629 = vadd.f32 %v2401, %v2605
        %v2630 = vadd.f32 %v2404, %v2605
        %v2631 = vadd.f32 %v2409, %v2605
        %v2632 = vadd.f32 %v2412, %v2605
        %v2633 = vadd.f32 %v2417, %v2605
        %v2634 = vadd.f32 %v2420, %v2605
        %v2635 = vadd.f32 %v2425, %v2605
        %v2636 = vadd.f32 %v2428, %v2605
        %v2637 = vadd.f32 %v2433, %v2605
        %v2638 = vadd.f32 %v2436, %v2605
        %v2639 = vadd.f32 %v2474, %v2605
        %v2640 = vadd.f32 %v2477, %v2605
        %v2641 = vadd.f32 %v2482, %v2605
        %v2642 = vadd.f32 %v2485, %v2605
        %v2643 = vadd.f32 %v2490, %v2605
        %v2644 = vadd.f32 %v2493, %v2605
        %v2645 = vadd.f32 %v2498, %v2605
        %v2646 = vadd.f32 %v2501, %v2605
        %v2647 = vadd.f32 %v2506, %v2605
        %v2648 = vadd.f32 %v2509, %v2605
        %v2649 = vadd.f32 %v2514, %v2605
        %v2650 = vadd.f32 %v2517, %v2605
        %v2651 = vadd.f32 %v2522, %v2605
        %v2652 = vadd.f32 %v2525, %v2605
        %v2653 = vadd.f32 %v2530, %v2605
        %v2654 = vadd.f32 %v2533, %v2605
        %v2655 = vadd.f32 %v2538, %v2605
        %v2656 = vadd.f32 %v2541, %v2605
        %v2657 = vadd.f32 %v2546, %v2605
        %v2658 = vadd.f32 %v2549, %v2605
        %v2659 = vadd.f32 %v2554, %v2605
        %v2660 = vadd.f32 %v2557, %v2605
        %v2661 = vadd.f32 %v2562, %v2605
        %v2662 = vadd.f32 %v2565, %v2605
        %v2663 = vadd.f32 %v2570, %v2605
        %v2664 = vadd.f32 %v2573, %v2605
        %v2665 = vadd.f32 %v2578, %v2605
        %v2666 = vadd.f32 %v2581, %v2605
        %v2667 = vadd.f32 %v2586, %v2605
        %v2668 = vadd.f32 %v2589, %v2605
        %v2669 = vadd.f32 %v2594, %v2605
        %v2670 = vadd.f32 %v2597, %v2605
        %v2671 = vmax.f32 %v2607, 0.0
        %v2672 = vmax.f32 %v2608, 0.0
        %v2673 = vmax.f32 %v2609, 0.0
        %v2674 = vmax.f32 %v2610, 0.0
        %v2675 = vmax.f32 %v2611, 0.0
        %v2676 = vmax.f32 %v2612, 0.0
        %v2677 = vmax.f32 %v2613, 0.0
        %v2678 = vmax.f32 %v2614, 0.0
        %v2679 = vmax.f32 %v2615, 0.0
        %v2680 = vmax.f32 %v2616, 0.0
        %v2681 = vmax.f32 %v2617, 0.0
        %v2682 = vmax.f32 %v2618, 0.0
        %v2683 = vmax.f32 %v2619, 0.0
        %v2684 = vmax.f32 %v2620, 0.0
        %v2685 = vmax.f32 %v2621, 0.0
        %v2686 = vmax.f32 %v2622, 0.0
        %v2687 = vmax.f32 %v2623, 0.0
        %v2688 = vmax.f32 %v2624, 0.0
        %v2689 = vmax.f32 %v2625, 0.0
        %v2690 = vmax.f32 %v2626, 0.0
        %v2691 = vmax.f32 %v2627, 0.0
        %v2692 = vmax.f32 %v2628, 0.0
        %v2693 = vmax.f32 %v2629, 0.0
        %v2694 = vmax.f32 %v2630, 0.0
        %v2695 = vmax.f32 %v2631, 0.0
        %v2696 = vmax.f32 %v2632, 0.0
        %v2697 = vmax.f32 %v2633, 0.0
        %v2698 = vmax.f32 %v2634, 0.0
        %v2699 = vmax.f32 %v2635, 0.0
        %v2700 = vmax.f32 %v2636, 0.0
        %v2701 = vmax.f32 %v2637, 0.0
        %v2702 = vmax.f32 %v2638, 0.0
        %v2703 = vmax.f32 %v2639, 0.0
        %v2704 = vmax.f32 %v2640, 0.0
        %v2705 = vmax.f32 %v2641, 0.0
        %v2706 = vmax.f32 %v2642, 0.0
        %v2707 = vmax.f32 %v2643, 0.0
        %v2708 = vmax.f32 %v2644, 0.0
        %v2709 = vmax.f32 %v2645, 0.0
        %v2710 = vmax.f32 %v2646, 0.0
        %v2711 = vmax.f32 %v2647, 0.0
        %v2712 = vmax.f32 %v2648, 0.0
        %v2713 = vmax.f32 %v2649, 0.0
        %v2714 = vmax.f32 %v2650, 0.0
        %v2715 = vmax.f32 %v2651, 0.0
        %v2716 = vmax.f32 %v2652, 0.0
        %v2717 = vmax.f32 %v2653, 0.0
        %v2718 = vmax.f32 %v2654, 0.0
        %v2719 = vmax.f32 %v2655, 0.0
        %v2720 = vmax.f32 %v2656, 0.0
        %v2721 = vmax.f32 %v2657, 0.0
        %v2722 = vmax.f32 %v2658, 0.0
        %v2723 = vmax.f32 %v2659, 0.0
        %v2724 = vmax.f32 %v2660, 0.0
        %v2725 = vmax.f32 %v2661, 0.0
        %v2726 = vmax.f32 %v2662, 0.0
        %v2727 = vmax.f32 %v2663, 0.0
        %v2728 = vmax.f32 %v2664, 0.0
        %v2729 = vmax.f32 %v2665, 0.0
        %v2730 = vmax.f32 %v2666, 0.0
        %v2731 = vmax.f32 %v2667, 0.0
        %v2732 = vmax.f32 %v2668, 0.0
        %v2733 = vmax.f32 %v2669, 0.0
        %v2734 = vmax.f32 %v2670, 0.0
        %v2735 = vpack.c.bf16 %v2672, %v2671
        %v2736 = vpack.c.bf16 %v2674, %v2673
        %v2737 = vpack.c.bf16 %v2676, %v2675
        %v2738 = vpack.c.bf16 %v2678, %v2677
        %v2739 = vpack.c.bf16 %v2680, %v2679
        %v2740 = vpack.c.bf16 %v2682, %v2681
        %v2741 = vpack.c.bf16 %v2684, %v2683
        %v2742 = vpack.c.bf16 %v2686, %v2685
        %v2743 = vpack.c.bf16 %v2688, %v2687
        %v2744 = vpack.c.bf16 %v2690, %v2689
        %v2745 = vpack.c.bf16 %v2692, %v2691
        %v2746 = vpack.c.bf16 %v2694, %v2693
        %v2747 = vpack.c.bf16 %v2696, %v2695
        %v2748 = vpack.c.bf16 %v2698, %v2697
        %v2749 = vpack.c.bf16 %v2700, %v2699
        %v2750 = vpack.c.bf16 %v2702, %v2701
        %v2751 = vpack.c.bf16 %v2704, %v2703
        %v2752 = vpack.c.bf16 %v2706, %v2705
        %v2753 = vpack.c.bf16 %v2708, %v2707
        %v2754 = vpack.c.bf16 %v2710, %v2709
        %v2755 = vpack.c.bf16 %v2712, %v2711
        %v2756 = vpack.c.bf16 %v2714, %v2713
        %v2757 = vpack.c.bf16 %v2716, %v2715
        %v2758 = vpack.c.bf16 %v2718, %v2717
        %v2759 = vpack.c.bf16 %v2720, %v2719
        %v2760 = vpack.c.bf16 %v2722, %v2721
        %v2761 = vpack.c.bf16 %v2724, %v2723
        %v2762 = vpack.c.bf16 %v2726, %v2725
        %v2763 = vpack.c.bf16 %v2728, %v2727
        %v2764 = vpack.c.bf16 %v2730, %v2729
        %v2765 = vpack.c.bf16 %v2732, %v2731
        %v2766 = vpack.c.bf16 %v2734, %v2733
        %v2767 = vld [vmem:[#allocation11] sm:$0xf]
        %v2768 = vld [vmem:[#allocation11 + $0x4] sm:$0xf]
        %v2769 = vld [vmem:[#allocation11 + $0x8] sm:$0xf]
        %v2770 = vld [vmem:[#allocation11 + $0xc] sm:$0xf]
        %v2771 = vld [vmem:[#allocation11 + $0x10] sm:$0xf]
        %v2772 = vld [vmem:[#allocation11 + $0x14] sm:$0xf]
        %v2773 = vld [vmem:[#allocation11 + $0x18] sm:$0xf]
        %v2774 = vld [vmem:[#allocation11 + $0x1c] sm:$0xf]
        %v2775 = vld [vmem:[#allocation11 + $0x20] sm:$0xf]
        %v2776 = vld [vmem:[#allocation11 + $0x24] sm:$0xf]
        %v2777 = vld [vmem:[#allocation11 + $0x28] sm:$0xf]
        %v2778 = vld [vmem:[#allocation11 + $0x2c] sm:$0xf]
        %v2779 = vld [vmem:[#allocation11 + $0x30] sm:$0xf]
        %v2780 = vld [vmem:[#allocation11 + $0x34] sm:$0xf]
        %v2781 = vld [vmem:[#allocation11 + $0x38] sm:$0xf]
        %v2782 = vld [vmem:[#allocation11 + $0x3c] sm:$0xf]
        %v2799 = vunpack.c.l.b16 %v2767
        %v2800 = vunpack.c.l.b16 %v2768
        %v2801 = vunpack.c.l.b16 %v2769
        %v2802 = vunpack.c.l.b16 %v2770
        %v2803 = vunpack.c.l.b16 %v2771
        %v2804 = vunpack.c.l.b16 %v2772
        %v2805 = vunpack.c.l.b16 %v2773
        %v2806 = vunpack.c.l.b16 %v2774
        %v2807 = vunpack.c.l.b16 %v2775
        %v2808 = vunpack.c.l.b16 %v2776
        %v2809 = vunpack.c.l.b16 %v2777
        %v2810 = vunpack.c.l.b16 %v2778
        %v2811 = vunpack.c.l.b16 %v2779
        %v2812 = vunpack.c.l.b16 %v2780
        %v2813 = vunpack.c.l.b16 %v2781
        %v2814 = vunpack.c.l.b16 %v2782
        %v2815 = vpack.c.b16 %v2800, %v2799
        %v2816 = vpack.c.b16 %v2802, %v2801
        %v2817 = vpack.c.b16 %v2804, %v2803
        %v2818 = vpack.c.b16 %v2806, %v2805
        %v2819 = vpack.c.b16 %v2808, %v2807
        %v2820 = vpack.c.b16 %v2810, %v2809
        %v2821 = vpack.c.b16 %v2812, %v2811
        %v2822 = vpack.c.b16 %v2814, %v2813
        %2831 = vmatprep.subr.bf16.mxu0 0
        %2832 = vmatpush1.bf16.msra.mxu0 %v2815
        %2833 = vmatprep.subr.bf16.mxu0 0
        %2834 = vmatpush1.bf16.msra.mxu0 %v2816
        %2835 = vmatprep.subr.bf16.mxu0 0
        %2836 = vmatpush1.bf16.msra.mxu0 %v2817
        %2837 = vmatprep.subr.bf16.mxu0 0
        %2838 = vmatpush1.bf16.msra.mxu0 %v2818
        %2839 = vmatprep.subr.bf16.mxu0 0
        %2840 = vmatpush1.bf16.msra.mxu0 %v2819
        %2841 = vmatprep.subr.bf16.mxu0 0
        %2842 = vmatpush1.bf16.msra.mxu0 %v2820
        %2843 = vmatprep.subr.bf16.mxu0 0
        %2844 = vmatpush1.bf16.msra.mxu0 %v2821
        %2845 = vmatprep.subr.bf16.mxu0 0
        %2846 = vmatpush1.bf16.msra.mxu0 %v2822
        %2847 = vmatprep.subr.bf16.mxu0 0
        %2848 = vmatpush1.bf16.msra.mxu0 0
        %2849 = vmatprep.subr.bf16.mxu0 0
        %2850 = vmatpush1.bf16.msra.mxu0 0
        %2851 = vmatprep.subr.bf16.mxu0 0
        %2852 = vmatpush1.bf16.msra.mxu0 0
        %2853 = vmatprep.subr.bf16.mxu0 0
        %2854 = vmatpush1.bf16.msra.mxu0 0
        %2855 = vmatprep.subr.bf16.mxu0 0
        %2856 = vmatpush1.bf16.msra.mxu0 0
        %2857 = vmatprep.subr.bf16.mxu0 0
        %2858 = vmatpush1.bf16.msra.mxu0 0
        %2859 = vmatprep.subr.bf16.mxu0 0
        %2860 = vmatpush1.bf16.msra.mxu0 0
        %2861 = vmatprep.subr.bf16.mxu0 0
        %2862 = vmatpush1.bf16.msra.mxu0 0
        %2863 = vmatprep.mubr.bf16.mxu0 0
        %2864 = vmatmul.mubr.bf16.gmra.mrb[0].mxu0 %v2735
        %v2865 = vpop.f32.mrb[0].mxu0
        %v2866 = vadd.f32 0.0, %v2865
        %v2867 = vpop.f32.mrb[0].mxu0
        %v2868 = vpop.f32.mrb[0].mxu0
        %v2869 = vadd.f32 0.0, %v2868
        %v2870 = vpop.f32.mrb[0].mxu0
        %2871 = vmatprep.mubr.bf16.mxu0 0
        %2872 = vmatmul.mubr.bf16.gmra.mrb[0].mxu0 %v2736
        %v2873 = vpop.f32.mrb[0].mxu0
        %v2874 = vadd.f32 0.0, %v2873
        %v2875 = vpop.f32.mrb[0].mxu0
        %v2876 = vpop.f32.mrb[0].mxu0
        %v2877 = vadd.f32 0.0, %v2876
        %v2878 = vpop.f32.mrb[0].mxu0
        %2879 = vmatprep.mubr.bf16.mxu0 0
        %2880 = vmatmul.mubr.bf16.gmra.mrb[0].mxu0 %v2737
        %v2881 = vpop.f32.mrb[0].mxu0
        %v2882 = vadd.f32 0.0, %v2881
        %v2883 = vpop.f32.mrb[0].mxu0
        %v2884 = vpop.f32.mrb[0].mxu0
        %v2885 = vadd.f32 0.0, %v2884
        %v2886 = vpop.f32.mrb[0].mxu0
        %2887 = vmatprep.mubr.bf16.mxu0 0
        %2888 = vmatmul.mubr.bf16.gmra.mrb[0].mxu0 %v2738
        %v2889 = vpop.f32.mrb[0].mxu0
        %v2890 = vadd.f32 0.0, %v2889
        %v2891 = vpop.f32.mrb[0].mxu0
        %v2892 = vpop.f32.mrb[0].mxu0
        %v2893 = vadd.f32 0.0, %v2892
        %v2894 = vpop.f32.mrb[0].mxu0
        %2895 = vmatprep.mubr.bf16.mxu0 0
        %2896 = vmatmul.mubr.bf16.gmra.mrb[0].mxu0 %v2739
        %v2897 = vpop.f32.mrb[0].mxu0
        %v2898 = vadd.f32 0.0, %v2897
        %v2899 = vpop.f32.mrb[0].mxu0
        %v2900 = vpop.f32.mrb[0].mxu0
        %v2901 = vadd.f32 0.0, %v2900
        %v2902 = vpop.f32.mrb[0].mxu0
        %2903 = vmatprep.mubr.bf16.mxu0 0
        %2904 = vmatmul.mubr.bf16.gmra.mrb[0].mxu0 %v2740
        %v2905 = vpop.f32.mrb[0].mxu0
        %v2906 = vadd.f32 0.0, %v2905
        %v2907 = vpop.f32.mrb[0].mxu0
        %v2908 = vpop.f32.mrb[0].mxu0
        %v2909 = vadd.f32 0.0, %v2908
        %v2910 = vpop.f32.mrb[0].mxu0
        %2911 = vmatprep.mubr.bf16.mxu0 0
        %2912 = vmatmul.mubr.bf16.gmra.mrb[0].mxu0 %v2741
        %v2913 = vpop.f32.mrb[0].mxu0
        %v2914 = vadd.f32 0.0, %v2913
        %v2915 = vpop.f32.mrb[0].mxu0
        %v2916 = vpop.f32.mrb[0].mxu0
        %v2917 = vadd.f32 0.0, %v2916
        %v2918 = vpop.f32.mrb[0].mxu0
        %2919 = vmatprep.mubr.bf16.mxu0 0
        %2920 = vmatmul.mubr.bf16.gmra.mrb[0].mxu0 %v2742
        %v2921 = vpop.f32.mrb[0].mxu0
        %v2922 = vadd.f32 0.0, %v2921
        %v2923 = vpop.f32.mrb[0].mxu0
        %v2924 = vpop.f32.mrb[0].mxu0
        %v2925 = vadd.f32 0.0, %v2924
        %v2926 = vpop.f32.mrb[0].mxu0
        %2927 = vmatprep.mubr.bf16.mxu0 0
        %2928 = vmatmul.mubr.bf16.gmra.mrb[0].mxu0 %v2743
        %v2929 = vpop.f32.mrb[0].mxu0
        %v2930 = vadd.f32 0.0, %v2929
        %v2931 = vpop.f32.mrb[0].mxu0
        %v2932 = vpop.f32.mrb[0].mxu0
        %v2933 = vadd.f32 0.0, %v2932
        %v2934 = vpop.f32.mrb[0].mxu0
        %2935 = vmatprep.mubr.bf16.mxu0 0
        %2936 = vmatmul.mubr.bf16.gmra.mrb[0].mxu0 %v2744
        %v2937 = vpop.f32.mrb[0].mxu0
        %v2938 = vadd.f32 0.0, %v2937
        %v2939 = vpop.f32.mrb[0].mxu0
        %v2940 = vpop.f32.mrb[0].mxu0
        %v2941 = vadd.f32 0.0, %v2940
        %v2942 = vpop.f32.mrb[0].mxu0
        %2943 = vmatprep.mubr.bf16.mxu0 0
        %2944 = vmatmul.mubr.bf16.gmra.mrb[0].mxu0 %v2745
        %v2945 = vpop.f32.mrb[0].mxu0
        %v2946 = vadd.f32 0.0, %v2945
        %v2947 = vpop.f32.mrb[0].mxu0
        %v2948 = vpop.f32.mrb[0].mxu0
        %v2949 = vadd.f32 0.0, %v2948
        %v2950 = vpop.f32.mrb[0].mxu0
        %2951 = vmatprep.mubr.bf16.mxu0 0
        %2952 = vmatmul.mubr.bf16.gmra.mrb[0].mxu0 %v2746
        %v2953 = vpop.f32.mrb[0].mxu0
        %v2954 = vadd.f32 0.0, %v2953
        %v2955 = vpop.f32.mrb[0].mxu0
        %v2956 = vpop.f32.mrb[0].mxu0
        %v2957 = vadd.f32 0.0, %v2956
        %v2958 = vpop.f32.mrb[0].mxu0
        %2959 = vmatprep.mubr.bf16.mxu0 0
        %2960 = vmatmul.mubr.bf16.gmra.mrb[0].mxu0 %v2747
        %v2961 = vpop.f32.mrb[0].mxu0
        %v2962 = vadd.f32 0.0, %v2961
        %v2963 = vpop.f32.mrb[0].mxu0
        %v2964 = vpop.f32.mrb[0].mxu0
        %v2965 = vadd.f32 0.0, %v2964
        %v2966 = vpop.f32.mrb[0].mxu0
        %2967 = vmatprep.mubr.bf16.mxu0 0
        %2968 = vmatmul.mubr.bf16.gmra.mrb[0].mxu0 %v2748
        %v2969 = vpop.f32.mrb[0].mxu0
        %v2970 = vadd.f32 0.0, %v2969
        %v2971 = vpop.f32.mrb[0].mxu0
        %v2972 = vpop.f32.mrb[0].mxu0
        %v2973 = vadd.f32 0.0, %v2972
        %v2974 = vpop.f32.mrb[0].mxu0
        %2975 = vmatprep.mubr.bf16.mxu0 0
        %2976 = vmatmul.mubr.bf16.gmra.mrb[0].mxu0 %v2749
        %v2977 = vpop.f32.mrb[0].mxu0
        %v2978 = vadd.f32 0.0, %v2977
        %v2979 = vpop.f32.mrb[0].mxu0
        %v2980 = vpop.f32.mrb[0].mxu0
        %v2981 = vadd.f32 0.0, %v2980
        %v2982 = vpop.f32.mrb[0].mxu0
        %2983 = vmatprep.mubr.bf16.mxu0 0
        %2984 = vmatmul.mubr.bf16.gmra.mrb[0].mxu0 %v2750
        %v2985 = vpop.f32.mrb[0].mxu0
        %v2986 = vadd.f32 0.0, %v2985
        %v2987 = vpop.f32.mrb[0].mxu0
        %v2988 = vpop.f32.mrb[0].mxu0
        %v2989 = vadd.f32 0.0, %v2988
        %v2990 = vpop.f32.mrb[0].mxu0
        %2991 = vmatprep.mubr.bf16.mxu0 0
        %2992 = vmatmul.mubr.bf16.gmra.mrb[0].mxu0 %v2751
        %v2993 = vpop.f32.mrb[0].mxu0
        %v2994 = vadd.f32 0.0, %v2993
        %v2995 = vpop.f32.mrb[0].mxu0
        %v2996 = vpop.f32.mrb[0].mxu0
        %v2997 = vadd.f32 0.0, %v2996
        %v2998 = vpop.f32.mrb[0].mxu0
        %2999 = vmatprep.mubr.bf16.mxu0 0
        %3000 = vmatmul.mubr.bf16.gmra.mrb[0].mxu0 %v2752
        %v3001 = vpop.f32.mrb[0].mxu0
        %v3002 = vadd.f32 0.0, %v3001
        %v3003 = vpop.f32.mrb[0].mxu0
        %v3004 = vpop.f32.mrb[0].mxu0
        %v3005 = vadd.f32 0.0, %v3004
        %v3006 = vpop.f32.mrb[0].mxu0
        %3007 = vmatprep.mubr.bf16.mxu0 0
        %3008 = vmatmul.mubr.bf16.gmra.mrb[0].mxu0 %v2753
        %v3009 = vpop.f32.mrb[0].mxu0
        %v3010 = vadd.f32 0.0, %v3009
        %v3011 = vpop.f32.mrb[0].mxu0
        %v3012 = vpop.f32.mrb[0].mxu0
        %v3013 = vadd.f32 0.0, %v3012
        %v3014 = vpop.f32.mrb[0].mxu0
        %3015 = vmatprep.mubr.bf16.mxu0 0
        %3016 = vmatmul.mubr.bf16.gmra.mrb[0].mxu0 %v2754
        %v3017 = vpop.f32.mrb[0].mxu0
        %v3018 = vadd.f32 0.0, %v3017
        %v3019 = vpop.f32.mrb[0].mxu0
        %v3020 = vpop.f32.mrb[0].mxu0
        %v3021 = vadd.f32 0.0, %v3020
        %v3022 = vpop.f32.mrb[0].mxu0
        %3023 = vmatprep.mubr.bf16.mxu0 0
        %3024 = vmatmul.mubr.bf16.gmra.mrb[0].mxu0 %v2755
        %v3025 = vpop.f32.mrb[0].mxu0
        %v3026 = vadd.f32 0.0, %v3025
        %v3027 = vpop.f32.mrb[0].mxu0
        %v3028 = vpop.f32.mrb[0].mxu0
        %v3029 = vadd.f32 0.0, %v3028
        %v3030 = vpop.f32.mrb[0].mxu0
        %3031 = vmatprep.mubr.bf16.mxu0 0
        %3032 = vmatmul.mubr.bf16.gmra.mrb[0].mxu0 %v2756
        %v3033 = vpop.f32.mrb[0].mxu0
        %v3034 = vadd.f32 0.0, %v3033
        %v3035 = vpop.f32.mrb[0].mxu0
        %v3036 = vpop.f32.mrb[0].mxu0
        %v3037 = vadd.f32 0.0, %v3036
        %v3038 = vpop.f32.mrb[0].mxu0
        %3039 = vmatprep.mubr.bf16.mxu0 0
        %3040 = vmatmul.mubr.bf16.gmra.mrb[0].mxu0 %v2757
        %v3041 = vpop.f32.mrb[0].mxu0
        %v3042 = vadd.f32 0.0, %v3041
        %v3043 = vpop.f32.mrb[0].mxu0
        %v3044 = vpop.f32.mrb[0].mxu0
        %v3045 = vadd.f32 0.0, %v3044
        %v3046 = vpop.f32.mrb[0].mxu0
        %3047 = vmatprep.mubr.bf16.mxu0 0
        %3048 = vmatmul.mubr.bf16.gmra.mrb[0].mxu0 %v2758
        %v3049 = vpop.f32.mrb[0].mxu0
        %v3050 = vadd.f32 0.0, %v3049
        %v3051 = vpop.f32.mrb[0].mxu0
        %v3052 = vpop.f32.mrb[0].mxu0
        %v3053 = vadd.f32 0.0, %v3052
        %v3054 = vpop.f32.mrb[0].mxu0
        %3055 = vmatprep.mubr.bf16.mxu0 0
        %3056 = vmatmul.mubr.bf16.gmra.mrb[0].mxu0 %v2759
        %v3057 = vpop.f32.mrb[0].mxu0
        %v3058 = vadd.f32 0.0, %v3057
        %v3059 = vpop.f32.mrb[0].mxu0
        %v3060 = vpop.f32.mrb[0].mxu0
        %v3061 = vadd.f32 0.0, %v3060
        %v3062 = vpop.f32.mrb[0].mxu0
        %3063 = vmatprep.mubr.bf16.mxu0 0
        %3064 = vmatmul.mubr.bf16.gmra.mrb[0].mxu0 %v2760
        %v3065 = vpop.f32.mrb[0].mxu0
        %v3066 = vadd.f32 0.0, %v3065
        %v3067 = vpop.f32.mrb[0].mxu0
        %v3068 = vpop.f32.mrb[0].mxu0
        %v3069 = vadd.f32 0.0, %v3068
        %v3070 = vpop.f32.mrb[0].mxu0
        %3071 = vmatprep.mubr.bf16.mxu0 0
        %3072 = vmatmul.mubr.bf16.gmra.mrb[0].mxu0 %v2761
        %v3073 = vpop.f32.mrb[0].mxu0
        %v3074 = vadd.f32 0.0, %v3073
        %v3075 = vpop.f32.mrb[0].mxu0
        %v3076 = vpop.f32.mrb[0].mxu0
        %v3077 = vadd.f32 0.0, %v3076
        %v3078 = vpop.f32.mrb[0].mxu0
        %3079 = vmatprep.mubr.bf16.mxu0 0
        %3080 = vmatmul.mubr.bf16.gmra.mrb[0].mxu0 %v2762
        %v3081 = vpop.f32.mrb[0].mxu0
        %v3082 = vadd.f32 0.0, %v3081
        %v3083 = vpop.f32.mrb[0].mxu0
        %v3084 = vpop.f32.mrb[0].mxu0
        %v3085 = vadd.f32 0.0, %v3084
        %v3086 = vpop.f32.mrb[0].mxu0
        %3087 = vmatprep.mubr.bf16.mxu0 0
        %3088 = vmatmul.mubr.bf16.gmra.mrb[0].mxu0 %v2763
        %v3089 = vpop.f32.mrb[0].mxu0
        %v3090 = vadd.f32 0.0, %v3089
        %v3091 = vpop.f32.mrb[0].mxu0
        %v3092 = vpop.f32.mrb[0].mxu0
        %v3093 = vadd.f32 0.0, %v3092
        %v3094 = vpop.f32.mrb[0].mxu0
        %3095 = vmatprep.mubr.bf16.mxu0 0
        %3096 = vmatmul.mubr.bf16.gmra.mrb[0].mxu0 %v2764
        %v3097 = vpop.f32.mrb[0].mxu0
        %v3098 = vadd.f32 0.0, %v3097
        %v3099 = vpop.f32.mrb[0].mxu0
        %v3100 = vpop.f32.mrb[0].mxu0
        %v3101 = vadd.f32 0.0, %v3100
        %v3102 = vpop.f32.mrb[0].mxu0
        %3103 = vmatprep.mubr.bf16.mxu0 0
        %3104 = vmatmul.mubr.bf16.gmra.mrb[0].mxu0 %v2765
        %v3105 = vpop.f32.mrb[0].mxu0
        %v3106 = vadd.f32 0.0, %v3105
        %v3107 = vpop.f32.mrb[0].mxu0
        %v3108 = vpop.f32.mrb[0].mxu0
        %v3109 = vadd.f32 0.0, %v3108
        %v3110 = vpop.f32.mrb[0].mxu0
        %3111 = vmatprep.mubr.bf16.mxu0 0
        %3112 = vmatmul.mubr.bf16.gmra.mrb[0].mxu0 %v2766
        %v3113 = vpop.f32.mrb[0].mxu0
        %v3114 = vadd.f32 0.0, %v3113
        %v3115 = vpop.f32.mrb[0].mxu0
        %v3116 = vpop.f32.mrb[0].mxu0
        %v3117 = vadd.f32 0.0, %v3116
        %v3118 = vpop.f32.mrb[0].mxu0
        %3119 = vdwg.mxu0
        %v3120 = vpack.c.bf16 %v2869, %v2866
        %v3121 = vpack.c.bf16 %v2877, %v2874
        %v3122 = vpack.c.bf16 %v2885, %v2882
        %v3123 = vpack.c.bf16 %v2893, %v2890
        %v3124 = vpack.c.bf16 %v2901, %v2898
        %v3125 = vpack.c.bf16 %v2909, %v2906
        %v3126 = vpack.c.bf16 %v2917, %v2914
        %v3127 = vpack.c.bf16 %v2925, %v2922
        %v3128 = vpack.c.bf16 %v2933, %v2930
        %v3129 = vpack.c.bf16 %v2941, %v2938
        %v3130 = vpack.c.bf16 %v2949, %v2946
        %v3131 = vpack.c.bf16 %v2957, %v2954
        %v3132 = vpack.c.bf16 %v2965, %v2962
        %v3133 = vpack.c.bf16 %v2973, %v2970
        %v3134 = vpack.c.bf16 %v2981, %v2978
        %v3135 = vpack.c.bf16 %v2989, %v2986
        %v3136 = vpack.c.bf16 %v2997, %v2994
        %v3137 = vpack.c.bf16 %v3005, %v3002
        %v3138 = vpack.c.bf16 %v3013, %v3010
        %v3139 = vpack.c.bf16 %v3021, %v3018
        %v3140 = vpack.c.bf16 %v3029, %v3026
        %v3141 = vpack.c.bf16 %v3037, %v3034
        %v3142 = vpack.c.bf16 %v3045, %v3042
        %v3143 = vpack.c.bf16 %v3053, %v3050
        %v3144 = vpack.c.bf16 %v3061, %v3058
        %v3145 = vpack.c.bf16 %v3069, %v3066
        %v3146 = vpack.c.bf16 %v3077, %v3074
        %v3147 = vpack.c.bf16 %v3085, %v3082
        %v3148 = vpack.c.bf16 %v3093, %v3090
        %v3149 = vpack.c.bf16 %v3101, %v3098
        %v3150 = vpack.c.bf16 %v3109, %v3106
        %v3151 = vpack.c.bf16 %v3117, %v3114
        %3152 = vmatprep.subr.bf16.mxu0 0
        %3153 = vmatpush1.bf16.msra.mxu0 %v3120
        %3154 = vmatprep.subr.bf16.mxu0 0
        %3155 = vmatpush1.bf16.msra.mxu0 %v3121
        %3156 = vmatprep.subr.bf16.mxu0 0
        %3157 = vmatpush1.bf16.msra.mxu0 %v3122
        %3158 = vmatprep.subr.bf16.mxu0 0
        %3159 = vmatpush1.bf16.msra.mxu0 %v3123
        %3160 = vmatprep.subr.bf16.mxu0 0
        %3161 = vmatpush1.bf16.msra.mxu0 %v3124
        %3162 = vmatprep.subr.bf16.mxu0 0
        %3163 = vmatpush1.bf16.msra.mxu0 %v3125
        %3164 = vmatprep.subr.bf16.mxu0 0
        %3165 = vmatpush1.bf16.msra.mxu0 %v3126
        %3166 = vmatprep.subr.bf16.mxu0 0
        %3167 = vmatpush1.bf16.msra.mxu0 %v3127
        %3168 = vmatprep.subr.bf16.mxu0 0
        %3169 = vmatpush1.bf16.msra.mxu0 %v3128
        %3170 = vmatprep.subr.bf16.mxu0 0
        %3171 = vmatpush1.bf16.msra.mxu0 %v3129
        %3172 = vmatprep.subr.bf16.mxu0 0
        %3173 = vmatpush1.bf16.msra.mxu0 %v3130
        %3174 = vmatprep.subr.bf16.mxu0 0
        %3175 = vmatpush1.bf16.msra.mxu0 %v3131
        %3176 = vmatprep.subr.bf16.mxu0 0
        %3177 = vmatpush1.bf16.msra.mxu0 %v3132
        %3178 = vmatprep.subr.bf16.mxu0 0
        %3179 = vmatpush1.bf16.msra.mxu0 %v3133
        %3180 = vmatprep.subr.bf16.mxu0 0
        %3181 = vmatpush1.bf16.msra.mxu0 %v3134
        %3182 = vmatprep.subr.bf16.mxu0 0
        %3183 = vmatpush1.bf16.msra.mxu0 %v3135
        %3184 = vmatprep.mubr.bf16.mxu0 %v828
        %3185 = vmatmul.mubr.bf16.gmra.mrb[0].mxu0 %v827
        %v3186 = vpop.f32.mrb[0].mxu0
        %v3187 = vadd.f32 0.0, %v3186
        %v3188 = vpop.f32.mrb[0].mxu0
        %v3189 = vpop.f32.mrb[0].mxu0
        %v3190 = vadd.f32 0.0, %v3189
        %v3191 = vpop.f32.mrb[0].mxu0
        %3192 = vmatprep.mubr.bf16.mxu0 %v830
        %3193 = vmatmul.mubr.bf16.gmra.mrb[0].mxu0 %v829
        %v3194 = vpop.f32.mrb[0].mxu0
        %v3195 = vadd.f32 0.0, %v3194
        %v3196 = vpop.f32.mrb[0].mxu0
        %v3197 = vpop.f32.mrb[0].mxu0
        %v3198 = vadd.f32 0.0, %v3197
        %v3199 = vpop.f32.mrb[0].mxu0
        %3200 = vmatprep.mubr.bf16.mxu0 %v832
        %3201 = vmatmul.mubr.bf16.gmra.mrb[0].mxu0 %v831
        %v3202 = vpop.f32.mrb[0].mxu0
        %v3203 = vadd.f32 0.0, %v3202
        %v3204 = vpop.f32.mrb[0].mxu0
        %v3205 = vpop.f32.mrb[0].mxu0
        %v3206 = vadd.f32 0.0, %v3205
        %v3207 = vpop.f32.mrb[0].mxu0
        %3208 = vmatprep.mubr.bf16.mxu0 %v834
        %3209 = vmatmul.mubr.bf16.gmra.mrb[0].mxu0 %v833
        %v3210 = vpop.f32.mrb[0].mxu0
        %v3211 = vadd.f32 0.0, %v3210
        %v3212 = vpop.f32.mrb[0].mxu0
        %v3213 = vpop.f32.mrb[0].mxu0
        %v3214 = vadd.f32 0.0, %v3213
        %v3215 = vpop.f32.mrb[0].mxu0
        %3216 = vmatprep.mubr.bf16.mxu0 %v836
        %3217 = vmatmul.mubr.bf16.gmra.mrb[0].mxu0 %v835
        %v3218 = vpop.f32.mrb[0].mxu0
        %v3219 = vadd.f32 0.0, %v3218
        %v3220 = vpop.f32.mrb[0].mxu0
        %v3221 = vpop.f32.mrb[0].mxu0
        %v3222 = vadd.f32 0.0, %v3221
        %v3223 = vpop.f32.mrb[0].mxu0
        %3224 = vmatprep.mubr.bf16.mxu0 %v838
        %3225 = vmatmul.mubr.bf16.gmra.mrb[0].mxu0 %v837
        %v3226 = vpop.f32.mrb[0].mxu0
        %v3227 = vadd.f32 0.0, %v3226
        %v3228 = vpop.f32.mrb[0].mxu0
        %v3229 = vpop.f32.mrb[0].mxu0
        %v3230 = vadd.f32 0.0, %v3229
        %v3231 = vpop.f32.mrb[0].mxu0
        %3232 = vmatprep.mubr.bf16.mxu0 %v840
        %3233 = vmatmul.mubr.bf16.gmra.mrb[0].mxu0 %v839
        %v3234 = vpop.f32.mrb[0].mxu0
        %v3235 = vadd.f32 0.0, %v3234
        %v3236 = vpop.f32.mrb[0].mxu0
        %v3237 = vpop.f32.mrb[0].mxu0
        %v3238 = vadd.f32 0.0, %v3237
        %v3239 = vpop.f32.mrb[0].mxu0
        %3240 = vmatprep.mubr.bf16.mxu0 %v842
        %3241 = vmatmul.mubr.bf16.gmra.mrb[0].mxu0 %v841
        %v3242 = vpop.f32.mrb[0].mxu0
        %v3243 = vadd.f32 0.0, %v3242
        %v3244 = vpop.f32.mrb[0].mxu0
        %v3245 = vpop.f32.mrb[0].mxu0
        %v3246 = vadd.f32 0.0, %v3245
        %v3247 = vpop.f32.mrb[0].mxu0
        %3248 = vmatprep.mubr.bf16.mxu0 %v844
        %3249 = vmatmul.mubr.bf16.gmra.mrb[0].mxu0 %v843
        %v3250 = vpop.f32.mrb[0].mxu0
        %v3251 = vadd.f32 0.0, %v3250
        %v3252 = vpop.f32.mrb[0].mxu0
        %v3253 = vpop.f32.mrb[0].mxu0
        %v3254 = vadd.f32 0.0, %v3253
        %v3255 = vpop.f32.mrb[0].mxu0
        %3256 = vmatprep.mubr.bf16.mxu0 %v846
        %3257 = vmatmul.mubr.bf16.gmra.mrb[0].mxu0 %v845
        %v3258 = vpop.f32.mrb[0].mxu0
        %v3259 = vadd.f32 0.0, %v3258
        %v3260 = vpop.f32.mrb[0].mxu0
        %v3261 = vpop.f32.mrb[0].mxu0
        %v3262 = vadd.f32 0.0, %v3261
        %v3263 = vpop.f32.mrb[0].mxu0
        %3264 = vmatprep.mubr.bf16.mxu0 %v848
        %3265 = vmatmul.mubr.bf16.gmra.mrb[0].mxu0 %v847
        %v3266 = vpop.f32.mrb[0].mxu0
        %v3267 = vadd.f32 0.0, %v3266
        %v3268 = vpop.f32.mrb[0].mxu0
        %v3269 = vpop.f32.mrb[0].mxu0
        %v3270 = vadd.f32 0.0, %v3269
        %v3271 = vpop.f32.mrb[0].mxu0
        %3272 = vmatprep.mubr.bf16.mxu0 %v850
        %3273 = vmatmul.mubr.bf16.gmra.mrb[0].mxu0 %v849
        %v3274 = vpop.f32.mrb[0].mxu0
        %v3275 = vadd.f32 0.0, %v3274
        %v3276 = vpop.f32.mrb[0].mxu0
        %v3277 = vpop.f32.mrb[0].mxu0
        %v3278 = vadd.f32 0.0, %v3277
        %v3279 = vpop.f32.mrb[0].mxu0
        %3280 = vmatprep.mubr.bf16.mxu0 %v852
        %3281 = vmatmul.mubr.bf16.gmra.mrb[0].mxu0 %v851
        %v3282 = vpop.f32.mrb[0].mxu0
        %v3283 = vadd.f32 0.0, %v3282
        %v3284 = vpop.f32.mrb[0].mxu0
        %v3285 = vpop.f32.mrb[0].mxu0
        %v3286 = vadd.f32 0.0, %v3285
        %v3287 = vpop.f32.mrb[0].mxu0
        %3288 = vmatprep.mubr.bf16.mxu0 %v854
        %3289 = vmatmul.mubr.bf16.gmra.mrb[0].mxu0 %v853
        %v3290 = vpop.f32.mrb[0].mxu0
        %v3291 = vadd.f32 0.0, %v3290
        %v3292 = vpop.f32.mrb[0].mxu0
        %v3293 = vpop.f32.mrb[0].mxu0
        %v3294 = vadd.f32 0.0, %v3293
        %v3295 = vpop.f32.mrb[0].mxu0
        %3296 = vmatprep.mubr.bf16.mxu0 %v856
        %3297 = vmatmul.mubr.bf16.gmra.mrb[0].mxu0 %v855
        %v3298 = vpop.f32.mrb[0].mxu0
        %v3299 = vadd.f32 0.0, %v3298
        %v3300 = vpop.f32.mrb[0].mxu0
        %v3301 = vpop.f32.mrb[0].mxu0
        %v3302 = vadd.f32 0.0, %v3301
        %v3303 = vpop.f32.mrb[0].mxu0
        %3304 = vmatprep.mubr.bf16.mxu0 %v858
        %3305 = vmatmul.mubr.bf16.gmra.mrb[0].mxu0 %v857
        %v3306 = vpop.f32.mrb[0].mxu0
        %v3307 = vadd.f32 0.0, %v3306
        %v3308 = vpop.f32.mrb[0].mxu0
        %v3309 = vpop.f32.mrb[0].mxu0
        %v3310 = vadd.f32 0.0, %v3309
        %v3311 = vpop.f32.mrb[0].mxu0
        %3312 = vdwg.mxu0
        %3313 = vmatprep.subr.bf16.mxu0 0
        %3314 = vmatpush1.bf16.msra.mxu0 %v3136
        %3315 = vmatprep.subr.bf16.mxu0 0
        %3316 = vmatpush1.bf16.msra.mxu0 %v3137
        %3317 = vmatprep.subr.bf16.mxu0 0
        %3318 = vmatpush1.bf16.msra.mxu0 %v3138
        %3319 = vmatprep.subr.bf16.mxu0 0
        %3320 = vmatpush1.bf16.msra.mxu0 %v3139
        %3321 = vmatprep.subr.bf16.mxu0 0
        %3322 = vmatpush1.bf16.msra.mxu0 %v3140
        %3323 = vmatprep.subr.bf16.mxu0 0
        %3324 = vmatpush1.bf16.msra.mxu0 %v3141
        %3325 = vmatprep.subr.bf16.mxu0 0
        %3326 = vmatpush1.bf16.msra.mxu0 %v3142
        %3327 = vmatprep.subr.bf16.mxu0 0
        %3328 = vmatpush1.bf16.msra.mxu0 %v3143
        %3329 = vmatprep.subr.bf16.mxu0 0
        %3330 = vmatpush1.bf16.msra.mxu0 %v3144
        %3331 = vmatprep.subr.bf16.mxu0 0
        %3332 = vmatpush1.bf16.msra.mxu0 %v3145
        %3333 = vmatprep.subr.bf16.mxu0 0
        %3334 = vmatpush1.bf16.msra.mxu0 %v3146
        %3335 = vmatprep.subr.bf16.mxu0 0
        %3336 = vmatpush1.bf16.msra.mxu0 %v3147
        %3337 = vmatprep.subr.bf16.mxu0 0
        %3338 = vmatpush1.bf16.msra.mxu0 %v3148
        %3339 = vmatprep.subr.bf16.mxu0 0
        %3340 = vmatpush1.bf16.msra.mxu0 %v3149
        %3341 = vmatprep.subr.bf16.mxu0 0
        %3342 = vmatpush1.bf16.msra.mxu0 %v3150
        %3343 = vmatprep.subr.bf16.mxu0 0
        %3344 = vmatpush1.bf16.msra.mxu0 %v3151
        %3345 = vmatprep.mubr.bf16.mxu0 %v828
        %3346 = vmatmul.mubr.bf16.gmra.mrb[0].mxu0 %v827
        %v3347 = vpop.f32.mrb[0].mxu0
        %v3348 = vadd.f32 0.0, %v3347
        %v3349 = vpop.f32.mrb[0].mxu0
        %v3350 = vpop.f32.mrb[0].mxu0
        %v3351 = vadd.f32 0.0, %v3350
        %v3352 = vpop.f32.mrb[0].mxu0
        %3353 = vmatprep.mubr.bf16.mxu0 %v830
        %3354 = vmatmul.mubr.bf16.gmra.mrb[0].mxu0 %v829
        %v3355 = vpop.f32.mrb[0].mxu0
        %v3356 = vadd.f32 0.0, %v3355
        %v3357 = vpop.f32.mrb[0].mxu0
        %v3358 = vpop.f32.mrb[0].mxu0
        %v3359 = vadd.f32 0.0, %v3358
        %v3360 = vpop.f32.mrb[0].mxu0
        %3361 = vmatprep.mubr.bf16.mxu0 %v832
        %3362 = vmatmul.mubr.bf16.gmra.mrb[0].mxu0 %v831
        %v3363 = vpop.f32.mrb[0].mxu0
        %v3364 = vadd.f32 0.0, %v3363
        %v3365 = vpop.f32.mrb[0].mxu0
        %v3366 = vpop.f32.mrb[0].mxu0
        %v3367 = vadd.f32 0.0, %v3366
        %v3368 = vpop.f32.mrb[0].mxu0
        %3369 = vmatprep.mubr.bf16.mxu0 %v834
        %3370 = vmatmul.mubr.bf16.gmra.mrb[0].mxu0 %v833
        %v3371 = vpop.f32.mrb[0].mxu0
        %v3372 = vadd.f32 0.0, %v3371
        %v3373 = vpop.f32.mrb[0].mxu0
        %v3374 = vpop.f32.mrb[0].mxu0
        %v3375 = vadd.f32 0.0, %v3374
        %v3376 = vpop.f32.mrb[0].mxu0
        %3377 = vmatprep.mubr.bf16.mxu0 %v836
        %3378 = vmatmul.mubr.bf16.gmra.mrb[0].mxu0 %v835
        %v3379 = vpop.f32.mrb[0].mxu0
        %v3380 = vadd.f32 0.0, %v3379
        %v3381 = vpop.f32.mrb[0].mxu0
        %v3382 = vpop.f32.mrb[0].mxu0
        %v3383 = vadd.f32 0.0, %v3382
        %v3384 = vpop.f32.mrb[0].mxu0
        %3385 = vmatprep.mubr.bf16.mxu0 %v838
        %3386 = vmatmul.mubr.bf16.gmra.mrb[0].mxu0 %v837
        %v3387 = vpop.f32.mrb[0].mxu0
        %v3388 = vadd.f32 0.0, %v3387
        %v3389 = vpop.f32.mrb[0].mxu0
        %v3390 = vpop.f32.mrb[0].mxu0
        %v3391 = vadd.f32 0.0, %v3390
        %v3392 = vpop.f32.mrb[0].mxu0
        %3393 = vmatprep.mubr.bf16.mxu0 %v840
        %3394 = vmatmul.mubr.bf16.gmra.mrb[0].mxu0 %v839
        %v3395 = vpop.f32.mrb[0].mxu0
        %v3396 = vadd.f32 0.0, %v3395
        %v3397 = vpop.f32.mrb[0].mxu0
        %v3398 = vpop.f32.mrb[0].mxu0
        %v3399 = vadd.f32 0.0, %v3398
        %v3400 = vpop.f32.mrb[0].mxu0
        %3401 = vmatprep.mubr.bf16.mxu0 %v842
        %3402 = vmatmul.mubr.bf16.gmra.mrb[0].mxu0 %v841
        %v3403 = vpop.f32.mrb[0].mxu0
        %v3404 = vadd.f32 0.0, %v3403
        %v3405 = vpop.f32.mrb[0].mxu0
        %v3406 = vpop.f32.mrb[0].mxu0
        %v3407 = vadd.f32 0.0, %v3406
        %v3408 = vpop.f32.mrb[0].mxu0
        %3409 = vmatprep.mubr.bf16.mxu0 %v844
        %3410 = vmatmul.mubr.bf16.gmra.mrb[0].mxu0 %v843
        %v3411 = vpop.f32.mrb[0].mxu0
        %v3412 = vadd.f32 0.0, %v3411
        %v3413 = vpop.f32.mrb[0].mxu0
        %v3414 = vpop.f32.mrb[0].mxu0
        %v3415 = vadd.f32 0.0, %v3414
        %v3416 = vpop.f32.mrb[0].mxu0
        %3417 = vmatprep.mubr.bf16.mxu0 %v846
        %3418 = vmatmul.mubr.bf16.gmra.mrb[0].mxu0 %v845
        %v3419 = vpop.f32.mrb[0].mxu0
        %v3420 = vadd.f32 0.0, %v3419
        %v3421 = vpop.f32.mrb[0].mxu0
        %v3422 = vpop.f32.mrb[0].mxu0
        %v3423 = vadd.f32 0.0, %v3422
        %v3424 = vpop.f32.mrb[0].mxu0
        %3425 = vmatprep.mubr.bf16.mxu0 %v848
        %3426 = vmatmul.mubr.bf16.gmra.mrb[0].mxu0 %v847
        %v3427 = vpop.f32.mrb[0].mxu0
        %v3428 = vadd.f32 0.0, %v3427
        %v3429 = vpop.f32.mrb[0].mxu0
        %v3430 = vpop.f32.mrb[0].mxu0
        %v3431 = vadd.f32 0.0, %v3430
        %v3432 = vpop.f32.mrb[0].mxu0
        %3433 = vmatprep.mubr.bf16.mxu0 %v850
        %3434 = vmatmul.mubr.bf16.gmra.mrb[0].mxu0 %v849
        %v3435 = vpop.f32.mrb[0].mxu0
        %v3436 = vadd.f32 0.0, %v3435
        %v3437 = vpop.f32.mrb[0].mxu0
        %v3438 = vpop.f32.mrb[0].mxu0
        %v3439 = vadd.f32 0.0, %v3438
        %v3440 = vpop.f32.mrb[0].mxu0
        %3441 = vmatprep.mubr.bf16.mxu0 %v852
        %3442 = vmatmul.mubr.bf16.gmra.mrb[0].mxu0 %v851
        %v3443 = vpop.f32.mrb[0].mxu0
        %v3444 = vadd.f32 0.0, %v3443
        %v3445 = vpop.f32.mrb[0].mxu0
        %v3446 = vpop.f32.mrb[0].mxu0
        %v3447 = vadd.f32 0.0, %v3446
        %v3448 = vpop.f32.mrb[0].mxu0
        %3449 = vmatprep.mubr.bf16.mxu0 %v854
        %3450 = vmatmul.mubr.bf16.gmra.mrb[0].mxu0 %v853
        %v3451 = vpop.f32.mrb[0].mxu0
        %v3452 = vadd.f32 0.0, %v3451
        %v3453 = vpop.f32.mrb[0].mxu0
        %v3454 = vpop.f32.mrb[0].mxu0
        %v3455 = vadd.f32 0.0, %v3454
        %v3456 = vpop.f32.mrb[0].mxu0
        %3457 = vmatprep.mubr.bf16.mxu0 %v856
        %3458 = vmatmul.mubr.bf16.gmra.mrb[0].mxu0 %v855
        %v3459 = vpop.f32.mrb[0].mxu0
        %v3460 = vadd.f32 0.0, %v3459
        %v3461 = vpop.f32.mrb[0].mxu0
        %v3462 = vpop.f32.mrb[0].mxu0
        %v3463 = vadd.f32 0.0, %v3462
        %v3464 = vpop.f32.mrb[0].mxu0
        %3465 = vmatprep.mubr.bf16.mxu0 %v858
        %3466 = vmatmul.mubr.bf16.gmra.mrb[0].mxu0 %v857
        %v3467 = vpop.f32.mrb[0].mxu0
        %v3468 = vadd.f32 0.0, %v3467
        %v3469 = vpop.f32.mrb[0].mxu0
        %v3470 = vpop.f32.mrb[0].mxu0
        %v3471 = vadd.f32 0.0, %v3470
        %v3472 = vpop.f32.mrb[0].mxu0
        %3473 = vdwg.mxu0
        %v3474 = vld [vmem:[%s8] sm:$0x1]
        %v3476 = vlaneseq
        %v3477 = vshrl.u32 %v3476, 7
        %v3478 = vsub.s32 0, %v3477
        %v3479 = vrot.slane %v3474, %v3478
        %v3481 = vadd.f32 %v3187, %v3479
        %v3482 = vadd.f32 %v3190, %v3479
        %v3483 = vadd.f32 %v3195, %v3479
        %v3484 = vadd.f32 %v3198, %v3479
        %v3485 = vadd.f32 %v3203, %v3479
        %v3486 = vadd.f32 %v3206, %v3479
        %v3487 = vadd.f32 %v3211, %v3479
        %v3488 = vadd.f32 %v3214, %v3479
        %v3489 = vadd.f32 %v3219, %v3479
        %v3490 = vadd.f32 %v3222, %v3479
        %v3491 = vadd.f32 %v3227, %v3479
        %v3492 = vadd.f32 %v3230, %v3479
        %v3493 = vadd.f32 %v3235, %v3479
        %v3494 = vadd.f32 %v3238, %v3479
        %v3495 = vadd.f32 %v3243, %v3479
        %v3496 = vadd.f32 %v3246, %v3479
        %v3497 = vadd.f32 %v3251, %v3479
        %v3498 = vadd.f32 %v3254, %v3479
        %v3499 = vadd.f32 %v3259, %v3479
        %v3500 = vadd.f32 %v3262, %v3479
        %v3501 = vadd.f32 %v3267, %v3479
        %v3502 = vadd.f32 %v3270, %v3479
        %v3503 = vadd.f32 %v3275, %v3479
        %v3504 = vadd.f32 %v3278, %v3479
        %v3505 = vadd.f32 %v3283, %v3479
        %v3506 = vadd.f32 %v3286, %v3479
        %v3507 = vadd.f32 %v3291, %v3479
        %v3508 = vadd.f32 %v3294, %v3479
        %v3509 = vadd.f32 %v3299, %v3479
        %v3510 = vadd.f32 %v3302, %v3479
        %v3511 = vadd.f32 %v3307, %v3479
        %v3512 = vadd.f32 %v3310, %v3479
        %v3513 = vadd.f32 %v3348, %v3479
        %v3514 = vadd.f32 %v3351, %v3479
        %v3515 = vadd.f32 %v3356, %v3479
        %v3516 = vadd.f32 %v3359, %v3479
        %v3517 = vadd.f32 %v3364, %v3479
        %v3518 = vadd.f32 %v3367, %v3479
        %v3519 = vadd.f32 %v3372, %v3479
        %v3520 = vadd.f32 %v3375, %v3479
        %v3521 = vadd.f32 %v3380, %v3479
        %v3522 = vadd.f32 %v3383, %v3479
        %v3523 = vadd.f32 %v3388, %v3479
        %v3524 = vadd.f32 %v3391, %v3479
        %v3525 = vadd.f32 %v3396, %v3479
        %v3526 = vadd.f32 %v3399, %v3479
        %v3527 = vadd.f32 %v3404, %v3479
        %v3528 = vadd.f32 %v3407, %v3479
        %v3529 = vadd.f32 %v3412, %v3479
        %v3530 = vadd.f32 %v3415, %v3479
        %v3531 = vadd.f32 %v3420, %v3479
        %v3532 = vadd.f32 %v3423, %v3479
        %v3533 = vadd.f32 %v3428, %v3479
        %v3534 = vadd.f32 %v3431, %v3479
        %v3535 = vadd.f32 %v3436, %v3479
        %v3536 = vadd.f32 %v3439, %v3479
        %v3537 = vadd.f32 %v3444, %v3479
        %v3538 = vadd.f32 %v3447, %v3479
        %v3539 = vadd.f32 %v3452, %v3479
        %v3540 = vadd.f32 %v3455, %v3479
        %v3541 = vadd.f32 %v3460, %v3479
        %v3542 = vadd.f32 %v3463, %v3479
        %v3543 = vadd.f32 %v3468, %v3479
        %v3544 = vadd.f32 %v3471, %v3479
        %v3545 = vmax.f32 %v3481, 0.0
        %v3546 = vmax.f32 %v3482, 0.0
        %v3547 = vmax.f32 %v3483, 0.0
        %v3548 = vmax.f32 %v3484, 0.0
        %v3549 = vmax.f32 %v3485, 0.0
        %v3550 = vmax.f32 %v3486, 0.0
        %v3551 = vmax.f32 %v3487, 0.0
        %v3552 = vmax.f32 %v3488, 0.0
        %v3553 = vmax.f32 %v3489, 0.0
        %v3554 = vmax.f32 %v3490, 0.0
        %v3555 = vmax.f32 %v3491, 0.0
        %v3556 = vmax.f32 %v3492, 0.0
        %v3557 = vmax.f32 %v3493, 0.0
        %v3558 = vmax.f32 %v3494, 0.0
        %v3559 = vmax.f32 %v3495, 0.0
        %v3560 = vmax.f32 %v3496, 0.0
        %v3561 = vmax.f32 %v3497, 0.0
        %v3562 = vmax.f32 %v3498, 0.0
        %v3563 = vmax.f32 %v3499, 0.0
        %v3564 = vmax.f32 %v3500, 0.0
        %v3565 = vmax.f32 %v3501, 0.0
        %v3566 = vmax.f32 %v3502, 0.0
        %v3567 = vmax.f32 %v3503, 0.0
        %v3568 = vmax.f32 %v3504, 0.0
        %v3569 = vmax.f32 %v3505, 0.0
        %v3570 = vmax.f32 %v3506, 0.0
        %v3571 = vmax.f32 %v3507, 0.0
        %v3572 = vmax.f32 %v3508, 0.0
        %v3573 = vmax.f32 %v3509, 0.0
        %v3574 = vmax.f32 %v3510, 0.0
        %v3575 = vmax.f32 %v3511, 0.0
        %v3576 = vmax.f32 %v3512, 0.0
        %v3577 = vmax.f32 %v3513, 0.0
        %v3578 = vmax.f32 %v3514, 0.0
        %v3579 = vmax.f32 %v3515, 0.0
        %v3580 = vmax.f32 %v3516, 0.0
        %v3581 = vmax.f32 %v3517, 0.0
        %v3582 = vmax.f32 %v3518, 0.0
        %v3583 = vmax.f32 %v3519, 0.0
        %v3584 = vmax.f32 %v3520, 0.0
        %v3585 = vmax.f32 %v3521, 0.0
        %v3586 = vmax.f32 %v3522, 0.0
        %v3587 = vmax.f32 %v3523, 0.0
        %v3588 = vmax.f32 %v3524, 0.0
        %v3589 = vmax.f32 %v3525, 0.0
        %v3590 = vmax.f32 %v3526, 0.0
        %v3591 = vmax.f32 %v3527, 0.0
        %v3592 = vmax.f32 %v3528, 0.0
        %v3593 = vmax.f32 %v3529, 0.0
        %v3594 = vmax.f32 %v3530, 0.0
        %v3595 = vmax.f32 %v3531, 0.0
        %v3596 = vmax.f32 %v3532, 0.0
        %v3597 = vmax.f32 %v3533, 0.0
        %v3598 = vmax.f32 %v3534, 0.0
        %v3599 = vmax.f32 %v3535, 0.0
        %v3600 = vmax.f32 %v3536, 0.0
        %v3601 = vmax.f32 %v3537, 0.0
        %v3602 = vmax.f32 %v3538, 0.0
        %v3603 = vmax.f32 %v3539, 0.0
        %v3604 = vmax.f32 %v3540, 0.0
        %v3605 = vmax.f32 %v3541, 0.0
        %v3606 = vmax.f32 %v3542, 0.0
        %v3607 = vmax.f32 %v3543, 0.0
        %v3608 = vmax.f32 %v3544, 0.0
        %v3609 = vpack.c.bf16 %v3546, %v3545
        %v3610 = vpack.c.bf16 %v3548, %v3547
        %v3611 = vpack.c.bf16 %v3550, %v3549
        %v3612 = vpack.c.bf16 %v3552, %v3551
        %v3613 = vpack.c.bf16 %v3554, %v3553
        %v3614 = vpack.c.bf16 %v3556, %v3555
        %v3615 = vpack.c.bf16 %v3558, %v3557
        %v3616 = vpack.c.bf16 %v3560, %v3559
        %v3617 = vpack.c.bf16 %v3562, %v3561
        %v3618 = vpack.c.bf16 %v3564, %v3563
        %v3619 = vpack.c.bf16 %v3566, %v3565
        %v3620 = vpack.c.bf16 %v3568, %v3567
        %v3621 = vpack.c.bf16 %v3570, %v3569
        %v3622 = vpack.c.bf16 %v3572, %v3571
        %v3623 = vpack.c.bf16 %v3574, %v3573
        %v3624 = vpack.c.bf16 %v3576, %v3575
        %v3625 = vpack.c.bf16 %v3578, %v3577
        %v3626 = vpack.c.bf16 %v3580, %v3579
        %v3627 = vpack.c.bf16 %v3582, %v3581
        %v3628 = vpack.c.bf16 %v3584, %v3583
        %v3629 = vpack.c.bf16 %v3586, %v3585
        %v3630 = vpack.c.bf16 %v3588, %v3587
        %v3631 = vpack.c.bf16 %v3590, %v3589
        %v3632 = vpack.c.bf16 %v3592, %v3591
        %v3633 = vpack.c.bf16 %v3594, %v3593
        %v3634 = vpack.c.bf16 %v3596, %v3595
        %v3635 = vpack.c.bf16 %v3598, %v3597
        %v3636 = vpack.c.bf16 %v3600, %v3599
        %v3637 = vpack.c.bf16 %v3602, %v3601
        %v3638 = vpack.c.bf16 %v3604, %v3603
        %v3639 = vpack.c.bf16 %v3606, %v3605
        %v3640 = vpack.c.bf16 %v3608, %v3607
        %v3643 = vunpack.c.l.b16 %v665
        %v3644 = vunpack.c.h.b16 %v665
        %v3645 = vunpack.c.l.b16 %v666
        %v3646 = vunpack.c.h.b16 %v666
        %v3647 = vpack.c.b16 %v3645, %v3643
        %v3648 = vpack.c.b16 %v3646, %v3644
        %3651 = vmatprep.subr.bf16.mxu0 0
        %3652 = vmatpush1.bf16.msra.mxu0 %v3609
        %3653 = vmatprep.subr.bf16.mxu0 0
        %3654 = vmatpush1.bf16.msra.mxu0 %v3610
        %3655 = vmatprep.subr.bf16.mxu0 0
        %3656 = vmatpush1.bf16.msra.mxu0 %v3611
        %3657 = vmatprep.subr.bf16.mxu0 0
        %3658 = vmatpush1.bf16.msra.mxu0 %v3612
        %3659 = vmatprep.subr.bf16.mxu0 0
        %3660 = vmatpush1.bf16.msra.mxu0 %v3613
        %3661 = vmatprep.subr.bf16.mxu0 0
        %3662 = vmatpush1.bf16.msra.mxu0 %v3614
        %3663 = vmatprep.subr.bf16.mxu0 0
        %3664 = vmatpush1.bf16.msra.mxu0 %v3615
        %3665 = vmatprep.subr.bf16.mxu0 0
        %3666 = vmatpush1.bf16.msra.mxu0 %v3616
        %3667 = vmatprep.subr.bf16.mxu0 0
        %3668 = vmatpush1.bf16.msra.mxu0 %v3617
        %3669 = vmatprep.subr.bf16.mxu0 0
        %3670 = vmatpush1.bf16.msra.mxu0 %v3618
        %3671 = vmatprep.subr.bf16.mxu0 0
        %3672 = vmatpush1.bf16.msra.mxu0 %v3619
        %3673 = vmatprep.subr.bf16.mxu0 0
        %3674 = vmatpush1.bf16.msra.mxu0 %v3620
        %3675 = vmatprep.subr.bf16.mxu0 0
        %3676 = vmatpush1.bf16.msra.mxu0 %v3621
        %3677 = vmatprep.subr.bf16.mxu0 0
        %3678 = vmatpush1.bf16.msra.mxu0 %v3622
        %3679 = vmatprep.subr.bf16.mxu0 0
        %3680 = vmatpush1.bf16.msra.mxu0 %v3623
        %3681 = vmatprep.subr.bf16.mxu0 0
        %3682 = vmatpush1.bf16.msra.mxu0 %v3624
        %3683 = vmatprep.mubr.bf16.mxu0 %v3648
        %3684 = vmatmul.mubr.bf16.gmra.mrb[0].mxu0 %v3647
        %v3685 = vpop.f32.mrb[0].mxu0
        %v3686 = vadd.f32 0.0, %v3685
        %v3687 = vpop.f32.mrb[0].mxu0
        %v3688 = vpop.f32.mrb[0].mxu0
        %v3689 = vadd.f32 0.0, %v3688
        %v3690 = vpop.f32.mrb[0].mxu0
        %3691 = vdwg.mxu0
        %3692 = vmatprep.subr.bf16.mxu0 0
        %3693 = vmatpush1.bf16.msra.mxu0 %v3625
        %3694 = vmatprep.subr.bf16.mxu0 0
        %3695 = vmatpush1.bf16.msra.mxu0 %v3626
        %3696 = vmatprep.subr.bf16.mxu0 0
        %3697 = vmatpush1.bf16.msra.mxu0 %v3627
        %3698 = vmatprep.subr.bf16.mxu0 0
        %3699 = vmatpush1.bf16.msra.mxu0 %v3628
        %3700 = vmatprep.subr.bf16.mxu0 0
        %3701 = vmatpush1.bf16.msra.mxu0 %v3629
        %3702 = vmatprep.subr.bf16.mxu0 0
        %3703 = vmatpush1.bf16.msra.mxu0 %v3630
        %3704 = vmatprep.subr.bf16.mxu0 0
        %3705 = vmatpush1.bf16.msra.mxu0 %v3631
        %3706 = vmatprep.subr.bf16.mxu0 0
        %3707 = vmatpush1.bf16.msra.mxu0 %v3632
        %3708 = vmatprep.subr.bf16.mxu0 0
        %3709 = vmatpush1.bf16.msra.mxu0 %v3633
        %3710 = vmatprep.subr.bf16.mxu0 0
        %3711 = vmatpush1.bf16.msra.mxu0 %v3634
        %3712 = vmatprep.subr.bf16.mxu0 0
        %3713 = vmatpush1.bf16.msra.mxu0 %v3635
        %3714 = vmatprep.subr.bf16.mxu0 0
        %3715 = vmatpush1.bf16.msra.mxu0 %v3636
        %3716 = vmatprep.subr.bf16.mxu0 0
        %3717 = vmatpush1.bf16.msra.mxu0 %v3637
        %3718 = vmatprep.subr.bf16.mxu0 0
        %3719 = vmatpush1.bf16.msra.mxu0 %v3638
        %3720 = vmatprep.subr.bf16.mxu0 0
        %3721 = vmatpush1.bf16.msra.mxu0 %v3639
        %3722 = vmatprep.subr.bf16.mxu0 0
        %3723 = vmatpush1.bf16.msra.mxu0 %v3640
        %3724 = vmatprep.mubr.bf16.mxu0 %v3648
        %3725 = vmatmul.mubr.bf16.gmra.mrb[0].mxu0 %v3647
        %v3726 = vpop.f32.mrb[0].mxu0
        %v3727 = vadd.f32 0.0, %v3726
        %v3728 = vpop.f32.mrb[0].mxu0
        %v3729 = vpop.f32.mrb[0].mxu0
        %v3730 = vadd.f32 0.0, %v3729
        %v3731 = vpop.f32.mrb[0].mxu0
        %3732 = vdwg.mxu0
        %v3733 = vpack.c.bf16 %v3689, %v3686
        %v3734 = vpack.c.bf16 %v3730, %v3727
        %v3735 = vld [vmem:[#allocation13] sm:$0xf]
        %v3736 = vld [vmem:[#allocation13 + $0x4] sm:$0xf]
        %v3737 = vld [vmem:[#allocation13 + $0x8] sm:$0xf]
        %v3738 = vld [vmem:[#allocation13 + $0xc] sm:$0xf]
        %v3739 = vld [vmem:[#allocation13 + $0x10] sm:$0xf]
        %v3740 = vld [vmem:[#allocation13 + $0x14] sm:$0xf]
        %v3741 = vld [vmem:[#allocation13 + $0x18] sm:$0xf]
        %v3742 = vld [vmem:[#allocation13 + $0x1c] sm:$0xf]
        %v3743 = vld [vmem:[#allocation13 + $0x20] sm:$0xf]
        %v3744 = vld [vmem:[#allocation13 + $0x24] sm:$0xf]
        %v3745 = vld [vmem:[#allocation13 + $0x28] sm:$0xf]
        %v3746 = vld [vmem:[#allocation13 + $0x2c] sm:$0xf]
        %v3747 = vld [vmem:[#allocation13 + $0x30] sm:$0xf]
        %v3748 = vld [vmem:[#allocation13 + $0x34] sm:$0xf]
        %v3749 = vld [vmem:[#allocation13 + $0x38] sm:$0xf]
        %v3750 = vld [vmem:[#allocation13 + $0x3c] sm:$0xf]
        %v3751 = vld [vmem:[%s10] sm:$0x1]
        %v3753 = vlaneseq
        %v3754 = vshrl.u32 %v3753, 7
        %v3755 = vsub.s32 0, %v3754
        %v3756 = vrot.slane %v3751, %v3755
        %v3774 = vunpack.c.l.b16 %v3735
        %v3775 = vunpack.c.l.b16 %v3736
        %v3776 = vunpack.c.l.b16 %v3737
        %v3777 = vunpack.c.l.b16 %v3738
        %v3778 = vunpack.c.l.b16 %v3739
        %v3779 = vunpack.c.l.b16 %v3740
        %v3780 = vunpack.c.l.b16 %v3741
        %v3781 = vunpack.c.l.b16 %v3742
        %v3782 = vunpack.c.l.b16 %v3743
        %v3783 = vunpack.c.l.b16 %v3744
        %v3784 = vunpack.c.l.b16 %v3745
        %v3785 = vunpack.c.l.b16 %v3746
        %v3786 = vunpack.c.l.b16 %v3747
        %v3787 = vunpack.c.l.b16 %v3748
        %v3788 = vunpack.c.l.b16 %v3749
        %v3789 = vunpack.c.l.b16 %v3750
        %v3790 = vpack.c.b16 %v3775, %v3774
        %v3791 = vpack.c.b16 %v3777, %v3776
        %v3792 = vpack.c.b16 %v3779, %v3778
        %v3793 = vpack.c.b16 %v3781, %v3780
        %v3794 = vpack.c.b16 %v3783, %v3782
        %v3795 = vpack.c.b16 %v3785, %v3784
        %v3796 = vpack.c.b16 %v3787, %v3786
        %v3797 = vpack.c.b16 %v3789, %v3788
        %3806 = vmatprep.subr.bf16.mxu0 0
        %3807 = vmatpush1.bf16.msra.mxu0 %v3790
        %3808 = vmatprep.subr.bf16.mxu0 0
        %3809 = vmatpush1.bf16.msra.mxu0 %v3791
        %3810 = vmatprep.subr.bf16.mxu0 0
        %3811 = vmatpush1.bf16.msra.mxu0 %v3792
        %3812 = vmatprep.subr.bf16.mxu0 0
        %3813 = vmatpush1.bf16.msra.mxu0 %v3793
        %3814 = vmatprep.subr.bf16.mxu0 0
        %3815 = vmatpush1.bf16.msra.mxu0 %v3794
        %3816 = vmatprep.subr.bf16.mxu0 0
        %3817 = vmatpush1.bf16.msra.mxu0 %v3795
        %3818 = vmatprep.subr.bf16.mxu0 0
        %3819 = vmatpush1.bf16.msra.mxu0 %v3796
        %3820 = vmatprep.subr.bf16.mxu0 0
        %3821 = vmatpush1.bf16.msra.mxu0 %v3797
        %3822 = vmatprep.subr.bf16.mxu0 0
        %3823 = vmatpush1.bf16.msra.mxu0 0
        %3824 = vmatprep.subr.bf16.mxu0 0
        %3825 = vmatpush1.bf16.msra.mxu0 0
        %3826 = vmatprep.subr.bf16.mxu0 0
        %3827 = vmatpush1.bf16.msra.mxu0 0
        %3828 = vmatprep.subr.bf16.mxu0 0
        %3829 = vmatpush1.bf16.msra.mxu0 0
        %3830 = vmatprep.subr.bf16.mxu0 0
        %3831 = vmatpush1.bf16.msra.mxu0 0
        %3832 = vmatprep.subr.bf16.mxu0 0
        %3833 = vmatpush1.bf16.msra.mxu0 0
        %3834 = vmatprep.subr.bf16.mxu0 0
        %3835 = vmatpush1.bf16.msra.mxu0 0
        %3836 = vmatprep.subr.bf16.mxu0 0
        %3837 = vmatpush1.bf16.msra.mxu0 0
        %3838 = vmatprep.mubr.bf16.mxu0 0
        %3839 = vmatmul.mubr.bf16.gmra.mrb[0].mxu0 %v3733
        %v3840 = vpop.f32.mrb[0].mxu0
        %v3841 = vadd.f32 %v3756, %v3840
        %v3842 = vpop.f32.mrb[0].mxu0
        %v3843 = vpop.f32.mrb[0].mxu0
        %v3844 = vadd.f32 %v3756, %v3843
        %v3845 = vpop.f32.mrb[0].mxu0
        %3846 = vmatprep.mubr.bf16.mxu0 0
        %3847 = vmatmul.mubr.bf16.gmra.mrb[0].mxu0 %v3734
        %v3848 = vpop.f32.mrb[0].mxu0
        %v3849 = vadd.f32 %v3756, %v3848
        %v3850 = vpop.f32.mrb[0].mxu0
        %v3851 = vpop.f32.mrb[0].mxu0
        %v3852 = vadd.f32 %v3756, %v3851
        %v3853 = vpop.f32.mrb[0].mxu0
        %3854 = vdwg.mxu0
        %v3855 = vmax.f32 %v3841, 0.0
        %v3856 = vmax.f32 %v3844, 0.0
        %v3857 = vmax.f32 %v3849, 0.0
        %v3858 = vmax.f32 %v3852, 0.0
        %v3859 = vpack.c.bf16 %v3856, %v3855
        %v3860 = vpack.c.bf16 %v3858, %v3857
        %v3861 = vld [vmem:[#allocation14] sm:$0xf]
        %v3862 = vld [vmem:[#allocation14 + $0x4] sm:$0xf]
        %v3863 = vld [vmem:[#allocation14 + $0x8] sm:$0xf]
        %v3864 = vld [vmem:[#allocation14 + $0xc] sm:$0xf]
        %v3865 = vld [vmem:[#allocation14 + $0x10] sm:$0xf]
        %v3866 = vld [vmem:[#allocation14 + $0x14] sm:$0xf]
        %v3867 = vld [vmem:[#allocation14 + $0x18] sm:$0xf]
        %v3868 = vld [vmem:[#allocation14 + $0x1c] sm:$0xf]
        %v3869 = vld [vmem:[#allocation14 + $0x20] sm:$0xf]
        %v3870 = vld [vmem:[#allocation14 + $0x24] sm:$0xf]
        %v3871 = vld [vmem:[#allocation14 + $0x28] sm:$0xf]
        %v3872 = vld [vmem:[#allocation14 + $0x2c] sm:$0xf]
        %v3873 = vld [vmem:[#allocation14 + $0x30] sm:$0xf]
        %v3874 = vld [vmem:[#allocation14 + $0x34] sm:$0xf]
        %v3875 = vld [vmem:[#allocation14 + $0x38] sm:$0xf]
        %v3876 = vld [vmem:[#allocation14 + $0x3c] sm:$0xf]
        %v3877 = vld [vmem:[%s12] sm:$0x1]
        %v3879 = vlaneseq
        %v3880 = vshrl.u32 %v3879, 7
        %v3881 = vsub.s32 0, %v3880
        %v3882 = vrot.slane %v3877, %v3881
        %v3900 = vunpack.c.l.b16 %v3861
        %v3901 = vunpack.c.l.b16 %v3862
        %v3902 = vunpack.c.l.b16 %v3863
        %v3903 = vunpack.c.l.b16 %v3864
        %v3904 = vunpack.c.l.b16 %v3865
        %v3905 = vunpack.c.l.b16 %v3866
        %v3906 = vunpack.c.l.b16 %v3867
        %v3907 = vunpack.c.l.b16 %v3868
        %v3908 = vunpack.c.l.b16 %v3869
        %v3909 = vunpack.c.l.b16 %v3870
        %v3910 = vunpack.c.l.b16 %v3871
        %v3911 = vunpack.c.l.b16 %v3872
        %v3912 = vunpack.c.l.b16 %v3873
        %v3913 = vunpack.c.l.b16 %v3874
        %v3914 = vunpack.c.l.b16 %v3875
        %v3915 = vunpack.c.l.b16 %v3876
        %v3916 = vpack.c.b16 %v3901, %v3900
        %v3917 = vpack.c.b16 %v3903, %v3902
        %v3918 = vpack.c.b16 %v3905, %v3904
        %v3919 = vpack.c.b16 %v3907, %v3906
        %v3920 = vpack.c.b16 %v3909, %v3908
        %v3921 = vpack.c.b16 %v3911, %v3910
        %v3922 = vpack.c.b16 %v3913, %v3912
        %v3923 = vpack.c.b16 %v3915, %v3914
        %3932 = vmatprep.subr.bf16.mxu0 0
        %3933 = vmatpush1.bf16.msra.mxu0 %v3916
        %3934 = vmatprep.subr.bf16.mxu0 0
        %3935 = vmatpush1.bf16.msra.mxu0 %v3917
        %3936 = vmatprep.subr.bf16.mxu0 0
        %3937 = vmatpush1.bf16.msra.mxu0 %v3918
        %3938 = vmatprep.subr.bf16.mxu0 0
        %3939 = vmatpush1.bf16.msra.mxu0 %v3919
        %3940 = vmatprep.subr.bf16.mxu0 0
        %3941 = vmatpush1.bf16.msra.mxu0 %v3920
        %3942 = vmatprep.subr.bf16.mxu0 0
        %3943 = vmatpush1.bf16.msra.mxu0 %v3921
        %3944 = vmatprep.subr.bf16.mxu0 0
        %3945 = vmatpush1.bf16.msra.mxu0 %v3922
        %3946 = vmatprep.subr.bf16.mxu0 0
        %3947 = vmatpush1.bf16.msra.mxu0 %v3923
        %3948 = vmatprep.subr.bf16.mxu0 0
        %3949 = vmatpush1.bf16.msra.mxu0 0
        %3950 = vmatprep.subr.bf16.mxu0 0
        %3951 = vmatpush1.bf16.msra.mxu0 0
        %3952 = vmatprep.subr.bf16.mxu0 0
        %3953 = vmatpush1.bf16.msra.mxu0 0
        %3954 = vmatprep.subr.bf16.mxu0 0
        %3955 = vmatpush1.bf16.msra.mxu0 0
        %3956 = vmatprep.subr.bf16.mxu0 0
        %3957 = vmatpush1.bf16.msra.mxu0 0
        %3958 = vmatprep.subr.bf16.mxu0 0
        %3959 = vmatpush1.bf16.msra.mxu0 0
        %3960 = vmatprep.subr.bf16.mxu0 0
        %3961 = vmatpush1.bf16.msra.mxu0 0
        %3962 = vmatprep.subr.bf16.mxu0 0
        %3963 = vmatpush1.bf16.msra.mxu0 0
        %3964 = vmatprep.mubr.bf16.mxu0 0
        %3965 = vmatmul.mubr.bf16.gmra.mrb[0].mxu0 %v3859
        %v3966 = vpop.f32.mrb[0].mxu0
        %v3967 = vadd.f32 %v3882, %v3966
        %v3968 = vpop.f32.mrb[0].mxu0
        %v3969 = vpop.f32.mrb[0].mxu0
        %v3970 = vadd.f32 %v3882, %v3969
        %v3971 = vpop.f32.mrb[0].mxu0
        %3972 = vmatprep.mubr.bf16.mxu0 0
        %3973 = vmatmul.mubr.bf16.gmra.mrb[0].mxu0 %v3860
        %v3974 = vpop.f32.mrb[0].mxu0
        %v3975 = vadd.f32 %v3882, %v3974
        %v3976 = vpop.f32.mrb[0].mxu0
        %v3977 = vpop.f32.mrb[0].mxu0
        %v3978 = vadd.f32 %v3882, %v3977
        %v3979 = vpop.f32.mrb[0].mxu0
        %3980 = vdwg.mxu0
        %v3981 = vmax.f32 %v3967, 0.0
        %v3982 = vmax.f32 %v3970, 0.0
        %v3983 = vmax.f32 %v3975, 0.0
        %v3984 = vmax.f32 %v3978, 0.0
        %v3985 = vpack.c.bf16 %v3982, %v3981
        %v3986 = vpack.c.bf16 %v3984, %v3983
        %v3987 = vld [vmem:[#allocation16] sm:$0xf]
        %v3988 = vld [vmem:[#allocation16 + $0x4] sm:$0xf]
        %v3989 = vld [vmem:[#allocation16 + $0x8] sm:$0xf]
        %v3990 = vld [vmem:[#allocation16 + $0xc] sm:$0xf]
        %v3991 = vld [vmem:[#allocation16 + $0x10] sm:$0xf]
        %v3992 = vld [vmem:[#allocation16 + $0x14] sm:$0xf]
        %v3993 = vld [vmem:[#allocation16 + $0x18] sm:$0xf]
        %v3994 = vld [vmem:[#allocation16 + $0x1c] sm:$0xf]
        %v3995 = vld [vmem:[#allocation16 + $0x20] sm:$0xf]
        %v3996 = vld [vmem:[#allocation16 + $0x24] sm:$0xf]
        %v3997 = vld [vmem:[#allocation16 + $0x28] sm:$0xf]
        %v3998 = vld [vmem:[#allocation16 + $0x2c] sm:$0xf]
        %v3999 = vld [vmem:[#allocation16 + $0x30] sm:$0xf]
        %v4000 = vld [vmem:[#allocation16 + $0x34] sm:$0xf]
        %v4001 = vld [vmem:[#allocation16 + $0x38] sm:$0xf]
        %v4002 = vld [vmem:[#allocation16 + $0x3c] sm:$0xf]
        %v4003 = vld [vmem:[%s14] sm:$0x1]
        %v4005 = vlaneseq
        %v4006 = vshrl.u32 %v4005, 7
        %v4007 = vsub.s32 0, %v4006
        %v4008 = vrot.slane %v4003, %v4007
        %v4026 = vunpack.c.l.b16 %v3987
        %v4027 = vunpack.c.l.b16 %v3988
        %v4028 = vunpack.c.l.b16 %v3989
        %v4029 = vunpack.c.l.b16 %v3990
        %v4030 = vunpack.c.l.b16 %v3991
        %v4031 = vunpack.c.l.b16 %v3992
        %v4032 = vunpack.c.l.b16 %v3993
        %v4033 = vunpack.c.l.b16 %v3994
        %v4034 = vunpack.c.l.b16 %v3995
        %v4035 = vunpack.c.l.b16 %v3996
        %v4036 = vunpack.c.l.b16 %v3997
        %v4037 = vunpack.c.l.b16 %v3998
        %v4038 = vunpack.c.l.b16 %v3999
        %v4039 = vunpack.c.l.b16 %v4000
        %v4040 = vunpack.c.l.b16 %v4001
        %v4041 = vunpack.c.l.b16 %v4002
        %v4042 = vpack.c.b16 %v4027, %v4026
        %v4043 = vpack.c.b16 %v4029, %v4028
        %v4044 = vpack.c.b16 %v4031, %v4030
        %v4045 = vpack.c.b16 %v4033, %v4032
        %v4046 = vpack.c.b16 %v4035, %v4034
        %v4047 = vpack.c.b16 %v4037, %v4036
        %v4048 = vpack.c.b16 %v4039, %v4038
        %v4049 = vpack.c.b16 %v4041, %v4040
        %4058 = vmatprep.subr.bf16.mxu0 0
        %4059 = vmatpush1.bf16.msra.mxu0 %v4042
        %4060 = vmatprep.subr.bf16.mxu0 0
        %4061 = vmatpush1.bf16.msra.mxu0 %v4043
        %4062 = vmatprep.subr.bf16.mxu0 0
        %4063 = vmatpush1.bf16.msra.mxu0 %v4044
        %4064 = vmatprep.subr.bf16.mxu0 0
        %4065 = vmatpush1.bf16.msra.mxu0 %v4045
        %4066 = vmatprep.subr.bf16.mxu0 0
        %4067 = vmatpush1.bf16.msra.mxu0 %v4046
        %4068 = vmatprep.subr.bf16.mxu0 0
        %4069 = vmatpush1.bf16.msra.mxu0 %v4047
        %4070 = vmatprep.subr.bf16.mxu0 0
        %4071 = vmatpush1.bf16.msra.mxu0 %v4048
        %4072 = vmatprep.subr.bf16.mxu0 0
        %4073 = vmatpush1.bf16.msra.mxu0 %v4049
        %4074 = vmatprep.subr.bf16.mxu0 0
        %4075 = vmatpush1.bf16.msra.mxu0 0
        %4076 = vmatprep.subr.bf16.mxu0 0
        %4077 = vmatpush1.bf16.msra.mxu0 0
        %4078 = vmatprep.subr.bf16.mxu0 0
        %4079 = vmatpush1.bf16.msra.mxu0 0
        %4080 = vmatprep.subr.bf16.mxu0 0
        %4081 = vmatpush1.bf16.msra.mxu0 0
        %4082 = vmatprep.subr.bf16.mxu0 0
        %4083 = vmatpush1.bf16.msra.mxu0 0
        %4084 = vmatprep.subr.bf16.mxu0 0
        %4085 = vmatpush1.bf16.msra.mxu0 0
        %4086 = vmatprep.subr.bf16.mxu0 0
        %4087 = vmatpush1.bf16.msra.mxu0 0
        %4088 = vmatprep.subr.bf16.mxu0 0
        %4089 = vmatpush1.bf16.msra.mxu0 0
        %4090 = vmatprep.mubr.bf16.mxu0 0
        %4091 = vmatmul.mubr.bf16.gmra.mrb[0].mxu0 %v3985
        %v4092 = vpop.f32.mrb[0].mxu0
        %v4093 = vadd.f32 %v4008, %v4092
        %v4094 = vpop.f32.mrb[0].mxu0
        %v4095 = vpop.f32.mrb[0].mxu0
        %v4096 = vadd.f32 %v4008, %v4095
        %v4097 = vpop.f32.mrb[0].mxu0
        %4098 = vmatprep.mubr.bf16.mxu0 0
        %4099 = vmatmul.mubr.bf16.gmra.mrb[0].mxu0 %v3986
        %v4100 = vpop.f32.mrb[0].mxu0
        %v4101 = vadd.f32 %v4008, %v4100
        %v4102 = vpop.f32.mrb[0].mxu0
        %v4103 = vpop.f32.mrb[0].mxu0
        %v4104 = vadd.f32 %v4008, %v4103
        %v4105 = vpop.f32.mrb[0].mxu0
        %4106 = vdwg.mxu0
        %4107 = vst [vmem:[%s629] sm:$0xff] %v4093
        %4108 = vst [vmem:[%s629 + $0x8] sm:$0xff] %v4096
        %4109 = vst [vmem:[%s629 + $0x10] sm:$0xff] %v4101
        %4110 = vst [vmem:[%s629 + $0x18] sm:$0xff] %v4104
        %s4111 = sand.u32 %s364, 1
        %s4112 = scalar_lea.sflag [#allocation4], %s4111
        %s4113 = sand.u32 %s364, 1
        %s4114 = smul.addr %s4113, 32
        %s4115 = scalar_lea.vmem [#allocation17], %s4114
        // Predicated region
        $region117: #{tpu_custom_call.1} parent=79 // pred_check
          %p4116 = pneg %p374
        $region118: #{tpu_custom_call.1} parent=79 // pred_check_branch
          %4118 = sbr.rel (%p4116) target = $region120
        $region119: #{tpu_custom_call.1} parent=79 // pred_region
          %s4119 = smul.u32 4, %s36
          %s4121 = ssub.s32 512, 512
          %4122 = vsyncadd %s4112, %s4121
          %s4123 = smul.addr %s4119, 128
          %s4124 = scalar_lea.hbm %s15, %s4123
          %s4125 = sshll.u32 %s4115, 4
          %s4126 = int_to_ptr.vmem [resolvable:$true] %s4125
          %4131 = dma.vmem_to_hbm [thread:$0]  %s4126, 512, %s4124, %s4112, 128, 128, 8
        $region120: #{tpu_custom_call.1} parent=79 // pred_fallthru
          _
      $region80: #{tpu_custom_call.1} parent=5 // pred_fallthru
        _
      %p4132 = scmp.le.s32.totalorder 2, %s31
      // Predicated region
      $region121: #{tpu_custom_call.1} parent=5 // pred_check
        %p4133 = pneg %p4132
      $region122: #{tpu_custom_call.1} parent=5 // pred_check_branch
        %4135 = sbr.rel (%p4133) target = $region124
      $region123: #{tpu_custom_call.1} parent=5 // pred_region
        %s4136 = ssub.s32 %s31, 2
        // Predicated region
        $region125: #{tpu_custom_call.1} parent=123 // pred_check
          %p4137 = pneg %p380
        $region126: #{tpu_custom_call.1} parent=123 // pred_check_branch
          %4139 = sbr.rel (%p4137) target = $region128
        $region127: #{tpu_custom_call.1} parent=123 // pred_region
          %s4140 = sand.u32 %s365, 1
          %s4141 = scalar_lea.sflag [#allocation4], %s4140
          %s4142 = sand.u32 %s365, 1
          %s4143 = smul.addr %s4142, 32
          %s4144 = scalar_lea.vmem [#allocation17], %s4143
          %4145 = dma.done %s4141, 512
        $region128: #{tpu_custom_call.1} parent=123 // pred_fallthru
          _
      $region124: #{tpu_custom_call.1} parent=5 // pred_fallthru
        _
    $region6: #{tpu_custom_call.1} parent=1 // loop_footer
      %s35 = sadd.s32 1, %s31
    $region7: #{tpu_custom_call.1} parent=1 // loop_footer_branch
      %30 = sbr.rel target = $region3
    $region8: #{tpu_custom_call.1} parent=1 // loop_exit
      _
    %4146 = vsyncpa [#allocation3], 1
    %s4147 = scalar_lea.sflag [#allocation3], 1
    %4148 = vsyncpa %s4147, 1
    %4149 = vsyncpa [#allocation6], 1
    %4150 = vsyncpa [#allocation9], 1
    %4151 = vsyncpa [#allocation12], 1
    %4152 = vsyncpa [#allocation15], 1
    %4153 = vsyncpa [#allocation4], 1
    %s4154 = scalar_lea.sflag [#allocation4], 1
    %4155 = vsyncpa %s4154, 1

</llo_original>
